<compile_context>
chip_gen: v5e
topology: v5e:2x2
jax: 0.10.0
libtpu: 0.0.40
codegen_flags: <defaults>
</compile_context>

<pallas_src>
import functools

import jax
import jax.numpy as jnp
from jax import lax
from jax.experimental import pallas as pl
from jax.experimental.pallas import tpu as pltpu


def _sym_adjugate(c00, c01, c02, c11, c12, c22):
    """Adjugate of a symmetric 3x3 matrix (elementwise over (1, T) arrays)."""
    m00 = c11 * c22 - c12 * c12
    m01 = c02 * c12 - c01 * c22
    m02 = c01 * c12 - c02 * c11
    m11 = c00 * c22 - c02 * c02
    m12 = c01 * c02 - c00 * c12
    m22 = c00 * c11 - c01 * c01
    return m00, m01, m02, m11, m12, m22


def _sym_square_normed(m00, m01, m02, m11, m12, m22):
    """Square a symmetric 3x3 matrix and normalize by its trace (stability)."""
    t00 = m00 * m00 + m01 * m01 + m02 * m02
    t01 = m00 * m01 + m01 * m11 + m02 * m12
    t02 = m00 * m02 + m01 * m12 + m02 * m22
    t11 = m01 * m01 + m11 * m11 + m12 * m12
    t12 = m01 * m02 + m11 * m12 + m12 * m22
    t22 = m02 * m02 + m12 * m12 + m22 * m22
    # scale-only normalization -> approx reciprocal on the EUP is fine
    inv_tr = pl.reciprocal(t00 + t11 + t22 + 1e-30, approx=True)
    return (t00 * inv_tr, t01 * inv_tr, t02 * inv_tr,
            t11 * inv_tr, t12 * inv_tr, t22 * inv_tr)


def _manifoldness_kernel(xnc_ref, xcf_ref, o_ref, nrm_scr, rhs_scr, *,
                         support, neighborhood_size, tile, n_tiles):
    f32 = jnp.float32
    N = xnc_ref.shape[1]
    TI = tile
    K32 = neighborhood_size
    K8 = support
    BIG = jnp.float32(3.0e38)
    nbits = max(1, (N - 1).bit_length())

    p = pl.program_id(1)          # pass: 0 = normals, 1 = cosine statistics
    t = pl.program_id(2)          # query tile
    if n_tiles == 1:
        off = 0
    else:
        off = pl.multiple_of(t * TI, TI)

    # zero the resident per-batch accumulator at the first step of this batch
    @pl.when(jnp.logical_and(p == 0, t == 0))
    def _init():
        o_ref[...] = jnp.zeros_like(o_ref)

    x_nc = xnc_ref[0]                                    # (N, 3): point j on sublanes
    x_cf = xcf_ref[0]                                    # (3, N): point i on lanes

    # --- cloud centroid (identical in both passes -> bit-identical keys) -----
    cx = jnp.mean(x_cf[0:1, :])
    cy = jnp.mean(x_cf[1:2, :])
    cz = jnp.mean(x_cf[2:3, :])

    # centered coordinates, both orientations (cheap (1,N)/(N,1) work)
    xa0 = x_cf[0:1, :] - cx                              # (1, N) all points, lane-dense
    xa1 = x_cf[1:2, :] - cy
    xa2 = x_cf[2:3, :] - cz
    x0c = x_nc[:, 0:1] - cx                              # (N, 1) all points, sublane-dense
    x1c = x_nc[:, 1:2] - cy
    x2c = x_nc[:, 2:3] - cz

    # centered coordinates of the current query tile (lane-dense)
    if n_tiles == 1:
        xq0, xq1, xq2 = xa0, xa1, xa2
    else:
        xq0 = xcf_ref[0, 0:1, pl.ds(off, TI)] - cx       # (1, TI)
        xq1 = xcf_ref[0, 1:2, pl.ds(off, TI)] - cy
        xq2 = xcf_ref[0, 2:3, pl.ds(off, TI)] - cz

    def distance_keys():
        # pairwise squared distances, layout [neighbor j (sublane), query i (lane)]
        # TODO(synk): xdot could be offloaded to the MXU as an (N,3)x(3,TI) matmul;
        # left on the VPU since the selection loop dominates after the rewrite.
        xdot = x0c * xq0 + x1c * xq1 + x2c * xq2         # (N, TI)   x_j . x_i
        sq_row = xq0 * xq0 + xq1 * xq1 + xq2 * xq2       # (1, TI)   ||x_i||^2
        sq_col = x0c * x0c + x1c * x1c + x2c * x2c       # (N, 1)    ||x_j||^2
        d = jnp.maximum(sq_col + sq_row - 2.0 * xdot, 0.0)
        # Pack the neighbor index into the low mantissa bits -> strictly unique,
        # order-preserving keys (ties broken by smallest index); +2^23 keeps every
        # key a normal float.  Quantizes d by ~2^(nbits-24) relative (centering
        # shrinks the dynamic range); keys would only misbehave for d >= ~1.7e38.
        # TODO(synk): exact tie-break order of pointops.knn is unspecified.
        nbr = lax.broadcasted_iota(jnp.int32, (N, TI), 0)
        d_bits = pltpu.bitcast(d, jnp.int32)
        keyed = jnp.bitwise_or(jnp.bitwise_and(d_bits, jnp.int32(-(1 << nbits))), nbr)
        keyed = keyed + jnp.int32(1 << 23)
        return pltpu.bitcast(keyed, jnp.float32)

    # ------------------------------ pass 0: normals --------------------------
    @pl.when(p == 0)
    def _pass_normals():
        d_keyed = distance_keys()

        # k-th smallest via threshold carry: only a (1, TI) loop carry.
        def select_step(_, thr):
            masked = jnp.where(d_keyed > thr, d_keyed, BIG)
            return jnp.min(masked, axis=0, keepdims=True)

        thr0 = jnp.full((1, TI), -1.0, f32)              # below every (positive) key
        thr8 = lax.fori_loop(0, K8, select_step, thr0, unroll=True)
        thr32 = lax.fori_loop(0, K32 - K8, select_step, thr8, unroll=True)
        w32 = (d_keyed <= thr32).astype(f32)             # (N, TI), exactly K32 ones/col

        # per-point first & second coordinate moments: ONE (16,N)x(N,TI) matmul
        rhs_scr[0:1, :] = xa0
        rhs_scr[1:2, :] = xa1
        rhs_scr[2:3, :] = xa2
        rhs_scr[3:4, :] = xa0 * xa0
        rhs_scr[4:5, :] = xa0 * xa1
        rhs_scr[5:6, :] = xa0 * xa2
        rhs_scr[6:7, :] = xa1 * xa1
        rhs_scr[7:8, :] = xa1 * xa2
        rhs_scr[8:9, :] = xa2 * xa2
        rhs_scr[9:16, :] = jnp.zeros((7, N), f32)
        M = lax.dot_general(rhs_scr[...], w32, (((1,), (0,)), ((), ())),
                            preferred_element_type=f32) * f32(1.0 / K32)   # (16, TI)
        mx, my, mz = M[0:1, :], M[1:2, :], M[2:3, :]
        c00 = M[3:4, :] - mx * mx
        c01 = M[4:5, :] - mx * my
        c02 = M[5:6, :] - mx * mz
        c11 = M[6:7, :] - my * my
        c12 = M[7:8, :] - my * mz
        c22 = M[8:9, :] - mz * mz

        # smallest eigenvector of the 3x3 covariance (per point, lane-dense).
        # adj(C) has its largest eigenvalue on C's smallest eigenvector, so
        # repeated squaring of adj(C) + Rayleigh refinement replaces symeig.
        # TODO(synk): exact torch.symeig has no Pallas equivalent; degenerate
        # (planar/duplicate) neighborhoods may differ slightly.
        m00, m01, m02, m11, m12, m22 = _sym_adjugate(c00, c01, c02, c11, c12, c22)
        inv_scale = pl.reciprocal(jnp.abs(m00) + jnp.abs(m01) + jnp.abs(m02)
                                  + jnp.abs(m11) + jnp.abs(m12) + jnp.abs(m22) + 1e-30,
                                  approx=True)
        m00, m01, m02 = m00 * inv_scale, m01 * inv_scale, m02 * inv_scale
        m11, m12, m22 = m11 * inv_scale, m12 * inv_scale, m22 * inv_scale
        for _ in range(4):
            m00, m01, m02, m11, m12, m22 = _sym_square_normed(m00, m01, m02, m11, m12, m22)

        n0 = m00 * m00 + m01 * m01 + m02 * m02
        n1 = m01 * m01 + m11 * m11 + m12 * m12
        n2 = m02 * m02 + m12 * m12 + m22 * m22
        use0 = jnp.logical_and(n0 >= n1, n0 >= n2)
        use1 = jnp.logical_and(jnp.logical_not(use0), n1 >= n2)
        vx = jnp.where(use0, m00, jnp.where(use1, m01, m02))
        vy = jnp.where(use0, m01, jnp.where(use1, m11, m12))
        vz = jnp.where(use0, m02, jnp.where(use1, m12, m22))
        inv_nrm = lax.rsqrt(vx * vx + vy * vy + vz * vz + 1e-30)
        vx, vy, vz = vx * inv_nrm, vy * inv_nrm, vz * inv_nrm

        for _ in range(2):  # Rayleigh-quotient / shifted-adjugate refinements
            lam = (c00 * vx * vx + c11 * vy * vy + c22 * vz * vz
                   + 2.0 * (c01 * vx * vy + c02 * vx * vz + c12 * vy * vz))
            a00, a11, a22 = c00 - lam, c11 - lam, c22 - lam
            b00, b01, b02, b11, b12, b22 = _sym_adjugate(a00, c01, c02, a11, c12, a22)
            wx = b00 * vx + b01 * vy + b02 * vz
            wy = b01 * vx + b11 * vy + b12 * vz
            wz = b02 * vx + b12 * vy + b22 * vz
            wn = jnp.sqrt(wx * wx + wy * wy + wz * wz)
            ok = wn > 1e-20
            inv_wn = 1.0 / jnp.maximum(wn, 1e-20)
            vx = jnp.where(ok, wx * inv_wn, vx)
            vy = jnp.where(ok, wy * inv_wn, vy)
            vz = jnp.where(ok, wz * inv_wn, vz)

        # direction disambiguation (pytorch3d _disambiguate_vector_directions)
        self_dot = vx * xq0 + vy * xq1 + vz * xq2                       # (1, TI)
        proj = x0c * vx + x1c * vy + x2c * vz - self_dot                # (N, TI)
        n_pos = jnp.sum(jnp.where(proj > 0, w32, 0.0), axis=0, keepdims=True)
        sign = jnp.where(n_pos < (0.5 * K32), -1.0, 1.0)
        vx, vy, vz = vx * sign, vy * sign, vz * sign

        # CosineSimilarity eps path must stay exact (no approx reciprocal here)
        norm = jnp.sqrt(vx * vx + vy * vy + vz * vz)
        inv_n = 1.0 / jnp.maximum(norm, 1e-6)
        nrm_scr[0:1, pl.ds(off, TI)] = vx * inv_n
        nrm_scr[1:2, pl.ds(off, TI)] = vy * inv_n
        nrm_scr[2:3, pl.ds(off, TI)] = vz * inv_n
        nrm_scr[3:4, pl.ds(off, TI)] = thr8              # support threshold for pass 1

    # --------------------------- pass 1: cosine statistics -------------------
    @pl.when(p == 1)
    def _pass_stats():
        d_keyed = distance_keys()                        # bit-identical rebuild
        thr8 = nrm_scr[3:4, pl.ds(off, TI)]              # (1, TI)
        w8 = (d_keyed <= thr8).astype(f32)               # (N, TI), exactly K8 ones/col

        nvx = nrm_scr[0:1, :]                            # (1, N) normals of ALL points
        nvy = nrm_scr[1:2, :]
        nvz = nrm_scr[2:3, :]
        rhs_scr[0:1, :] = nvx
        rhs_scr[1:2, :] = nvy
        rhs_scr[2:3, :] = nvz
        rhs_scr[3:4, :] = nvx * nvx
        rhs_scr[4:5, :] = nvx * nvy
        rhs_scr[5:6, :] = nvx * nvz
        rhs_scr[6:7, :] = nvy * nvy
        rhs_scr[7:8, :] = nvy * nvz
        rhs_scr[8:9, :] = nvz * nvz
        rhs_scr[9:16, :] = jnp.zeros((7, N), f32)
        T = lax.dot_general(rhs_scr[...], w8, (((1,), (0,)), ((), ())),
                            preferred_element_type=f32)                 # (16, TI)

        # anchor normal = self normal (nearest neighbor = the point itself).
        # TODO(synk): duplicate points could change the anchor index in PyTorch.
        avx = nrm_scr[0:1, pl.ds(off, TI)]
        avy = nrm_scr[1:2, pl.ds(off, TI)]
        avz = nrm_scr[2:3, pl.ds(off, TI)]
        nt = avx * T[0:1, :] + avy * T[1:2, :] + avz * T[2:3, :]        # sum w8*cos
        quad = (T[3:4, :] * avx * avx + T[6:7, :] * avy * avy + T[8:9, :] * avz * avz
                + 2.0 * (T[4:5, :] * avx * avy + T[5:6, :] * avx * avz
                         + T[7:8, :] * avy * avz))                      # sum w8*cos^2
        # std_unbiased(1 - cos) == std_unbiased(cos)
        var = (quad - nt * nt * f32(1.0 / K8)) * f32(1.0 / (K8 - 1))
        std = jnp.sqrt(jnp.maximum(var, 0.0))                           # (1, TI)
        o_ref[...] = o_ref[...] + (jnp.sum(std) * f32(1.0 / N)) * jnp.ones((1, 1, 1), f32)


def _pick_vmem_limit():
    """Generation-aware VMEM budget (leave headroom on 64 MiB v7x parts)."""
    try:
        cap = int(getattr(pltpu.get_tpu_info(), "vmem_capacity_bytes",
                          128 * 1024 * 1024))
    except Exception:
        cap = 128 * 1024 * 1024
    return min(100 * 1024 * 1024, (cap * 3) // 4)


def _pick_query_tile(n_points, vmem_limit_bytes):
    """Largest tile (full cloud, or a 128-multiple divisor of N) such that
    ~4 live (N, tile) f32 temporaries stay well inside the VMEM budget."""
    budget = vmem_limit_bytes // 2
    if 16 * n_points * n_points <= budget or n_points <= 256:
        return n_points
    best = 0
    cand = 128
    while cand < n_points:
        if n_points % cand == 0 and 16 * n_points * cand <= budget:
            best = cand
        cand *= 2
    if best == 0:
        # TODO(synk): pad the point set when N has no suitable 128-multiple divisor
        best = n_points
    return best


def manifoldness_constraint(xyz, support=8, neighborhood_size=32):
    """xyz: (B, N, 3) float32 point cloud. Returns (B,) penalty, like the module."""
    B, N, C = xyz.shape
    assert C == 3
    assert N >= neighborhood_size >= support >= 2

    xyz = xyz.astype(jnp.float32)
    xyz_t = jnp.transpose(xyz, (0, 2, 1))        # (B, 3, N), tiny channels-first copy

    vmem_limit = _pick_vmem_limit()
    tile = _pick_query_tile(N, vmem_limit)
    assert N % tile == 0
    n_tiles = N // tile

    kernel = functools.partial(_manifoldness_kernel, support=support,
                               neighborhood_size=neighborhood_size,
                               tile=tile, n_tiles=n_tiles)
    out = pl.pallas_call(
        kernel,
        out_shape=jax.ShapeDtypeStruct((B, 1, 1), jnp.float32),
        grid_spec=pltpu.PrefetchScalarGridSpec(
            num_scalar_prefetch=0,
            grid=(B, 2, n_tiles),                 # (batch, pass, query tile)
            in_specs=[pl.BlockSpec((1, N, 3), lambda b, p, t: (b, 0, 0)),
                      pl.BlockSpec((1, 3, N), lambda b, p, t: (b, 0, 0))],
            out_specs=pl.BlockSpec((1, 1, 1), lambda b, p, t: (b, 0, 0)),
            scratch_shapes=[pltpu.VMEM((8, N), jnp.float32),    # normals (rows 0-2) + thr8 (row 3)
                            pltpu.VMEM((16, N), jnp.float32)]), # 9-row moment matrices
        compiler_params=pltpu.CompilerParams(
            # pass/tile axes must stay sequential: pass 1 consumes the full
            # normals scratch written by pass 0 and accumulates into o_ref.
            dimension_semantics=("parallel", "arbitrary", "arbitrary"),
            vmem_limit_bytes=vmem_limit),
    )(xyz, xyz_t)
    return out.reshape(B)


if __name__ == "__main__":
    B, N = 2, 64
    key = jax.random.PRNGKey(0)
    xyz = jax.random.normal(key, (B, N, 3), dtype=jnp.float32)

    penalty = manifoldness_constraint(xyz, support=8, neighborhood_size=32)
    penalty = jax.block_until_ready(penalty)

    assert penalty.shape == (B,)
    assert bool(jnp.all(jnp.isfinite(penalty)))
    print("KERNEL_OK")
</pallas_src>

<mosaic_0001>
module attributes {stable_mosaic.version = 11 : i64} {
  func.func @_manifoldness_kernel(%arg0: i32, %arg1: i32, %arg2: i32, %arg3: memref<1x64x3xf32, #tpu.memory_space<vmem>>, %arg4: memref<1x3x64xf32, #tpu.memory_space<vmem>>, %arg5: memref<1x1x1xf32, #tpu.memory_space<vmem>>, %arg6: memref<8x64xf32, #tpu.memory_space<vmem>>, %arg7: memref<16x64xf32, #tpu.memory_space<vmem>>) attributes {dimension_semantics = [#tpu.dimension_semantics<parallel>, #tpu.dimension_semantics<arbitrary>, #tpu.dimension_semantics<arbitrary>], iteration_bounds = array<i64: 2, 2, 1>, scalar_prefetch = 0 : i64, scratch_operands = 2 : i64, tpu.core_type = #tpu.core_type<tc>, window_params = [{transform_indices = @transform_0, window_bounds = array<i64: 1, 64, 3>}, {transform_indices = @transform_1, window_bounds = array<i64: 1, 3, 64>}, {transform_indices = @transform_2, window_bounds = array<i64: 1, 1, 1>}]} {
    %c0_i32 = arith.constant 0 : i32
    %0 = arith.cmpi eq, %arg1, %c0_i32 : i32
    %c0_i32_0 = arith.constant 0 : i32
    %1 = arith.cmpi eq, %arg2, %c0_i32_0 : i32
    %2 = arith.andi %0, %1 : i1
    %3 = arith.extui %2 : i1 to i32
    %c0_i32_1 = arith.constant 0 : i32
    %4 = arith.cmpi ne, %3, %c0_i32_1 : i32
    scf.if %4 {
      %cst_16 = arith.constant 0.000000e+00 : f32
      %51 = vector.broadcast %cst_16 : f32 to vector<1x1x1xf32>
      %c0_17 = arith.constant 0 : index
      %c0_18 = arith.constant 0 : index
      %c0_19 = arith.constant 0 : index
      %52 = vector.load %arg5[%c0_17, %c0_18, %c0_19] : memref<1x1x1xf32, #tpu.memory_space<vmem>>, vector<1x1x1xf32>
      tpu.vector_store %arg5[%c0_17, %c0_18, %c0_19], %51 {strides = array<i32>} : memref<1x1x1xf32, #tpu.memory_space<vmem>>, vector<1x1x1xf32>,
    } else {
    }
    %c0 = arith.constant 0 : index
    %c0_2 = arith.constant 0 : index
    %c0_3 = arith.constant 0 : index
    %5 = vector.load %arg3[%c0, %c0_2, %c0_3] : memref<1x64x3xf32, #tpu.memory_space<vmem>>, vector<1x64x3xf32>
    %6 = vector.shape_cast %5 : vector<1x64x3xf32> to vector<64x3xf32>
    %c0_4 = arith.constant 0 : index
    %c0_5 = arith.constant 0 : index
    %c0_6 = arith.constant 0 : index
    %7 = vector.load %arg4[%c0_4, %c0_5, %c0_6] : memref<1x3x64xf32, #tpu.memory_space<vmem>>, vector<1x3x64xf32>
    %8 = vector.shape_cast %7 : vector<1x3x64xf32> to vector<3x64xf32>
    %9 = vector.extract_strided_slice %8 {offsets = [0, 0], sizes = [1, 64], strides = [1, 1]} : vector<3x64xf32> to vector<1x64xf32>
    %10 = vector.shape_cast %9 : vector<1x64xf32> to vector<1x1x64xf32>
    %cst = arith.constant dense<0.000000e+00> : vector<1xf32>
    %11 = vector.multi_reduction <add>, %10, %cst [1, 2] : vector<1x1x64xf32> to vector<1xf32>
    %12 = vector.shape_cast %11 : vector<1xf32> to vector<1x1x1xf32>
    %13 = vector.extract %12[0, 0, 0] : f32 from vector<1x1x1xf32>
    %cst_7 = arith.constant 6.400000e+01 : f32
    %14 = arith.divf %13, %cst_7 : f32
    %15 = vector.extract_strided_slice %8 {offsets = [1, 0], sizes = [1, 64], strides = [1, 1]} : vector<3x64xf32> to vector<1x64xf32>
    %16 = vector.shape_cast %15 : vector<1x64xf32> to vector<1x1x64xf32>
    %cst_8 = arith.constant dense<0.000000e+00> : vector<1xf32>
    %17 = vector.multi_reduction <add>, %16, %cst_8 [1, 2] : vector<1x1x64xf32> to vector<1xf32>
    %18 = vector.shape_cast %17 : vector<1xf32> to vector<1x1x1xf32>
    %19 = vector.extract %18[0, 0, 0] : f32 from vector<1x1x1xf32>
    %cst_9 = arith.constant 6.400000e+01 : f32
    %20 = arith.divf %19, %cst_9 : f32
    %21 = vector.extract_strided_slice %8 {offsets = [2, 0], sizes = [1, 64], strides = [1, 1]} : vector<3x64xf32> to vector<1x64xf32>
    %22 = vector.shape_cast %21 : vector<1x64xf32> to vector<1x1x64xf32>
    %cst_10 = arith.constant dense<0.000000e+00> : vector<1xf32>
    %23 = vector.multi_reduction <add>, %22, %cst_10 [1, 2] : vector<1x1x64xf32> to vector<1xf32>
    %24 = vector.shape_cast %23 : vector<1xf32> to vector<1x1x1xf32>
    %25 = vector.extract %24[0, 0, 0] : f32 from vector<1x1x1xf32>
    %cst_11 = arith.constant 6.400000e+01 : f32
    %26 = arith.divf %25, %cst_11 : f32
    %27 = vector.extract_strided_slice %8 {offsets = [0, 0], sizes = [1, 64], strides = [1, 1]} : vector<3x64xf32> to vector<1x64xf32>
    %28 = vector.broadcast %14 : f32 to vector<1x64xf32>
    %29 = arith.subf %27, %28 : vector<1x64xf32>
    %30 = vector.extract_strided_slice %8 {offsets = [1, 0], sizes = [1, 64], strides = [1, 1]} : vector<3x64xf32> to vector<1x64xf32>
    %31 = vector.broadcast %20 : f32 to vector<1x64xf32>
    %32 = arith.subf %30, %31 : vector<1x64xf32>
    %33 = vector.extract_strided_slice %8 {offsets = [2, 0], sizes = [1, 64], strides = [1, 1]} : vector<3x64xf32> to vector<1x64xf32>
    %34 = vector.broadcast %26 : f32 to vector<1x64xf32>
    %35 = arith.subf %33, %34 : vector<1x64xf32>
    %36 = vector.extract_strided_slice %6 {offsets = [0, 0], sizes = [64, 1], strides = [1, 1]} : vector<64x3xf32> to vector<64x1xf32>
    %37 = vector.broadcast %14 : f32 to vector<64x1xf32>
    %38 = arith.subf %36, %37 : vector<64x1xf32>
    %39 = vector.extract_strided_slice %6 {offsets = [0, 1], sizes = [64, 1], strides = [1, 1]} : vector<64x3xf32> to vector<64x1xf32>
    %40 = vector.broadcast %20 : f32 to vector<64x1xf32>
    %41 = arith.subf %39, %40 : vector<64x1xf32>
    %42 = vector.extract_strided_slice %6 {offsets = [0, 2], sizes = [64, 1], strides = [1, 1]} : vector<64x3xf32> to vector<64x1xf32>
    %43 = vector.broadcast %26 : f32 to vector<64x1xf32>
    %44 = arith.subf %42, %43 : vector<64x1xf32>
    %c0_i32_12 = arith.constant 0 : i32
    %45 = arith.cmpi eq, %arg1, %c0_i32_12 : i32
    %46 = arith.extui %45 : i1 to i32
    %cst_13 = arith.constant 3.000000e+38 : f32
    %c0_i32_14 = arith.constant 0 : i32
    %47 = arith.cmpi ne, %46, %c0_i32_14 : i32
    scf.if %47 {
      %51 = vector.broadcast %38 : vector<64x1xf32> to vector<64x64xf32>
      %52 = vector.broadcast %29 : vector<1x64xf32> to vector<64x64xf32>
      %53 = arith.mulf %51, %52 : vector<64x64xf32>
      %54 = vector.broadcast %41 : vector<64x1xf32> to vector<64x64xf32>
      %55 = vector.broadcast %32 : vector<1x64xf32> to vector<64x64xf32>
      %56 = arith.mulf %54, %55 : vector<64x64xf32>
      %57 = arith.addf %53, %56 : vector<64x64xf32>
      %58 = vector.broadcast %44 : vector<64x1xf32> to vector<64x64xf32>
      %59 = vector.broadcast %35 : vector<1x64xf32> to vector<64x64xf32>
      %60 = arith.mulf %58, %59 : vector<64x64xf32>
      %61 = arith.addf %57, %60 : vector<64x64xf32>
      %62 = arith.mulf %29, %29 : vector<1x64xf32>
      %63 = arith.mulf %32, %32 : vector<1x64xf32>
      %64 = arith.addf %62, %63 : vector<1x64xf32>
      %65 = arith.mulf %35, %35 : vector<1x64xf32>
      %66 = arith.addf %64, %65 : vector<1x64xf32>
      %67 = arith.mulf %38, %38 : vector<64x1xf32>
      %68 = arith.mulf %41, %41 : vector<64x1xf32>
      %69 = arith.addf %67, %68 : vector<64x1xf32>
      %70 = arith.mulf %44, %44 : vector<64x1xf32>
      %71 = arith.addf %69, %70 : vector<64x1xf32>
      %72 = vector.broadcast %71 : vector<64x1xf32> to vector<64x64xf32>
      %73 = vector.broadcast %66 : vector<1x64xf32> to vector<64x64xf32>
      %74 = arith.addf %72, %73 : vector<64x64xf32>
      %cst_16 = arith.constant 2.000000e+00 : f32
      %75 = vector.broadcast %cst_16 : f32 to vector<64x64xf32>
      %76 = arith.mulf %75, %61 : vector<64x64xf32>
      %77 = arith.subf %74, %76 : vector<64x64xf32>
      %cst_17 = arith.constant 0.000000e+00 : f32
      %78 = vector.broadcast %cst_17 : f32 to vector<64x64xf32>
      %79 = arith.maximumf %77, %78 : vector<64x64xf32>
      %80 = tpu.iota {dimensions = array<i32: 0>} : vector<64x64xi32>
      %81 = tpu.bitcast %79 : vector<64x64xf32> -> vector<64x64xi32>
      %c-64_i32 = arith.constant -64 : i32
      %82 = vector.broadcast %c-64_i32 : i32 to vector<64x64xi32>
      %83 = arith.andi %81, %82 : vector<64x64xi32>
      %84 = arith.ori %83, %80 : vector<64x64xi32>
      %c8388608_i32 = arith.constant 8388608 : i32
      %85 = vector.broadcast %c8388608_i32 : i32 to vector<64x64xi32>
      %86 = arith.addi %84, %85 : vector<64x64xi32>
      %87 = tpu.bitcast %86 : vector<64x64xi32> -> vector<64x64xf32>
      %cst_18 = arith.constant -1.000000e+00 : f32
      %88 = vector.broadcast %cst_18 : f32 to vector<1x64xf32>
      %c0_i32_19 = arith.constant 0 : i32
      %89 = vector.broadcast %88 : vector<1x64xf32> to vector<64x64xf32>
      %90 = arith.cmpf ogt, %87, %89 : vector<64x64xf32>
      %91 = vector.broadcast %cst_13 : f32 to vector<64x64xf32>
      %92 = arith.select %90, %87, %91 : vector<64x64xi1>, vector<64x64xf32>
      %cst_20 = arith.constant dense<0x7F800000> : vector<64xf32>
      %93 = vector.multi_reduction <minimumf>, %92, %cst_20 [0] : vector<64x64xf32> to vector<64xf32>
      %94 = vector.shape_cast %93 : vector<64xf32> to vector<1x64xf32>
      %c1_i32_21 = arith.constant 1 : i32
      %95 = vector.broadcast %94 : vector<1x64xf32> to vector<64x64xf32>
      %96 = arith.cmpf ogt, %87, %95 : vector<64x64xf32>
      %97 = vector.broadcast %cst_13 : f32 to vector<64x64xf32>
      %98 = arith.select %96, %87, %97 : vector<64x64xi1>, vector<64x64xf32>
      %cst_22 = arith.constant dense<0x7F800000> : vector<64xf32>
      %99 = vector.multi_reduction <minimumf>, %98, %cst_22 [0] : vector<64x64xf32> to vector<64xf32>
      %100 = vector.shape_cast %99 : vector<64xf32> to vector<1x64xf32>
      %c2_i32 = arith.constant 2 : i32
      %101 = vector.broadcast %100 : vector<1x64xf32> to vector<64x64xf32>
      %102 = arith.cmpf ogt, %87, %101 : vector<64x64xf32>
      %103 = vector.broadcast %cst_13 : f32 to vector<64x64xf32>
      %104 = arith.select %102, %87, %103 : vector<64x64xi1>, vector<64x64xf32>
      %cst_23 = arith.constant dense<0x7F800000> : vector<64xf32>
      %105 = vector.multi_reduction <minimumf>, %104, %cst_23 [0] : vector<64x64xf32> to vector<64xf32>
      %106 = vector.shape_cast %105 : vector<64xf32> to vector<1x64xf32>
      %c3_i32 = arith.constant 3 : i32
      %107 = vector.broadcast %106 : vector<1x64xf32> to vector<64x64xf32>
      %108 = arith.cmpf ogt, %87, %107 : vector<64x64xf32>
      %109 = vector.broadcast %cst_13 : f32 to vector<64x64xf32>
      %110 = arith.select %108, %87, %109 : vector<64x64xi1>, vector<64x64xf32>
      %cst_24 = arith.constant dense<0x7F800000> : vector<64xf32>
      %111 = vector.multi_reduction <minimumf>, %110, %cst_24 [0] : vector<64x64xf32> to vector<64xf32>
      %112 = vector.shape_cast %111 : vector<64xf32> to vector<1x64xf32>
      %c4_i32 = arith.constant 4 : i32
      %113 = vector.broadcast %112 : vector<1x64xf32> to vector<64x64xf32>
      %114 = arith.cmpf ogt, %87, %113 : vector<64x64xf32>
      %115 = vector.broadcast %cst_13 : f32 to vector<64x64xf32>
      %116 = arith.select %114, %87, %115 : vector<64x64xi1>, vector<64x64xf32>
      %cst_25 = arith.constant dense<0x7F800000> : vector<64xf32>
      %117 = vector.multi_reduction <minimumf>, %116, %cst_25 [0] : vector<64x64xf32> to vector<64xf32>
      %118 = vector.shape_cast %117 : vector<64xf32> to vector<1x64xf32>
      %c5_i32 = arith.constant 5 : i32
      %119 = vector.broadcast %118 : vector<1x64xf32> to vector<64x64xf32>
      %120 = arith.cmpf ogt, %87, %119 : vector<64x64xf32>
      %121 = vector.broadcast %cst_13 : f32 to vector<64x64xf32>
      %122 = arith.select %120, %87, %121 : vector<64x64xi1>, vector<64x64xf32>
      %cst_26 = arith.constant dense<0x7F800000> : vector<64xf32>
      %123 = vector.multi_reduction <minimumf>, %122, %cst_26 [0] : vector<64x64xf32> to vector<64xf32>
      %124 = vector.shape_cast %123 : vector<64xf32> to vector<1x64xf32>
      %c6_i32 = arith.constant 6 : i32
      %125 = vector.broadcast %124 : vector<1x64xf32> to vector<64x64xf32>
      %126 = arith.cmpf ogt, %87, %125 : vector<64x64xf32>
      %127 = vector.broadcast %cst_13 : f32 to vector<64x64xf32>
      %128 = arith.select %126, %87, %127 : vector<64x64xi1>, vector<64x64xf32>
      %cst_27 = arith.constant dense<0x7F800000> : vector<64xf32>
      %129 = vector.multi_reduction <minimumf>, %128, %cst_27 [0] : vector<64x64xf32> to vector<64xf32>
      %130 = vector.shape_cast %129 : vector<64xf32> to vector<1x64xf32>
      %c7_i32 = arith.constant 7 : i32
      %131 = vector.broadcast %130 : vector<1x64xf32> to vector<64x64xf32>
      %132 = arith.cmpf ogt, %87, %131 : vector<64x64xf32>
      %133 = vector.broadcast %cst_13 : f32 to vector<64x64xf32>
      %134 = arith.select %132, %87, %133 : vector<64x64xi1>, vector<64x64xf32>
      %cst_28 = arith.constant dense<0x7F800000> : vector<64xf32>
      %135 = vector.multi_reduction <minimumf>, %134, %cst_28 [0] : vector<64x64xf32> to vector<64xf32>
      %136 = vector.shape_cast %135 : vector<64xf32> to vector<1x64xf32>
      %c0_i32_29 = arith.constant 0 : i32
      %137 = vector.broadcast %136 : vector<1x64xf32> to vector<64x64xf32>
      %138 = arith.cmpf ogt, %87, %137 : vector<64x64xf32>
      %139 = vector.broadcast %cst_13 : f32 to vector<64x64xf32>
      %140 = arith.select %138, %87, %139 : vector<64x64xi1>, vector<64x64xf32>
      %cst_30 = arith.constant dense<0x7F800000> : vector<64xf32>
      %141 = vector.multi_reduction <minimumf>, %140, %cst_30 [0] : vector<64x64xf32> to vector<64xf32>
      %142 = vector.shape_cast %141 : vector<64xf32> to vector<1x64xf32>
      %c1_i32_31 = arith.constant 1 : i32
      %143 = vector.broadcast %142 : vector<1x64xf32> to vector<64x64xf32>
      %144 = arith.cmpf ogt, %87, %143 : vector<64x64xf32>
      %145 = vector.broadcast %cst_13 : f32 to vector<64x64xf32>
      %146 = arith.select %144, %87, %145 : vector<64x64xi1>, vector<64x64xf32>
      %cst_32 = arith.constant dense<0x7F800000> : vector<64xf32>
      %147 = vector.multi_reduction <minimumf>, %146, %cst_32 [0] : vector<64x64xf32> to vector<64xf32>
      %148 = vector.shape_cast %147 : vector<64xf32> to vector<1x64xf32>
      %c2_i32_33 = arith.constant 2 : i32
      %149 = vector.broadcast %148 : vector<1x64xf32> to vector<64x64xf32>
      %150 = arith.cmpf ogt, %87, %149 : vector<64x64xf32>
      %151 = vector.broadcast %cst_13 : f32 to vector<64x64xf32>
      %152 = arith.select %150, %87, %151 : vector<64x64xi1>, vector<64x64xf32>
      %cst_34 = arith.constant dense<0x7F800000> : vector<64xf32>
      %153 = vector.multi_reduction <minimumf>, %152, %cst_34 [0] : vector<64x64xf32> to vector<64xf32>
      %154 = vector.shape_cast %153 : vector<64xf32> to vector<1x64xf32>
      %c3_i32_35 = arith.constant 3 : i32
      %155 = vector.broadcast %154 : vector<1x64xf32> to vector<64x64xf32>
      %156 = arith.cmpf ogt, %87, %155 : vector<64x64xf32>
      %157 = vector.broadcast %cst_13 : f32 to vector<64x64xf32>
      %158 = arith.select %156, %87, %157 : vector<64x64xi1>, vector<64x64xf32>
      %cst_36 = arith.constant dense<0x7F800000> : vector<64xf32>
      %159 = vector.multi_reduction <minimumf>, %158, %cst_36 [0] : vector<64x64xf32> to vector<64xf32>
      %160 = vector.shape_cast %159 : vector<64xf32> to vector<1x64xf32>
      %c4_i32_37 = arith.constant 4 : i32
      %161 = vector.broadcast %160 : vector<1x64xf32> to vector<64x64xf32>
      %162 = arith.cmpf ogt, %87, %161 : vector<64x64xf32>
      %163 = vector.broadcast %cst_13 : f32 to vector<64x64xf32>
      %164 = arith.select %162, %87, %163 : vector<64x64xi1>, vector<64x64xf32>
      %cst_38 = arith.constant dense<0x7F800000> : vector<64xf32>
      %165 = vector.multi_reduction <minimumf>, %164, %cst_38 [0] : vector<64x64xf32> to vector<64xf32>
      %166 = vector.shape_cast %165 : vector<64xf32> to vector<1x64xf32>
      %c5_i32_39 = arith.constant 5 : i32
      %167 = vector.broadcast %166 : vector<1x64xf32> to vector<64x64xf32>
      %168 = arith.cmpf ogt, %87, %167 : vector<64x64xf32>
      %169 = vector.broadcast %cst_13 : f32 to vector<64x64xf32>
      %170 = arith.select %168, %87, %169 : vector<64x64xi1>, vector<64x64xf32>
      %cst_40 = arith.constant dense<0x7F800000> : vector<64xf32>
      %171 = vector.multi_reduction <minimumf>, %170, %cst_40 [0] : vector<64x64xf32> to vector<64xf32>
      %172 = vector.shape_cast %171 : vector<64xf32> to vector<1x64xf32>
      %c6_i32_41 = arith.constant 6 : i32
      %173 = vector.broadcast %172 : vector<1x64xf32> to vector<64x64xf32>
      %174 = arith.cmpf ogt, %87, %173 : vector<64x64xf32>
      %175 = vector.broadcast %cst_13 : f32 to vector<64x64xf32>
      %176 = arith.select %174, %87, %175 : vector<64x64xi1>, vector<64x64xf32>
      %cst_42 = arith.constant dense<0x7F800000> : vector<64xf32>
      %177 = vector.multi_reduction <minimumf>, %176, %cst_42 [0] : vector<64x64xf32> to vector<64xf32>
      %178 = vector.shape_cast %177 : vector<64xf32> to vector<1x64xf32>
      %c7_i32_43 = arith.constant 7 : i32
      %179 = vector.broadcast %178 : vector<1x64xf32> to vector<64x64xf32>
      %180 = arith.cmpf ogt, %87, %179 : vector<64x64xf32>
      %181 = vector.broadcast %cst_13 : f32 to vector<64x64xf32>
      %182 = arith.select %180, %87, %181 : vector<64x64xi1>, vector<64x64xf32>
      %cst_44 = arith.constant dense<0x7F800000> : vector<64xf32>
      %183 = vector.multi_reduction <minimumf>, %182, %cst_44 [0] : vector<64x64xf32> to vector<64xf32>
      %184 = vector.shape_cast %183 : vector<64xf32> to vector<1x64xf32>
      %c8_i32 = arith.constant 8 : i32
      %185 = vector.broadcast %184 : vector<1x64xf32> to vector<64x64xf32>
      %186 = arith.cmpf ogt, %87, %185 : vector<64x64xf32>
      %187 = vector.broadcast %cst_13 : f32 to vector<64x64xf32>
      %188 = arith.select %186, %87, %187 : vector<64x64xi1>, vector<64x64xf32>
      %cst_45 = arith.constant dense<0x7F800000> : vector<64xf32>
      %189 = vector.multi_reduction <minimumf>, %188, %cst_45 [0] : vector<64x64xf32> to vector<64xf32>
      %190 = vector.shape_cast %189 : vector<64xf32> to vector<1x64xf32>
      %c9_i32 = arith.constant 9 : i32
      %191 = vector.broadcast %190 : vector<1x64xf32> to vector<64x64xf32>
      %192 = arith.cmpf ogt, %87, %191 : vector<64x64xf32>
      %193 = vector.broadcast %cst_13 : f32 to vector<64x64xf32>
      %194 = arith.select %192, %87, %193 : vector<64x64xi1>, vector<64x64xf32>
      %cst_46 = arith.constant dense<0x7F800000> : vector<64xf32>
      %195 = vector.multi_reduction <minimumf>, %194, %cst_46 [0] : vector<64x64xf32> to vector<64xf32>
      %196 = vector.shape_cast %195 : vector<64xf32> to vector<1x64xf32>
      %c10_i32 = arith.constant 10 : i32
      %197 = vector.broadcast %196 : vector<1x64xf32> to vector<64x64xf32>
      %198 = arith.cmpf ogt, %87, %197 : vector<64x64xf32>
      %199 = vector.broadcast %cst_13 : f32 to vector<64x64xf32>
      %200 = arith.select %198, %87, %199 : vector<64x64xi1>, vector<64x64xf32>
      %cst_47 = arith.constant dense<0x7F800000> : vector<64xf32>
      %201 = vector.multi_reduction <minimumf>, %200, %cst_47 [0] : vector<64x64xf32> to vector<64xf32>
      %202 = vector.shape_cast %201 : vector<64xf32> to vector<1x64xf32>
      %c11_i32 = arith.constant 11 : i32
      %203 = vector.broadcast %202 : vector<1x64xf32> to vector<64x64xf32>
      %204 = arith.cmpf ogt, %87, %203 : vector<64x64xf32>
      %205 = vector.broadcast %cst_13 : f32 to vector<64x64xf32>
      %206 = arith.select %204, %87, %205 : vector<64x64xi1>, vector<64x64xf32>
      %cst_48 = arith.constant dense<0x7F800000> : vector<64xf32>
      %207 = vector.multi_reduction <minimumf>, %206, %cst_48 [0] : vector<64x64xf32> to vector<64xf32>
      %208 = vector.shape_cast %207 : vector<64xf32> to vector<1x64xf32>
      %c12_i32 = arith.constant 12 : i32
      %209 = vector.broadcast %208 : vector<1x64xf32> to vector<64x64xf32>
      %210 = arith.cmpf ogt, %87, %209 : vector<64x64xf32>
      %211 = vector.broadcast %cst_13 : f32 to vector<64x64xf32>
      %212 = arith.select %210, %87, %211 : vector<64x64xi1>, vector<64x64xf32>
      %cst_49 = arith.constant dense<0x7F800000> : vector<64xf32>
      %213 = vector.multi_reduction <minimumf>, %212, %cst_49 [0] : vector<64x64xf32> to vector<64xf32>
      %214 = vector.shape_cast %213 : vector<64xf32> to vector<1x64xf32>
      %c13_i32 = arith.constant 13 : i32
      %215 = vector.broadcast %214 : vector<1x64xf32> to vector<64x64xf32>
      %216 = arith.cmpf ogt, %87, %215 : vector<64x64xf32>
      %217 = vector.broadcast %cst_13 : f32 to vector<64x64xf32>
      %218 = arith.select %216, %87, %217 : vector<64x64xi1>, vector<64x64xf32>
      %cst_50 = arith.constant dense<0x7F800000> : vector<64xf32>
      %219 = vector.multi_reduction <minimumf>, %218, %cst_50 [0] : vector<64x64xf32> to vector<64xf32>
      %220 = vector.shape_cast %219 : vector<64xf32> to vector<1x64xf32>
      %c14_i32 = arith.constant 14 : i32
      %221 = vector.broadcast %220 : vector<1x64xf32> to vector<64x64xf32>
      %222 = arith.cmpf ogt, %87, %221 : vector<64x64xf32>
      %223 = vector.broadcast %cst_13 : f32 to vector<64x64xf32>
      %224 = arith.select %222, %87, %223 : vector<64x64xi1>, vector<64x64xf32>
      %cst_51 = arith.constant dense<0x7F800000> : vector<64xf32>
      %225 = vector.multi_reduction <minimumf>, %224, %cst_51 [0] : vector<64x64xf32> to vector<64xf32>
      %226 = vector.shape_cast %225 : vector<64xf32> to vector<1x64xf32>
      %c15_i32 = arith.constant 15 : i32
      %227 = vector.broadcast %226 : vector<1x64xf32> to vector<64x64xf32>
      %228 = arith.cmpf ogt, %87, %227 : vector<64x64xf32>
      %229 = vector.broadcast %cst_13 : f32 to vector<64x64xf32>
      %230 = arith.select %228, %87, %229 : vector<64x64xi1>, vector<64x64xf32>
      %cst_52 = arith.constant dense<0x7F800000> : vector<64xf32>
      %231 = vector.multi_reduction <minimumf>, %230, %cst_52 [0] : vector<64x64xf32> to vector<64xf32>
      %232 = vector.shape_cast %231 : vector<64xf32> to vector<1x64xf32>
      %c16_i32 = arith.constant 16 : i32
      %233 = vector.broadcast %232 : vector<1x64xf32> to vector<64x64xf32>
      %234 = arith.cmpf ogt, %87, %233 : vector<64x64xf32>
      %235 = vector.broadcast %cst_13 : f32 to vector<64x64xf32>
      %236 = arith.select %234, %87, %235 : vector<64x64xi1>, vector<64x64xf32>
      %cst_53 = arith.constant dense<0x7F800000> : vector<64xf32>
      %237 = vector.multi_reduction <minimumf>, %236, %cst_53 [0] : vector<64x64xf32> to vector<64xf32>
      %238 = vector.shape_cast %237 : vector<64xf32> to vector<1x64xf32>
      %c17_i32 = arith.constant 17 : i32
      %239 = vector.broadcast %238 : vector<1x64xf32> to vector<64x64xf32>
      %240 = arith.cmpf ogt, %87, %239 : vector<64x64xf32>
      %241 = vector.broadcast %cst_13 : f32 to vector<64x64xf32>
      %242 = arith.select %240, %87, %241 : vector<64x64xi1>, vector<64x64xf32>
      %cst_54 = arith.constant dense<0x7F800000> : vector<64xf32>
      %243 = vector.multi_reduction <minimumf>, %242, %cst_54 [0] : vector<64x64xf32> to vector<64xf32>
      %244 = vector.shape_cast %243 : vector<64xf32> to vector<1x64xf32>
      %c18_i32 = arith.constant 18 : i32
      %245 = vector.broadcast %244 : vector<1x64xf32> to vector<64x64xf32>
      %246 = arith.cmpf ogt, %87, %245 : vector<64x64xf32>
      %247 = vector.broadcast %cst_13 : f32 to vector<64x64xf32>
      %248 = arith.select %246, %87, %247 : vector<64x64xi1>, vector<64x64xf32>
      %cst_55 = arith.constant dense<0x7F800000> : vector<64xf32>
      %249 = vector.multi_reduction <minimumf>, %248, %cst_55 [0] : vector<64x64xf32> to vector<64xf32>
      %250 = vector.shape_cast %249 : vector<64xf32> to vector<1x64xf32>
      %c19_i32 = arith.constant 19 : i32
      %251 = vector.broadcast %250 : vector<1x64xf32> to vector<64x64xf32>
      %252 = arith.cmpf ogt, %87, %251 : vector<64x64xf32>
      %253 = vector.broadcast %cst_13 : f32 to vector<64x64xf32>
      %254 = arith.select %252, %87, %253 : vector<64x64xi1>, vector<64x64xf32>
      %cst_56 = arith.constant dense<0x7F800000> : vector<64xf32>
      %255 = vector.multi_reduction <minimumf>, %254, %cst_56 [0] : vector<64x64xf32> to vector<64xf32>
      %256 = vector.shape_cast %255 : vector<64xf32> to vector<1x64xf32>
      %c20_i32 = arith.constant 20 : i32
      %257 = vector.broadcast %256 : vector<1x64xf32> to vector<64x64xf32>
      %258 = arith.cmpf ogt, %87, %257 : vector<64x64xf32>
      %259 = vector.broadcast %cst_13 : f32 to vector<64x64xf32>
      %260 = arith.select %258, %87, %259 : vector<64x64xi1>, vector<64x64xf32>
      %cst_57 = arith.constant dense<0x7F800000> : vector<64xf32>
      %261 = vector.multi_reduction <minimumf>, %260, %cst_57 [0] : vector<64x64xf32> to vector<64xf32>
      %262 = vector.shape_cast %261 : vector<64xf32> to vector<1x64xf32>
      %c21_i32 = arith.constant 21 : i32
      %263 = vector.broadcast %262 : vector<1x64xf32> to vector<64x64xf32>
      %264 = arith.cmpf ogt, %87, %263 : vector<64x64xf32>
      %265 = vector.broadcast %cst_13 : f32 to vector<64x64xf32>
      %266 = arith.select %264, %87, %265 : vector<64x64xi1>, vector<64x64xf32>
      %cst_58 = arith.constant dense<0x7F800000> : vector<64xf32>
      %267 = vector.multi_reduction <minimumf>, %266, %cst_58 [0] : vector<64x64xf32> to vector<64xf32>
      %268 = vector.shape_cast %267 : vector<64xf32> to vector<1x64xf32>
      %c22_i32 = arith.constant 22 : i32
      %269 = vector.broadcast %268 : vector<1x64xf32> to vector<64x64xf32>
      %270 = arith.cmpf ogt, %87, %269 : vector<64x64xf32>
      %271 = vector.broadcast %cst_13 : f32 to vector<64x64xf32>
      %272 = arith.select %270, %87, %271 : vector<64x64xi1>, vector<64x64xf32>
      %cst_59 = arith.constant dense<0x7F800000> : vector<64xf32>
      %273 = vector.multi_reduction <minimumf>, %272, %cst_59 [0] : vector<64x64xf32> to vector<64xf32>
      %274 = vector.shape_cast %273 : vector<64xf32> to vector<1x64xf32>
      %c23_i32 = arith.constant 23 : i32
      %275 = vector.broadcast %274 : vector<1x64xf32> to vector<64x64xf32>
      %276 = arith.cmpf ogt, %87, %275 : vector<64x64xf32>
      %277 = vector.broadcast %cst_13 : f32 to vector<64x64xf32>
      %278 = arith.select %276, %87, %277 : vector<64x64xi1>, vector<64x64xf32>
      %cst_60 = arith.constant dense<0x7F800000> : vector<64xf32>
      %279 = vector.multi_reduction <minimumf>, %278, %cst_60 [0] : vector<64x64xf32> to vector<64xf32>
      %280 = vector.shape_cast %279 : vector<64xf32> to vector<1x64xf32>
      %281 = vector.broadcast %280 : vector<1x64xf32> to vector<64x64xf32>
      %282 = arith.cmpf ole, %87, %281 : vector<64x64xf32>
      %283 = arith.extui %282 : vector<64x64xi1> to vector<64x64xi32>
      %284 = arith.sitofp %283 : vector<64x64xi32> to vector<64x64xf32>
      %c0_61 = arith.constant 0 : index
      %c0_62 = arith.constant 0 : index
      %285 = vector.load %arg7[%c0_61, %c0_62] : memref<16x64xf32, #tpu.memory_space<vmem>>, vector<1x64xf32>
      tpu.vector_store %arg7[%c0_61, %c0_62], %29 {strides = array<i32>} : memref<16x64xf32, #tpu.memory_space<vmem>>, vector<1x64xf32>,
      %c1 = arith.constant 1 : index
      %c0_63 = arith.constant 0 : index
      %286 = vector.load %arg7[%c1, %c0_63] : memref<16x64xf32, #tpu.memory_space<vmem>>, vector<1x64xf32>
      tpu.vector_store %arg7[%c1, %c0_63], %32 {strides = array<i32>} : memref<16x64xf32, #tpu.memory_space<vmem>>, vector<1x64xf32>,
      %c2 = arith.constant 2 : index
      %c0_64 = arith.constant 0 : index
      %287 = vector.load %arg7[%c2, %c0_64] : memref<16x64xf32, #tpu.memory_space<vmem>>, vector<1x64xf32>
      tpu.vector_store %arg7[%c2, %c0_64], %35 {strides = array<i32>} : memref<16x64xf32, #tpu.memory_space<vmem>>, vector<1x64xf32>,
      %288 = arith.mulf %29, %29 : vector<1x64xf32>
      %c3 = arith.constant 3 : index
      %c0_65 = arith.constant 0 : index
      %289 = vector.load %arg7[%c3, %c0_65] : memref<16x64xf32, #tpu.memory_space<vmem>>, vector<1x64xf32>
      tpu.vector_store %arg7[%c3, %c0_65], %288 {strides = array<i32>} : memref<16x64xf32, #tpu.memory_space<vmem>>, vector<1x64xf32>,
      %290 = arith.mulf %29, %32 : vector<1x64xf32>
      %c4 = arith.constant 4 : index
      %c0_66 = arith.constant 0 : index
      %291 = vector.load %arg7[%c4, %c0_66] : memref<16x64xf32, #tpu.memory_space<vmem>>, vector<1x64xf32>
      tpu.vector_store %arg7[%c4, %c0_66], %290 {strides = array<i32>} : memref<16x64xf32, #tpu.memory_space<vmem>>, vector<1x64xf32>,
      %292 = arith.mulf %29, %35 : vector<1x64xf32>
      %c5 = arith.constant 5 : index
      %c0_67 = arith.constant 0 : index
      %293 = vector.load %arg7[%c5, %c0_67] : memref<16x64xf32, #tpu.memory_space<vmem>>, vector<1x64xf32>
      tpu.vector_store %arg7[%c5, %c0_67], %292 {strides = array<i32>} : memref<16x64xf32, #tpu.memory_space<vmem>>, vector<1x64xf32>,
      %294 = arith.mulf %32, %32 : vector<1x64xf32>
      %c6 = arith.constant 6 : index
      %c0_68 = arith.constant 0 : index
      %295 = vector.load %arg7[%c6, %c0_68] : memref<16x64xf32, #tpu.memory_space<vmem>>, vector<1x64xf32>
      tpu.vector_store %arg7[%c6, %c0_68], %294 {strides = array<i32>} : memref<16x64xf32, #tpu.memory_space<vmem>>, vector<1x64xf32>,
      %296 = arith.mulf %32, %35 : vector<1x64xf32>
      %c7 = arith.constant 7 : index
      %c0_69 = arith.constant 0 : index
      %297 = vector.load %arg7[%c7, %c0_69] : memref<16x64xf32, #tpu.memory_space<vmem>>, vector<1x64xf32>
      tpu.vector_store %arg7[%c7, %c0_69], %296 {strides = array<i32>} : memref<16x64xf32, #tpu.memory_space<vmem>>, vector<1x64xf32>,
      %298 = arith.mulf %35, %35 : vector<1x64xf32>
      %c8 = arith.constant 8 : index
      %c0_70 = arith.constant 0 : index
      %299 = vector.load %arg7[%c8, %c0_70] : memref<16x64xf32, #tpu.memory_space<vmem>>, vector<1x64xf32>
      tpu.vector_store %arg7[%c8, %c0_70], %298 {strides = array<i32>} : memref<16x64xf32, #tpu.memory_space<vmem>>, vector<1x64xf32>,
      %cst_71 = arith.constant 0.000000e+00 : f32
      %300 = vector.broadcast %cst_71 : f32 to vector<7x64xf32>
      %c9 = arith.constant 9 : index
      %c0_72 = arith.constant 0 : index
      %301 = vector.load %arg7[%c9, %c0_72] : memref<16x64xf32, #tpu.memory_space<vmem>>, vector<7x64xf32>
      tpu.vector_store %arg7[%c9, %c0_72], %300 {strides = array<i32>} : memref<16x64xf32, #tpu.memory_space<vmem>>, vector<7x64xf32>,
      %c0_73 = arith.constant 0 : index
      %c0_74 = arith.constant 0 : index
      %302 = vector.load %arg7[%c0_73, %c0_74] : memref<16x64xf32, #tpu.memory_space<vmem>>, vector<16x64xf32>
      %cst_75 = arith.constant dense<0.000000e+00> : vector<16x64xf32>
      %303 = tpu.matmul %302, %284, %cst_75 {dimension_numbers = #tpu.dot_dimension_numbers<[1], [0], [0], [1], [0, 0, 1, 1], [], []>} : vector<16x64xf32>, vector<64x64xf32>, vector<16x64xf32> -> vector<16x64xf32>
      %cst_76 = arith.constant 3.125000e-02 : f32
      %304 = vector.broadcast %cst_76 : f32 to vector<16x64xf32>
      %305 = arith.mulf %303, %304 : vector<16x64xf32>
      %306 = vector.extract_strided_slice %305 {offsets = [0, 0], sizes = [1, 64], strides = [1, 1]} : vector<16x64xf32> to vector<1x64xf32>
      %307 = vector.extract_strided_slice %305 {offsets = [1, 0], sizes = [1, 64], strides = [1, 1]} : vector<16x64xf32> to vector<1x64xf32>
      %308 = vector.extract_strided_slice %305 {offsets = [2, 0], sizes = [1, 64], strides = [1, 1]} : vector<16x64xf32> to vector<1x64xf32>
      %309 = vector.extract_strided_slice %305 {offsets = [3, 0], sizes = [1, 64], strides = [1, 1]} : vector<16x64xf32> to vector<1x64xf32>
      %310 = arith.mulf %306, %306 : vector<1x64xf32>
      %311 = arith.subf %309, %310 : vector<1x64xf32>
      %312 = vector.extract_strided_slice %305 {offsets = [4, 0], sizes = [1, 64], strides = [1, 1]} : vector<16x64xf32> to vector<1x64xf32>
      %313 = arith.mulf %306, %307 : vector<1x64xf32>
      %314 = arith.subf %312, %313 : vector<1x64xf32>
      %315 = vector.extract_strided_slice %305 {offsets = [5, 0], sizes = [1, 64], strides = [1, 1]} : vector<16x64xf32> to vector<1x64xf32>
      %316 = arith.mulf %306, %308 : vector<1x64xf32>
      %317 = arith.subf %315, %316 : vector<1x64xf32>
      %318 = vector.extract_strided_slice %305 {offsets = [6, 0], sizes = [1, 64], strides = [1, 1]} : vector<16x64xf32> to vector<1x64xf32>
      %319 = arith.mulf %307, %307 : vector<1x64xf32>
      %320 = arith.subf %318, %319 : vector<1x64xf32>
      %321 = vector.extract_strided_slice %305 {offsets = [7, 0], sizes = [1, 64], strides = [1, 1]} : vector<16x64xf32> to vector<1x64xf32>
      %322 = arith.mulf %307, %308 : vector<1x64xf32>
      %323 = arith.subf %321, %322 : vector<1x64xf32>
      %324 = vector.extract_strided_slice %305 {offsets = [8, 0], sizes = [1, 64], strides = [1, 1]} : vector<16x64xf32> to vector<1x64xf32>
      %325 = arith.mulf %308, %308 : vector<1x64xf32>
      %326 = arith.subf %324, %325 : vector<1x64xf32>
      %327 = arith.mulf %320, %326 : vector<1x64xf32>
      %328 = arith.mulf %323, %323 : vector<1x64xf32>
      %329 = arith.subf %327, %328 : vector<1x64xf32>
      %330 = arith.mulf %317, %323 : vector<1x64xf32>
      %331 = arith.mulf %314, %326 : vector<1x64xf32>
      %332 = arith.subf %330, %331 : vector<1x64xf32>
      %333 = arith.mulf %314, %323 : vector<1x64xf32>
      %334 = arith.mulf %317, %320 : vector<1x64xf32>
      %335 = arith.subf %333, %334 : vector<1x64xf32>
      %336 = arith.mulf %311, %326 : vector<1x64xf32>
      %337 = arith.mulf %317, %317 : vector<1x64xf32>
      %338 = arith.subf %336, %337 : vector<1x64xf32>
      %339 = arith.mulf %314, %317 : vector<1x64xf32>
      %340 = arith.mulf %311, %323 : vector<1x64xf32>
      %341 = arith.subf %339, %340 : vector<1x64xf32>
      %342 = arith.mulf %311, %320 : vector<1x64xf32>
      %343 = arith.mulf %314, %314 : vector<1x64xf32>
      %344 = arith.subf %342, %343 : vector<1x64xf32>
      %345 = math.absf %329 : vector<1x64xf32>
      %346 = math.absf %332 : vector<1x64xf32>
      %347 = arith.addf %345, %346 : vector<1x64xf32>
      %348 = math.absf %335 : vector<1x64xf32>
      %349 = arith.addf %347, %348 : vector<1x64xf32>
      %350 = math.absf %338 : vector<1x64xf32>
      %351 = arith.addf %349, %350 : vector<1x64xf32>
      %352 = math.absf %341 : vector<1x64xf32>
      %353 = arith.addf %351, %352 : vector<1x64xf32>
      %354 = math.absf %344 : vector<1x64xf32>
      %355 = arith.addf %353, %354 : vector<1x64xf32>
      %cst_77 = arith.constant 1.000000e-30 : f32
      %356 = vector.broadcast %cst_77 : f32 to vector<1x64xf32>
      %357 = arith.addf %355, %356 : vector<1x64xf32>
      %358 = tpu.reciprocal %357 {approx = true} : vector<1x64xf32> -> vector<1x64xf32>
      %359 = arith.mulf %329, %358 : vector<1x64xf32>
      %360 = arith.mulf %332, %358 : vector<1x64xf32>
      %361 = arith.mulf %335, %358 : vector<1x64xf32>
      %362 = arith.mulf %338, %358 : vector<1x64xf32>
      %363 = arith.mulf %341, %358 : vector<1x64xf32>
      %364 = arith.mulf %344, %358 : vector<1x64xf32>
      %365 = arith.mulf %359, %359 : vector<1x64xf32>
      %366 = arith.mulf %360, %360 : vector<1x64xf32>
      %367 = arith.addf %365, %366 : vector<1x64xf32>
      %368 = arith.mulf %361, %361 : vector<1x64xf32>
      %369 = arith.addf %367, %368 : vector<1x64xf32>
      %370 = arith.mulf %359, %360 : vector<1x64xf32>
      %371 = arith.mulf %360, %362 : vector<1x64xf32>
      %372 = arith.addf %370, %371 : vector<1x64xf32>
      %373 = arith.mulf %361, %363 : vector<1x64xf32>
      %374 = arith.addf %372, %373 : vector<1x64xf32>
      %375 = arith.mulf %359, %361 : vector<1x64xf32>
      %376 = arith.mulf %360, %363 : vector<1x64xf32>
      %377 = arith.addf %375, %376 : vector<1x64xf32>
      %378 = arith.mulf %361, %364 : vector<1x64xf32>
      %379 = arith.addf %377, %378 : vector<1x64xf32>
      %380 = arith.mulf %360, %360 : vector<1x64xf32>
      %381 = arith.mulf %362, %362 : vector<1x64xf32>
      %382 = arith.addf %380, %381 : vector<1x64xf32>
      %383 = arith.mulf %363, %363 : vector<1x64xf32>
      %384 = arith.addf %382, %383 : vector<1x64xf32>
      %385 = arith.mulf %360, %361 : vector<1x64xf32>
      %386 = arith.mulf %362, %363 : vector<1x64xf32>
      %387 = arith.addf %385, %386 : vector<1x64xf32>
      %388 = arith.mulf %363, %364 : vector<1x64xf32>
      %389 = arith.addf %387, %388 : vector<1x64xf32>
      %390 = arith.mulf %361, %361 : vector<1x64xf32>
      %391 = arith.mulf %363, %363 : vector<1x64xf32>
      %392 = arith.addf %390, %391 : vector<1x64xf32>
      %393 = arith.mulf %364, %364 : vector<1x64xf32>
      %394 = arith.addf %392, %393 : vector<1x64xf32>
      %395 = arith.addf %369, %384 : vector<1x64xf32>
      %396 = arith.addf %395, %394 : vector<1x64xf32>
      %cst_78 = arith.constant 1.000000e-30 : f32
      %397 = vector.broadcast %cst_78 : f32 to vector<1x64xf32>
      %398 = arith.addf %396, %397 : vector<1x64xf32>
      %399 = tpu.reciprocal %398 {approx = true} : vector<1x64xf32> -> vector<1x64xf32>
      %400 = arith.mulf %369, %399 : vector<1x64xf32>
      %401 = arith.mulf %374, %399 : vector<1x64xf32>
      %402 = arith.mulf %379, %399 : vector<1x64xf32>
      %403 = arith.mulf %384, %399 : vector<1x64xf32>
      %404 = arith.mulf %389, %399 : vector<1x64xf32>
      %405 = arith.mulf %394, %399 : vector<1x64xf32>
      %406 = arith.mulf %400, %400 : vector<1x64xf32>
      %407 = arith.mulf %401, %401 : vector<1x64xf32>
      %408 = arith.addf %406, %407 : vector<1x64xf32>
      %409 = arith.mulf %402, %402 : vector<1x64xf32>
      %410 = arith.addf %408, %409 : vector<1x64xf32>
      %411 = arith.mulf %400, %401 : vector<1x64xf32>
      %412 = arith.mulf %401, %403 : vector<1x64xf32>
      %413 = arith.addf %411, %412 : vector<1x64xf32>
      %414 = arith.mulf %402, %404 : vector<1x64xf32>
      %415 = arith.addf %413, %414 : vector<1x64xf32>
      %416 = arith.mulf %400, %402 : vector<1x64xf32>
      %417 = arith.mulf %401, %404 : vector<1x64xf32>
      %418 = arith.addf %416, %417 : vector<1x64xf32>
      %419 = arith.mulf %402, %405 : vector<1x64xf32>
      %420 = arith.addf %418, %419 : vector<1x64xf32>
      %421 = arith.mulf %401, %401 : vector<1x64xf32>
      %422 = arith.mulf %403, %403 : vector<1x64xf32>
      %423 = arith.addf %421, %422 : vector<1x64xf32>
      %424 = arith.mulf %404, %404 : vector<1x64xf32>
      %425 = arith.addf %423, %424 : vector<1x64xf32>
      %426 = arith.mulf %401, %402 : vector<1x64xf32>
      %427 = arith.mulf %403, %404 : vector<1x64xf32>
      %428 = arith.addf %426, %427 : vector<1x64xf32>
      %429 = arith.mulf %404, %405 : vector<1x64xf32>
      %430 = arith.addf %428, %429 : vector<1x64xf32>
      %431 = arith.mulf %402, %402 : vector<1x64xf32>
      %432 = arith.mulf %404, %404 : vector<1x64xf32>
      %433 = arith.addf %431, %432 : vector<1x64xf32>
      %434 = arith.mulf %405, %405 : vector<1x64xf32>
      %435 = arith.addf %433, %434 : vector<1x64xf32>
      %436 = arith.addf %410, %425 : vector<1x64xf32>
      %437 = arith.addf %436, %435 : vector<1x64xf32>
      %cst_79 = arith.constant 1.000000e-30 : f32
      %438 = vector.broadcast %cst_79 : f32 to vector<1x64xf32>
      %439 = arith.addf %437, %438 : vector<1x64xf32>
      %440 = tpu.reciprocal %439 {approx = true} : vector<1x64xf32> -> vector<1x64xf32>
      %441 = arith.mulf %410, %440 : vector<1x64xf32>
      %442 = arith.mulf %415, %440 : vector<1x64xf32>
      %443 = arith.mulf %420, %440 : vector<1x64xf32>
      %444 = arith.mulf %425, %440 : vector<1x64xf32>
      %445 = arith.mulf %430, %440 : vector<1x64xf32>
      %446 = arith.mulf %435, %440 : vector<1x64xf32>
      %447 = arith.mulf %441, %441 : vector<1x64xf32>
      %448 = arith.mulf %442, %442 : vector<1x64xf32>
      %449 = arith.addf %447, %448 : vector<1x64xf32>
      %450 = arith.mulf %443, %443 : vector<1x64xf32>
      %451 = arith.addf %449, %450 : vector<1x64xf32>
      %452 = arith.mulf %441, %442 : vector<1x64xf32>
      %453 = arith.mulf %442, %444 : vector<1x64xf32>
      %454 = arith.addf %452, %453 : vector<1x64xf32>
      %455 = arith.mulf %443, %445 : vector<1x64xf32>
      %456 = arith.addf %454, %455 : vector<1x64xf32>
      %457 = arith.mulf %441, %443 : vector<1x64xf32>
      %458 = arith.mulf %442, %445 : vector<1x64xf32>
      %459 = arith.addf %457, %458 : vector<1x64xf32>
      %460 = arith.mulf %443, %446 : vector<1x64xf32>
      %461 = arith.addf %459, %460 : vector<1x64xf32>
      %462 = arith.mulf %442, %442 : vector<1x64xf32>
      %463 = arith.mulf %444, %444 : vector<1x64xf32>
      %464 = arith.addf %462, %463 : vector<1x64xf32>
      %465 = arith.mulf %445, %445 : vector<1x64xf32>
      %466 = arith.addf %464, %465 : vector<1x64xf32>
      %467 = arith.mulf %442, %443 : vector<1x64xf32>
      %468 = arith.mulf %444, %445 : vector<1x64xf32>
      %469 = arith.addf %467, %468 : vector<1x64xf32>
      %470 = arith.mulf %445, %446 : vector<1x64xf32>
      %471 = arith.addf %469, %470 : vector<1x64xf32>
      %472 = arith.mulf %443, %443 : vector<1x64xf32>
      %473 = arith.mulf %445, %445 : vector<1x64xf32>
      %474 = arith.addf %472, %473 : vector<1x64xf32>
      %475 = arith.mulf %446, %446 : vector<1x64xf32>
      %476 = arith.addf %474, %475 : vector<1x64xf32>
      %477 = arith.addf %451, %466 : vector<1x64xf32>
      %478 = arith.addf %477, %476 : vector<1x64xf32>
      %cst_80 = arith.constant 1.000000e-30 : f32
      %479 = vector.broadcast %cst_80 : f32 to vector<1x64xf32>
      %480 = arith.addf %478, %479 : vector<1x64xf32>
      %481 = tpu.reciprocal %480 {approx = true} : vector<1x64xf32> -> vector<1x64xf32>
      %482 = arith.mulf %451, %481 : vector<1x64xf32>
      %483 = arith.mulf %456, %481 : vector<1x64xf32>
      %484 = arith.mulf %461, %481 : vector<1x64xf32>
      %485 = arith.mulf %466, %481 : vector<1x64xf32>
      %486 = arith.mulf %471, %481 : vector<1x64xf32>
      %487 = arith.mulf %476, %481 : vector<1x64xf32>
      %488 = arith.mulf %482, %482 : vector<1x64xf32>
      %489 = arith.mulf %483, %483 : vector<1x64xf32>
      %490 = arith.addf %488, %489 : vector<1x64xf32>
      %491 = arith.mulf %484, %484 : vector<1x64xf32>
      %492 = arith.addf %490, %491 : vector<1x64xf32>
      %493 = arith.mulf %482, %483 : vector<1x64xf32>
      %494 = arith.mulf %483, %485 : vector<1x64xf32>
      %495 = arith.addf %493, %494 : vector<1x64xf32>
      %496 = arith.mulf %484, %486 : vector<1x64xf32>
      %497 = arith.addf %495, %496 : vector<1x64xf32>
      %498 = arith.mulf %482, %484 : vector<1x64xf32>
      %499 = arith.mulf %483, %486 : vector<1x64xf32>
      %500 = arith.addf %498, %499 : vector<1x64xf32>
      %501 = arith.mulf %484, %487 : vector<1x64xf32>
      %502 = arith.addf %500, %501 : vector<1x64xf32>
      %503 = arith.mulf %483, %483 : vector<1x64xf32>
      %504 = arith.mulf %485, %485 : vector<1x64xf32>
      %505 = arith.addf %503, %504 : vector<1x64xf32>
      %506 = arith.mulf %486, %486 : vector<1x64xf32>
      %507 = arith.addf %505, %506 : vector<1x64xf32>
      %508 = arith.mulf %483, %484 : vector<1x64xf32>
      %509 = arith.mulf %485, %486 : vector<1x64xf32>
      %510 = arith.addf %508, %509 : vector<1x64xf32>
      %511 = arith.mulf %486, %487 : vector<1x64xf32>
      %512 = arith.addf %510, %511 : vector<1x64xf32>
      %513 = arith.mulf %484, %484 : vector<1x64xf32>
      %514 = arith.mulf %486, %486 : vector<1x64xf32>
      %515 = arith.addf %513, %514 : vector<1x64xf32>
      %516 = arith.mulf %487, %487 : vector<1x64xf32>
      %517 = arith.addf %515, %516 : vector<1x64xf32>
      %518 = arith.addf %492, %507 : vector<1x64xf32>
      %519 = arith.addf %518, %517 : vector<1x64xf32>
      %cst_81 = arith.constant 1.000000e-30 : f32
      %520 = vector.broadcast %cst_81 : f32 to vector<1x64xf32>
      %521 = arith.addf %519, %520 : vector<1x64xf32>
      %522 = tpu.reciprocal %521 {approx = true} : vector<1x64xf32> -> vector<1x64xf32>
      %523 = arith.mulf %492, %522 : vector<1x64xf32>
      %524 = arith.mulf %497, %522 : vector<1x64xf32>
      %525 = arith.mulf %502, %522 : vector<1x64xf32>
      %526 = arith.mulf %507, %522 : vector<1x64xf32>
      %527 = arith.mulf %512, %522 : vector<1x64xf32>
      %528 = arith.mulf %517, %522 : vector<1x64xf32>
      %529 = arith.mulf %523, %523 : vector<1x64xf32>
      %530 = arith.mulf %524, %524 : vector<1x64xf32>
      %531 = arith.addf %529, %530 : vector<1x64xf32>
      %532 = arith.mulf %525, %525 : vector<1x64xf32>
      %533 = arith.addf %531, %532 : vector<1x64xf32>
      %534 = arith.mulf %524, %524 : vector<1x64xf32>
      %535 = arith.mulf %526, %526 : vector<1x64xf32>
      %536 = arith.addf %534, %535 : vector<1x64xf32>
      %537 = arith.mulf %527, %527 : vector<1x64xf32>
      %538 = arith.addf %536, %537 : vector<1x64xf32>
      %539 = arith.mulf %525, %525 : vector<1x64xf32>
      %540 = arith.mulf %527, %527 : vector<1x64xf32>
      %541 = arith.addf %539, %540 : vector<1x64xf32>
      %542 = arith.mulf %528, %528 : vector<1x64xf32>
      %543 = arith.addf %541, %542 : vector<1x64xf32>
      %544 = arith.cmpf oge, %533, %538 : vector<1x64xf32>
      %545 = arith.cmpf oge, %533, %543 : vector<1x64xf32>
      %546 = arith.andi %544, %545 : vector<1x64xi1>
      %cst_82 = arith.constant dense<true> : vector<1x64xi1>
      %547 = arith.xori %546, %cst_82 : vector<1x64xi1>
      %548 = arith.cmpf oge, %538, %543 : vector<1x64xf32>
      %549 = arith.andi %547, %548 : vector<1x64xi1>
      %550 = arith.select %549, %524, %525 : vector<1x64xi1>, vector<1x64xf32>
      %551 = arith.select %546, %523, %550 : vector<1x64xi1>, vector<1x64xf32>
      %552 = arith.select %549, %526, %527 : vector<1x64xi1>, vector<1x64xf32>
      %553 = arith.select %546, %524, %552 : vector<1x64xi1>, vector<1x64xf32>
      %554 = arith.select %549, %527, %528 : vector<1x64xi1>, vector<1x64xf32>
      %555 = arith.select %546, %525, %554 : vector<1x64xi1>, vector<1x64xf32>
      %556 = arith.mulf %551, %551 : vector<1x64xf32>
      %557 = arith.mulf %553, %553 : vector<1x64xf32>
      %558 = arith.addf %556, %557 : vector<1x64xf32>
      %559 = arith.mulf %555, %555 : vector<1x64xf32>
      %560 = arith.addf %558, %559 : vector<1x64xf32>
      %cst_83 = arith.constant 1.000000e-30 : f32
      %561 = vector.broadcast %cst_83 : f32 to vector<1x64xf32>
      %562 = arith.addf %560, %561 : vector<1x64xf32>
      %563 = math.rsqrt %562 : vector<1x64xf32>
      %564 = arith.mulf %551, %563 : vector<1x64xf32>
      %565 = arith.mulf %553, %563 : vector<1x64xf32>
      %566 = arith.mulf %555, %563 : vector<1x64xf32>
      %567 = arith.mulf %311, %564 : vector<1x64xf32>
      %568 = arith.mulf %567, %564 : vector<1x64xf32>
      %569 = arith.mulf %320, %565 : vector<1x64xf32>
      %570 = arith.mulf %569, %565 : vector<1x64xf32>
      %571 = arith.addf %568, %570 : vector<1x64xf32>
      %572 = arith.mulf %326, %566 : vector<1x64xf32>
      %573 = arith.mulf %572, %566 : vector<1x64xf32>
      %574 = arith.addf %571, %573 : vector<1x64xf32>
      %575 = arith.mulf %314, %564 : vector<1x64xf32>
      %576 = arith.mulf %575, %565 : vector<1x64xf32>
      %577 = arith.mulf %317, %564 : vector<1x64xf32>
      %578 = arith.mulf %577, %566 : vector<1x64xf32>
      %579 = arith.addf %576, %578 : vector<1x64xf32>
      %580 = arith.mulf %323, %565 : vector<1x64xf32>
      %581 = arith.mulf %580, %566 : vector<1x64xf32>
      %582 = arith.addf %579, %581 : vector<1x64xf32>
      %cst_84 = arith.constant 2.000000e+00 : f32
      %583 = vector.broadcast %cst_84 : f32 to vector<1x64xf32>
      %584 = arith.mulf %583, %582 : vector<1x64xf32>
      %585 = arith.addf %574, %584 : vector<1x64xf32>
      %586 = arith.subf %311, %585 : vector<1x64xf32>
      %587 = arith.subf %320, %585 : vector<1x64xf32>
      %588 = arith.subf %326, %585 : vector<1x64xf32>
      %589 = arith.mulf %587, %588 : vector<1x64xf32>
      %590 = arith.mulf %323, %323 : vector<1x64xf32>
      %591 = arith.subf %589, %590 : vector<1x64xf32>
      %592 = arith.mulf %317, %323 : vector<1x64xf32>
      %593 = arith.mulf %314, %588 : vector<1x64xf32>
      %594 = arith.subf %592, %593 : vector<1x64xf32>
      %595 = arith.mulf %314, %323 : vector<1x64xf32>
      %596 = arith.mulf %317, %587 : vector<1x64xf32>
      %597 = arith.subf %595, %596 : vector<1x64xf32>
      %598 = arith.mulf %586, %588 : vector<1x64xf32>
      %599 = arith.mulf %317, %317 : vector<1x64xf32>
      %600 = arith.subf %598, %599 : vector<1x64xf32>
      %601 = arith.mulf %314, %317 : vector<1x64xf32>
      %602 = arith.mulf %586, %323 : vector<1x64xf32>
      %603 = arith.subf %601, %602 : vector<1x64xf32>
      %604 = arith.mulf %586, %587 : vector<1x64xf32>
      %605 = arith.mulf %314, %314 : vector<1x64xf32>
      %606 = arith.subf %604, %605 : vector<1x64xf32>
      %607 = arith.mulf %591, %564 : vector<1x64xf32>
      %608 = arith.mulf %594, %565 : vector<1x64xf32>
      %609 = arith.addf %607, %608 : vector<1x64xf32>
      %610 = arith.mulf %597, %566 : vector<1x64xf32>
      %611 = arith.addf %609, %610 : vector<1x64xf32>
      %612 = arith.mulf %594, %564 : vector<1x64xf32>
      %613 = arith.mulf %600, %565 : vector<1x64xf32>
      %614 = arith.addf %612, %613 : vector<1x64xf32>
      %615 = arith.mulf %603, %566 : vector<1x64xf32>
      %616 = arith.addf %614, %615 : vector<1x64xf32>
      %617 = arith.mulf %597, %564 : vector<1x64xf32>
      %618 = arith.mulf %603, %565 : vector<1x64xf32>
      %619 = arith.addf %617, %618 : vector<1x64xf32>
      %620 = arith.mulf %606, %566 : vector<1x64xf32>
      %621 = arith.addf %619, %620 : vector<1x64xf32>
      %622 = arith.mulf %611, %611 : vector<1x64xf32>
      %623 = arith.mulf %616, %616 : vector<1x64xf32>
      %624 = arith.addf %622, %623 : vector<1x64xf32>
      %625 = arith.mulf %621, %621 : vector<1x64xf32>
      %626 = arith.addf %624, %625 : vector<1x64xf32>
      %627 = math.sqrt %626 : vector<1x64xf32>
      %cst_85 = arith.constant 9.99999968E-21 : f32
      %628 = vector.broadcast %cst_85 : f32 to vector<1x64xf32>
      %629 = arith.cmpf ogt, %627, %628 : vector<1x64xf32>
      %cst_86 = arith.constant 9.99999968E-21 : f32
      %630 = vector.broadcast %cst_86 : f32 to vector<1x64xf32>
      %631 = arith.maximumf %627, %630 : vector<1x64xf32>
      %cst_87 = arith.constant 1.000000e+00 : f32
      %632 = vector.broadcast %cst_87 : f32 to vector<1x64xf32>
      %633 = arith.divf %632, %631 : vector<1x64xf32>
      %634 = arith.mulf %611, %633 : vector<1x64xf32>
      %635 = arith.select %629, %634, %564 : vector<1x64xi1>, vector<1x64xf32>
      %636 = arith.mulf %616, %633 : vector<1x64xf32>
      %637 = arith.select %629, %636, %565 : vector<1x64xi1>, vector<1x64xf32>
      %638 = arith.mulf %621, %633 : vector<1x64xf32>
      %639 = arith.select %629, %638, %566 : vector<1x64xi1>, vector<1x64xf32>
      %640 = arith.mulf %311, %635 : vector<1x64xf32>
      %641 = arith.mulf %640, %635 : vector<1x64xf32>
      %642 = arith.mulf %320, %637 : vector<1x64xf32>
      %643 = arith.mulf %642, %637 : vector<1x64xf32>
      %644 = arith.addf %641, %643 : vector<1x64xf32>
      %645 = arith.mulf %326, %639 : vector<1x64xf32>
      %646 = arith.mulf %645, %639 : vector<1x64xf32>
      %647 = arith.addf %644, %646 : vector<1x64xf32>
      %648 = arith.mulf %314, %635 : vector<1x64xf32>
      %649 = arith.mulf %648, %637 : vector<1x64xf32>
      %650 = arith.mulf %317, %635 : vector<1x64xf32>
      %651 = arith.mulf %650, %639 : vector<1x64xf32>
      %652 = arith.addf %649, %651 : vector<1x64xf32>
      %653 = arith.mulf %323, %637 : vector<1x64xf32>
      %654 = arith.mulf %653, %639 : vector<1x64xf32>
      %655 = arith.addf %652, %654 : vector<1x64xf32>
      %cst_88 = arith.constant 2.000000e+00 : f32
      %656 = vector.broadcast %cst_88 : f32 to vector<1x64xf32>
      %657 = arith.mulf %656, %655 : vector<1x64xf32>
      %658 = arith.addf %647, %657 : vector<1x64xf32>
      %659 = arith.subf %311, %658 : vector<1x64xf32>
      %660 = arith.subf %320, %658 : vector<1x64xf32>
      %661 = arith.subf %326, %658 : vector<1x64xf32>
      %662 = arith.mulf %660, %661 : vector<1x64xf32>
      %663 = arith.mulf %323, %323 : vector<1x64xf32>
      %664 = arith.subf %662, %663 : vector<1x64xf32>
      %665 = arith.mulf %317, %323 : vector<1x64xf32>
      %666 = arith.mulf %314, %661 : vector<1x64xf32>
      %667 = arith.subf %665, %666 : vector<1x64xf32>
      %668 = arith.mulf %314, %323 : vector<1x64xf32>
      %669 = arith.mulf %317, %660 : vector<1x64xf32>
      %670 = arith.subf %668, %669 : vector<1x64xf32>
      %671 = arith.mulf %659, %661 : vector<1x64xf32>
      %672 = arith.mulf %317, %317 : vector<1x64xf32>
      %673 = arith.subf %671, %672 : vector<1x64xf32>
      %674 = arith.mulf %314, %317 : vector<1x64xf32>
      %675 = arith.mulf %659, %323 : vector<1x64xf32>
      %676 = arith.subf %674, %675 : vector<1x64xf32>
      %677 = arith.mulf %659, %660 : vector<1x64xf32>
      %678 = arith.mulf %314, %314 : vector<1x64xf32>
      %679 = arith.subf %677, %678 : vector<1x64xf32>
      %680 = arith.mulf %664, %635 : vector<1x64xf32>
      %681 = arith.mulf %667, %637 : vector<1x64xf32>
      %682 = arith.addf %680, %681 : vector<1x64xf32>
      %683 = arith.mulf %670, %639 : vector<1x64xf32>
      %684 = arith.addf %682, %683 : vector<1x64xf32>
      %685 = arith.mulf %667, %635 : vector<1x64xf32>
      %686 = arith.mulf %673, %637 : vector<1x64xf32>
      %687 = arith.addf %685, %686 : vector<1x64xf32>
      %688 = arith.mulf %676, %639 : vector<1x64xf32>
      %689 = arith.addf %687, %688 : vector<1x64xf32>
      %690 = arith.mulf %670, %635 : vector<1x64xf32>
      %691 = arith.mulf %676, %637 : vector<1x64xf32>
      %692 = arith.addf %690, %691 : vector<1x64xf32>
      %693 = arith.mulf %679, %639 : vector<1x64xf32>
      %694 = arith.addf %692, %693 : vector<1x64xf32>
      %695 = arith.mulf %684, %684 : vector<1x64xf32>
      %696 = arith.mulf %689, %689 : vector<1x64xf32>
      %697 = arith.addf %695, %696 : vector<1x64xf32>
      %698 = arith.mulf %694, %694 : vector<1x64xf32>
      %699 = arith.addf %697, %698 : vector<1x64xf32>
      %700 = math.sqrt %699 : vector<1x64xf32>
      %cst_89 = arith.constant 9.99999968E-21 : f32
      %701 = vector.broadcast %cst_89 : f32 to vector<1x64xf32>
      %702 = arith.cmpf ogt, %700, %701 : vector<1x64xf32>
      %cst_90 = arith.constant 9.99999968E-21 : f32
      %703 = vector.broadcast %cst_90 : f32 to vector<1x64xf32>
      %704 = arith.maximumf %700, %703 : vector<1x64xf32>
      %cst_91 = arith.constant 1.000000e+00 : f32
      %705 = vector.broadcast %cst_91 : f32 to vector<1x64xf32>
      %706 = arith.divf %705, %704 : vector<1x64xf32>
      %707 = arith.mulf %684, %706 : vector<1x64xf32>
      %708 = arith.select %702, %707, %635 : vector<1x64xi1>, vector<1x64xf32>
      %709 = arith.mulf %689, %706 : vector<1x64xf32>
      %710 = arith.select %702, %709, %637 : vector<1x64xi1>, vector<1x64xf32>
      %711 = arith.mulf %694, %706 : vector<1x64xf32>
      %712 = arith.select %702, %711, %639 : vector<1x64xi1>, vector<1x64xf32>
      %713 = arith.mulf %708, %29 : vector<1x64xf32>
      %714 = arith.mulf %710, %32 : vector<1x64xf32>
      %715 = arith.addf %713, %714 : vector<1x64xf32>
      %716 = arith.mulf %712, %35 : vector<1x64xf32>
      %717 = arith.addf %715, %716 : vector<1x64xf32>
      %718 = vector.broadcast %38 : vector<64x1xf32> to vector<64x64xf32>
      %719 = vector.broadcast %708 : vector<1x64xf32> to vector<64x64xf32>
      %720 = arith.mulf %718, %719 : vector<64x64xf32>
      %721 = vector.broadcast %41 : vector<64x1xf32> to vector<64x64xf32>
      %722 = vector.broadcast %710 : vector<1x64xf32> to vector<64x64xf32>
      %723 = arith.mulf %721, %722 : vector<64x64xf32>
      %724 = arith.addf %720, %723 : vector<64x64xf32>
      %725 = vector.broadcast %44 : vector<64x1xf32> to vector<64x64xf32>
      %726 = vector.broadcast %712 : vector<1x64xf32> to vector<64x64xf32>
      %727 = arith.mulf %725, %726 : vector<64x64xf32>
      %728 = arith.addf %724, %727 : vector<64x64xf32>
      %729 = vector.broadcast %717 : vector<1x64xf32> to vector<64x64xf32>
      %730 = arith.subf %728, %729 : vector<64x64xf32>
      %cst_92 = arith.constant 0.000000e+00 : f32
      %731 = vector.broadcast %cst_92 : f32 to vector<64x64xf32>
      %732 = arith.cmpf ogt, %730, %731 : vector<64x64xf32>
      %cst_93 = arith.constant 0.000000e+00 : f32
      %733 = vector.broadcast %cst_93 : f32 to vector<64x64xf32>
      %734 = arith.select %732, %284, %733 : vector<64x64xi1>, vector<64x64xf32>
      %cst_94 = arith.constant dense<0.000000e+00> : vector<64xf32>
      %735 = vector.multi_reduction <add>, %734, %cst_94 [0] : vector<64x64xf32> to vector<64xf32>
      %736 = vector.shape_cast %735 : vector<64xf32> to vector<1x64xf32>
      %cst_95 = arith.constant 1.600000e+01 : f32
      %737 = vector.broadcast %cst_95 : f32 to vector<1x64xf32>
      %738 = arith.cmpf olt, %736, %737 : vector<1x64xf32>
      %cst_96 = arith.constant -1.000000e+00 : f32
      %cst_97 = arith.constant 1.000000e+00 : f32
      %739 = vector.broadcast %cst_96 : f32 to vector<1x64xf32>
      %740 = vector.broadcast %cst_97 : f32 to vector<1x64xf32>
      %741 = arith.select %738, %739, %740 : vector<1x64xi1>, vector<1x64xf32>
      %742 = arith.mulf %708, %741 : vector<1x64xf32>
      %743 = arith.mulf %710, %741 : vector<1x64xf32>
      %744 = arith.mulf %712, %741 : vector<1x64xf32>
      %745 = arith.mulf %742, %742 : vector<1x64xf32>
      %746 = arith.mulf %743, %743 : vector<1x64xf32>
      %747 = arith.addf %745, %746 : vector<1x64xf32>
      %748 = arith.mulf %744, %744 : vector<1x64xf32>
      %749 = arith.addf %747, %748 : vector<1x64xf32>
      %750 = math.sqrt %749 : vector<1x64xf32>
      %cst_98 = arith.constant 9.99999997E-7 : f32
      %751 = vector.broadcast %cst_98 : f32 to vector<1x64xf32>
      %752 = arith.maximumf %750, %751 : vector<1x64xf32>
      %cst_99 = arith.constant 1.000000e+00 : f32
      %753 = vector.broadcast %cst_99 : f32 to vector<1x64xf32>
      %754 = arith.divf %753, %752 : vector<1x64xf32>
      %755 = arith.mulf %742, %754 : vector<1x64xf32>
      %c0_100 = arith.constant 0 : index
      %c0_101 = arith.constant 0 : index
      %756 = vector.load %arg6[%c0_100, %c0_101] : memref<8x64xf32, #tpu.memory_space<vmem>>, vector<1x64xf32>
      tpu.vector_store %arg6[%c0_100, %c0_101], %755 {strides = array<i32>} : memref<8x64xf32, #tpu.memory_space<vmem>>, vector<1x64xf32>,
      %757 = arith.mulf %743, %754 : vector<1x64xf32>
      %c1_102 = arith.constant 1 : index
      %c0_103 = arith.constant 0 : index
      %758 = vector.load %arg6[%c1_102, %c0_103] : memref<8x64xf32, #tpu.memory_space<vmem>>, vector<1x64xf32>
      tpu.vector_store %arg6[%c1_102, %c0_103], %757 {strides = array<i32>} : memref<8x64xf32, #tpu.memory_space<vmem>>, vector<1x64xf32>,
      %759 = arith.mulf %744, %754 : vector<1x64xf32>
      %c2_104 = arith.constant 2 : index
      %c0_105 = arith.constant 0 : index
      %760 = vector.load %arg6[%c2_104, %c0_105] : memref<8x64xf32, #tpu.memory_space<vmem>>, vector<1x64xf32>
      tpu.vector_store %arg6[%c2_104, %c0_105], %759 {strides = array<i32>} : memref<8x64xf32, #tpu.memory_space<vmem>>, vector<1x64xf32>,
      %c3_106 = arith.constant 3 : index
      %c0_107 = arith.constant 0 : index
      %761 = vector.load %arg6[%c3_106, %c0_107] : memref<8x64xf32, #tpu.memory_space<vmem>>, vector<1x64xf32>
      tpu.vector_store %arg6[%c3_106, %c0_107], %136 {strides = array<i32>} : memref<8x64xf32, #tpu.memory_space<vmem>>, vector<1x64xf32>,
    } else {
    }
    %c1_i32 = arith.constant 1 : i32
    %48 = arith.cmpi eq, %arg1, %c1_i32 : i32
    %49 = arith.extui %48 : i1 to i32
    %c0_i32_15 = arith.constant 0 : i32
    %50 = arith.cmpi ne, %49, %c0_i32_15 : i32
    scf.if %50 {
      %51 = vector.broadcast %38 : vector<64x1xf32> to vector<64x64xf32>
      %52 = vector.broadcast %29 : vector<1x64xf32> to vector<64x64xf32>
      %53 = arith.mulf %51, %52 : vector<64x64xf32>
      %54 = vector.broadcast %41 : vector<64x1xf32> to vector<64x64xf32>
      %55 = vector.broadcast %32 : vector<1x64xf32> to vector<64x64xf32>
      %56 = arith.mulf %54, %55 : vector<64x64xf32>
      %57 = arith.addf %53, %56 : vector<64x64xf32>
      %58 = vector.broadcast %44 : vector<64x1xf32> to vector<64x64xf32>
      %59 = vector.broadcast %35 : vector<1x64xf32> to vector<64x64xf32>
      %60 = arith.mulf %58, %59 : vector<64x64xf32>
      %61 = arith.addf %57, %60 : vector<64x64xf32>
      %62 = arith.mulf %29, %29 : vector<1x64xf32>
      %63 = arith.mulf %32, %32 : vector<1x64xf32>
      %64 = arith.addf %62, %63 : vector<1x64xf32>
      %65 = arith.mulf %35, %35 : vector<1x64xf32>
      %66 = arith.addf %64, %65 : vector<1x64xf32>
      %67 = arith.mulf %38, %38 : vector<64x1xf32>
      %68 = arith.mulf %41, %41 : vector<64x1xf32>
      %69 = arith.addf %67, %68 : vector<64x1xf32>
      %70 = arith.mulf %44, %44 : vector<64x1xf32>
      %71 = arith.addf %69, %70 : vector<64x1xf32>
      %72 = vector.broadcast %71 : vector<64x1xf32> to vector<64x64xf32>
      %73 = vector.broadcast %66 : vector<1x64xf32> to vector<64x64xf32>
      %74 = arith.addf %72, %73 : vector<64x64xf32>
      %cst_16 = arith.constant 2.000000e+00 : f32
      %75 = vector.broadcast %cst_16 : f32 to vector<64x64xf32>
      %76 = arith.mulf %75, %61 : vector<64x64xf32>
      %77 = arith.subf %74, %76 : vector<64x64xf32>
      %cst_17 = arith.constant 0.000000e+00 : f32
      %78 = vector.broadcast %cst_17 : f32 to vector<64x64xf32>
      %79 = arith.maximumf %77, %78 : vector<64x64xf32>
      %80 = tpu.iota {dimensions = array<i32: 0>} : vector<64x64xi32>
      %81 = tpu.bitcast %79 : vector<64x64xf32> -> vector<64x64xi32>
      %c-64_i32 = arith.constant -64 : i32
      %82 = vector.broadcast %c-64_i32 : i32 to vector<64x64xi32>
      %83 = arith.andi %81, %82 : vector<64x64xi32>
      %84 = arith.ori %83, %80 : vector<64x64xi32>
      %c8388608_i32 = arith.constant 8388608 : i32
      %85 = vector.broadcast %c8388608_i32 : i32 to vector<64x64xi32>
      %86 = arith.addi %84, %85 : vector<64x64xi32>
      %87 = tpu.bitcast %86 : vector<64x64xi32> -> vector<64x64xf32>
      %c3 = arith.constant 3 : index
      %c0_18 = arith.constant 0 : index
      %88 = vector.load %arg6[%c3, %c0_18] : memref<8x64xf32, #tpu.memory_space<vmem>>, vector<1x64xf32>
      %89 = vector.broadcast %88 : vector<1x64xf32> to vector<64x64xf32>
      %90 = arith.cmpf ole, %87, %89 : vector<64x64xf32>
      %91 = arith.extui %90 : vector<64x64xi1> to vector<64x64xi32>
      %92 = arith.sitofp %91 : vector<64x64xi32> to vector<64x64xf32>
      %c0_19 = arith.constant 0 : index
      %c0_20 = arith.constant 0 : index
      %93 = vector.load %arg6[%c0_19, %c0_20] : memref<8x64xf32, #tpu.memory_space<vmem>>, vector<1x64xf32>
      %c1 = arith.constant 1 : index
      %c0_21 = arith.constant 0 : index
      %94 = vector.load %arg6[%c1, %c0_21] : memref<8x64xf32, #tpu.memory_space<vmem>>, vector<1x64xf32>
      %c2 = arith.constant 2 : index
      %c0_22 = arith.constant 0 : index
      %95 = vector.load %arg6[%c2, %c0_22] : memref<8x64xf32, #tpu.memory_space<vmem>>, vector<1x64xf32>
      %c0_23 = arith.constant 0 : index
      %c0_24 = arith.constant 0 : index
      %96 = vector.load %arg7[%c0_23, %c0_24] : memref<16x64xf32, #tpu.memory_space<vmem>>, vector<1x64xf32>
      tpu.vector_store %arg7[%c0_23, %c0_24], %93 {strides = array<i32>} : memref<16x64xf32, #tpu.memory_space<vmem>>, vector<1x64xf32>,
      %c1_25 = arith.constant 1 : index
      %c0_26 = arith.constant 0 : index
      %97 = vector.load %arg7[%c1_25, %c0_26] : memref<16x64xf32, #tpu.memory_space<vmem>>, vector<1x64xf32>
      tpu.vector_store %arg7[%c1_25, %c0_26], %94 {strides = array<i32>} : memref<16x64xf32, #tpu.memory_space<vmem>>, vector<1x64xf32>,
      %c2_27 = arith.constant 2 : index
      %c0_28 = arith.constant 0 : index
      %98 = vector.load %arg7[%c2_27, %c0_28] : memref<16x64xf32, #tpu.memory_space<vmem>>, vector<1x64xf32>
      tpu.vector_store %arg7[%c2_27, %c0_28], %95 {strides = array<i32>} : memref<16x64xf32, #tpu.memory_space<vmem>>, vector<1x64xf32>,
      %99 = arith.mulf %93, %93 : vector<1x64xf32>
      %c3_29 = arith.constant 3 : index
      %c0_30 = arith.constant 0 : index
      %100 = vector.load %arg7[%c3_29, %c0_30] : memref<16x64xf32, #tpu.memory_space<vmem>>, vector<1x64xf32>
      tpu.vector_store %arg7[%c3_29, %c0_30], %99 {strides = array<i32>} : memref<16x64xf32, #tpu.memory_space<vmem>>, vector<1x64xf32>,
      %101 = arith.mulf %93, %94 : vector<1x64xf32>
      %c4 = arith.constant 4 : index
      %c0_31 = arith.constant 0 : index
      %102 = vector.load %arg7[%c4, %c0_31] : memref<16x64xf32, #tpu.memory_space<vmem>>, vector<1x64xf32>
      tpu.vector_store %arg7[%c4, %c0_31], %101 {strides = array<i32>} : memref<16x64xf32, #tpu.memory_space<vmem>>, vector<1x64xf32>,
      %103 = arith.mulf %93, %95 : vector<1x64xf32>
      %c5 = arith.constant 5 : index
      %c0_32 = arith.constant 0 : index
      %104 = vector.load %arg7[%c5, %c0_32] : memref<16x64xf32, #tpu.memory_space<vmem>>, vector<1x64xf32>
      tpu.vector_store %arg7[%c5, %c0_32], %103 {strides = array<i32>} : memref<16x64xf32, #tpu.memory_space<vmem>>, vector<1x64xf32>,
      %105 = arith.mulf %94, %94 : vector<1x64xf32>
      %c6 = arith.constant 6 : index
      %c0_33 = arith.constant 0 : index
      %106 = vector.load %arg7[%c6, %c0_33] : memref<16x64xf32, #tpu.memory_space<vmem>>, vector<1x64xf32>
      tpu.vector_store %arg7[%c6, %c0_33], %105 {strides = array<i32>} : memref<16x64xf32, #tpu.memory_space<vmem>>, vector<1x64xf32>,
      %107 = arith.mulf %94, %95 : vector<1x64xf32>
      %c7 = arith.constant 7 : index
      %c0_34 = arith.constant 0 : index
      %108 = vector.load %arg7[%c7, %c0_34] : memref<16x64xf32, #tpu.memory_space<vmem>>, vector<1x64xf32>
      tpu.vector_store %arg7[%c7, %c0_34], %107 {strides = array<i32>} : memref<16x64xf32, #tpu.memory_space<vmem>>, vector<1x64xf32>,
      %109 = arith.mulf %95, %95 : vector<1x64xf32>
      %c8 = arith.constant 8 : index
      %c0_35 = arith.constant 0 : index
      %110 = vector.load %arg7[%c8, %c0_35] : memref<16x64xf32, #tpu.memory_space<vmem>>, vector<1x64xf32>
      tpu.vector_store %arg7[%c8, %c0_35], %109 {strides = array<i32>} : memref<16x64xf32, #tpu.memory_space<vmem>>, vector<1x64xf32>,
      %cst_36 = arith.constant 0.000000e+00 : f32
      %111 = vector.broadcast %cst_36 : f32 to vector<7x64xf32>
      %c9 = arith.constant 9 : index
      %c0_37 = arith.constant 0 : index
      %112 = vector.load %arg7[%c9, %c0_37] : memref<16x64xf32, #tpu.memory_space<vmem>>, vector<7x64xf32>
      tpu.vector_store %arg7[%c9, %c0_37], %111 {strides = array<i32>} : memref<16x64xf32, #tpu.memory_space<vmem>>, vector<7x64xf32>,
      %c0_38 = arith.constant 0 : index
      %c0_39 = arith.constant 0 : index
      %113 = vector.load %arg7[%c0_38, %c0_39] : memref<16x64xf32, #tpu.memory_space<vmem>>, vector<16x64xf32>
      %cst_40 = arith.constant dense<0.000000e+00> : vector<16x64xf32>
      %114 = tpu.matmul %113, %92, %cst_40 {dimension_numbers = #tpu.dot_dimension_numbers<[1], [0], [0], [1], [0, 0, 1, 1], [], []>} : vector<16x64xf32>, vector<64x64xf32>, vector<16x64xf32> -> vector<16x64xf32>
      %c0_41 = arith.constant 0 : index
      %c0_42 = arith.constant 0 : index
      %115 = vector.load %arg6[%c0_41, %c0_42] : memref<8x64xf32, #tpu.memory_space<vmem>>, vector<1x64xf32>
      %c1_43 = arith.constant 1 : index
      %c0_44 = arith.constant 0 : index
      %116 = vector.load %arg6[%c1_43, %c0_44] : memref<8x64xf32, #tpu.memory_space<vmem>>, vector<1x64xf32>
      %c2_45 = arith.constant 2 : index
      %c0_46 = arith.constant 0 : index
      %117 = vector.load %arg6[%c2_45, %c0_46] : memref<8x64xf32, #tpu.memory_space<vmem>>, vector<1x64xf32>
      %118 = vector.extract_strided_slice %114 {offsets = [0, 0], sizes = [1, 64], strides = [1, 1]} : vector<16x64xf32> to vector<1x64xf32>
      %119 = arith.mulf %115, %118 : vector<1x64xf32>
      %120 = vector.extract_strided_slice %114 {offsets = [1, 0], sizes = [1, 64], strides = [1, 1]} : vector<16x64xf32> to vector<1x64xf32>
      %121 = arith.mulf %116, %120 : vector<1x64xf32>
      %122 = arith.addf %119, %121 : vector<1x64xf32>
      %123 = vector.extract_strided_slice %114 {offsets = [2, 0], sizes = [1, 64], strides = [1, 1]} : vector<16x64xf32> to vector<1x64xf32>
      %124 = arith.mulf %117, %123 : vector<1x64xf32>
      %125 = arith.addf %122, %124 : vector<1x64xf32>
      %126 = vector.extract_strided_slice %114 {offsets = [3, 0], sizes = [1, 64], strides = [1, 1]} : vector<16x64xf32> to vector<1x64xf32>
      %127 = arith.mulf %126, %115 : vector<1x64xf32>
      %128 = arith.mulf %127, %115 : vector<1x64xf32>
      %129 = vector.extract_strided_slice %114 {offsets = [6, 0], sizes = [1, 64], strides = [1, 1]} : vector<16x64xf32> to vector<1x64xf32>
      %130 = arith.mulf %129, %116 : vector<1x64xf32>
      %131 = arith.mulf %130, %116 : vector<1x64xf32>
      %132 = arith.addf %128, %131 : vector<1x64xf32>
      %133 = vector.extract_strided_slice %114 {offsets = [8, 0], sizes = [1, 64], strides = [1, 1]} : vector<16x64xf32> to vector<1x64xf32>
      %134 = arith.mulf %133, %117 : vector<1x64xf32>
      %135 = arith.mulf %134, %117 : vector<1x64xf32>
      %136 = arith.addf %132, %135 : vector<1x64xf32>
      %137 = vector.extract_strided_slice %114 {offsets = [4, 0], sizes = [1, 64], strides = [1, 1]} : vector<16x64xf32> to vector<1x64xf32>
      %138 = arith.mulf %137, %115 : vector<1x64xf32>
      %139 = arith.mulf %138, %116 : vector<1x64xf32>
      %140 = vector.extract_strided_slice %114 {offsets = [5, 0], sizes = [1, 64], strides = [1, 1]} : vector<16x64xf32> to vector<1x64xf32>
      %141 = arith.mulf %140, %115 : vector<1x64xf32>
      %142 = arith.mulf %141, %117 : vector<1x64xf32>
      %143 = arith.addf %139, %142 : vector<1x64xf32>
      %144 = vector.extract_strided_slice %114 {offsets = [7, 0], sizes = [1, 64], strides = [1, 1]} : vector<16x64xf32> to vector<1x64xf32>
      %145 = arith.mulf %144, %116 : vector<1x64xf32>
      %146 = arith.mulf %145, %117 : vector<1x64xf32>
      %147 = arith.addf %143, %146 : vector<1x64xf32>
      %cst_47 = arith.constant 2.000000e+00 : f32
      %148 = vector.broadcast %cst_47 : f32 to vector<1x64xf32>
      %149 = arith.mulf %148, %147 : vector<1x64xf32>
      %150 = arith.addf %136, %149 : vector<1x64xf32>
      %151 = arith.mulf %125, %125 : vector<1x64xf32>
      %cst_48 = arith.constant 1.250000e-01 : f32
      %152 = vector.broadcast %cst_48 : f32 to vector<1x64xf32>
      %153 = arith.mulf %151, %152 : vector<1x64xf32>
      %154 = arith.subf %150, %153 : vector<1x64xf32>
      %cst_49 = arith.constant 0.142857149 : f32
      %155 = vector.broadcast %cst_49 : f32 to vector<1x64xf32>
      %156 = arith.mulf %154, %155 : vector<1x64xf32>
      %cst_50 = arith.constant 0.000000e+00 : f32
      %157 = vector.broadcast %cst_50 : f32 to vector<1x64xf32>
      %158 = arith.maximumf %156, %157 : vector<1x64xf32>
      %159 = math.sqrt %158 : vector<1x64xf32>
      %c0_51 = arith.constant 0 : index
      %c0_52 = arith.constant 0 : index
      %c0_53 = arith.constant 0 : index
      %160 = vector.load %arg5[%c0_51, %c0_52, %c0_53] : memref<1x1x1xf32, #tpu.memory_space<vmem>>, vector<1x1x1xf32>
      %161 = vector.shape_cast %159 : vector<1x64xf32> to vector<1x1x64xf32>
      %cst_54 = arith.constant dense<0.000000e+00> : vector<1xf32>
      %162 = vector.multi_reduction <add>, %161, %cst_54 [1, 2] : vector<1x1x64xf32> to vector<1xf32>
      %163 = vector.shape_cast %162 : vector<1xf32> to vector<1x1x1xf32>
      %164 = vector.extract %163[0, 0, 0] : f32 from vector<1x1x1xf32>
      %cst_55 = arith.constant 1.562500e-02 : f32
      %165 = arith.mulf %164, %cst_55 : f32
      %cst_56 = arith.constant 1.000000e+00 : f32
      %166 = vector.broadcast %cst_56 : f32 to vector<1x1x1xf32>
      %167 = vector.broadcast %165 : f32 to vector<1x1x1xf32>
      %168 = arith.mulf %167, %166 : vector<1x1x1xf32>
      %169 = arith.addf %160, %168 : vector<1x1x1xf32>
      %c0_57 = arith.constant 0 : index
      %c0_58 = arith.constant 0 : index
      %c0_59 = arith.constant 0 : index
      %170 = vector.load %arg5[%c0_57, %c0_58, %c0_59] : memref<1x1x1xf32, #tpu.memory_space<vmem>>, vector<1x1x1xf32>
      tpu.vector_store %arg5[%c0_57, %c0_58, %c0_59], %169 {strides = array<i32>} : memref<1x1x1xf32, #tpu.memory_space<vmem>>, vector<1x1x1xf32>,
    } else {
    }
    return
  }
  func.func @transform_0(%arg0: i32, %arg1: i32, %arg2: i32) -> (i32, i32, i32) {
    %c0_i32 = arith.constant 0 : i32
    %c0_i32_0 = arith.constant 0 : i32
    %c0_i32_1 = arith.constant 0 : i32
    return %arg0, %c0_i32, %c0_i32_0 : i32, i32, i32
  }
  func.func @transform_1(%arg0: i32, %arg1: i32, %arg2: i32) -> (i32, i32, i32) {
    %c0_i32 = arith.constant 0 : i32
    %c0_i32_0 = arith.constant 0 : i32
    %c0_i32_1 = arith.constant 0 : i32
    return %arg0, %c0_i32, %c0_i32_0 : i32, i32, i32
  }
  func.func @transform_2(%arg0: i32, %arg1: i32, %arg2: i32) -> (i32, i32, i32) {
    %c0_i32 = arith.constant 0 : i32
    %c0_i32_0 = arith.constant 0 : i32
    %c0_i32_1 = arith.constant 0 : i32
    return %arg0, %c0_i32, %c0_i32_0 : i32, i32, i32
  }
}

</mosaic_0001>

<llo_original>
// kernel: tpu_custom_call.1
$region0: #{tpu_custom_call.1}
  #allocation0 [shape = 'u32[]', space=smem, size = 0x4, offset = 0x4, fixed_abs, tag = 'smem constant byte address 0x4 - core index']
  #allocation1 [shape = 'u32[72,128]{1,0:T(1,128)}', space=vmem, size = 0x9000, scoped, tag = 'internal scratch']
  #allocation2 [shape = 'f32[8,64]{1,0:T(8,128)}', space=vmem, size = 0x1000, scoped, tag = 'scratch operand']
  #allocation3 [shape = 'f32[16,64]{1,0:T(8,128)}', space=vmem, size = 0x2000, scoped, tag = 'scratch operand']
  %s0 = inlined_call_operand.vmem [shape: f32[2,64,3], index: 0, kind: input, shape index: {}]
  %s1 = inlined_call_operand.vmem [shape: f32[2,3,64], index: 1, kind: input, shape index: {}]
  %s2 = inlined_call_operand.vmem [shape: f32[2,1,1], index: 2, kind: output, shape index: {}]
  %s3 = sld [smem:[#allocation0]]
  $region53: #{tpu_custom_call.1} parent=0
    _
  %s5 = ssub.s32 1, %s3
  %s6 = scalar_select 0, %s5, %s3
  loop: start=0, step=1, limit=6
  $region2: #{tpu_custom_call.1} parent=0 // loop_pre_header
    _
  $region3: #{tpu_custom_call.1} parent=0 // loop_header
    %s8 = sphi 0, %s12
    %p9 = scmp.ge.s32.totalorder %s8, 6
    %s15 = sphi 0, %s34
    %s16 = sphi 0, %s30
    %s17 = sphi 0, %s26
    %s18 = sphi 0, %s15
    %s19 = sphi 0, %s16
    %s20 = sphi 0, %s17
    %s21 = sphi 0, %s18
    %s22 = sphi 0, %s19
    %s23 = sphi 0, %s20
    %s37 = sphi 0, %s39
    %s40 = sphi 0, %s37
    %s41 = sphi 0, %s40
    %s57 = sphi 0, %s41
    %s63 = sphi 0, %s65
    %s66 = sphi 0, %s63
    %s67 = sphi 0, %s66
    %s83 = sphi 0, %s67
    %s89 = sphi 0, %s91
    %s92 = sphi 0, %s89
    %s93 = sphi 0, %s92
    %s109 = sphi 0, %s93
  $region4: #{tpu_custom_call.1} parent=0 // loop_header_branch
    %11 = sbr.rel (%p9) target = $region8
  $region5: #{tpu_custom_call.1} parent=0 // loop_body
    %s13 = ssub.s32 %s8, 1
    %s14 = ssub.s32 %s8, 2
    %s24 = sadd.s32 1, %s17
    %p25 = scmp.ge.s32.totalorder %s24, 1
    %s26 = scalar_select %p25, 0, %s24
    %s27 = sadd.s32 1, %s16
    %s28 = scalar_select %p25, %s27, %s16
    %p29 = scmp.ge.s32.totalorder %s28, 2
    %s30 = scalar_select %p29, 0, %s28
    %s31 = sadd.s32 1, %s15
    %s32 = scalar_select %p29, %s31, %s15
    %p33 = scmp.ge.s32.totalorder %s32, 2
    %s34 = scalar_select %p33, 0, %s32
    %s35 = ssub.s32 %s15, %s34
    %p36 = scmp.eq.s32.totalorder %s35, 0
    %s38 = sadd.s32 %s37, 1
    %s39 = scalar_select %p36, %s37, %s38
    %p42 = pneg %p36
    %p43 = scmp.eq.s32.totalorder %s8, 3
    %p44 = por %p42, %p43
    %p45 = scmp.ne.s32.totalorder %s37, %s40
    %p46 = scmp.eq.s32.totalorder %s8, 0
    %p47 = por %p45, %p46
    %p48 = scmp.ne.s32.totalorder %s37, %s40
    %p49 = scmp.eq.s32.totalorder %s13, 3
    %p50 = por %p48, %p49
    %p51 = scmp.ne.s32.totalorder %s40, %s41
    %p52 = scmp.eq.s32.totalorder %s13, 0
    %p53 = por %p51, %p52
    %p54 = scmp.ne.s32.totalorder %s40, %s41
    %p55 = scmp.eq.s32.totalorder %s14, 3
    %p56 = por %p54, %p55
    %p58 = scmp.ne.s32.totalorder %s41, %s57
    %p59 = scmp.eq.s32.totalorder %s14, 0
    %p60 = por %p58, %p59
    %s61 = ssub.s32 %s15, %s34
    %p62 = scmp.eq.s32.totalorder %s61, 0
    %s64 = sadd.s32 %s63, 1
    %s65 = scalar_select %p62, %s63, %s64
    %p68 = pneg %p62
    %p69 = scmp.eq.s32.totalorder %s8, 3
    %p70 = por %p68, %p69
    %p71 = scmp.ne.s32.totalorder %s63, %s66
    %p72 = scmp.eq.s32.totalorder %s8, 0
    %p73 = por %p71, %p72
    %p74 = scmp.ne.s32.totalorder %s63, %s66
    %p75 = scmp.eq.s32.totalorder %s13, 3
    %p76 = por %p74, %p75
    %p77 = scmp.ne.s32.totalorder %s66, %s67
    %p78 = scmp.eq.s32.totalorder %s13, 0
    %p79 = por %p77, %p78
    %p80 = scmp.ne.s32.totalorder %s66, %s67
    %p81 = scmp.eq.s32.totalorder %s14, 3
    %p82 = por %p80, %p81
    %p84 = scmp.ne.s32.totalorder %s67, %s83
    %p85 = scmp.eq.s32.totalorder %s14, 0
    %p86 = por %p84, %p85
    %s87 = ssub.s32 %s15, %s34
    %p88 = scmp.eq.s32.totalorder %s87, 0
    %s90 = sadd.s32 %s89, 1
    %s91 = scalar_select %p88, %s89, %s90
    %p94 = pneg %p88
    %p95 = scmp.eq.s32.totalorder %s8, 3
    %p96 = por %p94, %p95
    %p97 = scmp.ne.s32.totalorder %s89, %s92
    %p98 = scmp.eq.s32.totalorder %s8, 0
    %p99 = por %p97, %p98
    %p100 = scmp.ne.s32.totalorder %s89, %s92
    %p101 = scmp.eq.s32.totalorder %s13, 3
    %p102 = por %p100, %p101
    %p103 = scmp.ne.s32.totalorder %s92, %s93
    %p104 = scmp.eq.s32.totalorder %s13, 0
    %p105 = por %p103, %p104
    %p106 = scmp.ne.s32.totalorder %s92, %s93
    %p107 = scmp.eq.s32.totalorder %s14, 3
    %p108 = por %p106, %p107
    %p110 = scmp.ne.s32.totalorder %s93, %s109
    %p111 = scmp.eq.s32.totalorder %s14, 0
    %p112 = por %p110, %p111
    %p113 = scmp.le.s32.totalorder 1, %s8
    %p114 = scmp.lt.s32.totalorder %s8, 5
    %p115 = pnand %p113, %p114
    %p116 = pneg %p115
    // Predicated region
    $region9: #{tpu_custom_call.1} parent=5 // pred_check
      _
    $region10: #{tpu_custom_call.1} parent=5 // pred_check_branch
      %118 = sbr.rel (%p115) target = $region12
    $region11: #{tpu_custom_call.1} parent=5 // pred_region
      %s119 = ssub.s32 %s8, 1
    $region12: #{tpu_custom_call.1} parent=5 // pred_fallthru
      _
    %p120 = scmp.lt.s32.totalorder %s8, 4
    // Predicated region
    $region13: #{tpu_custom_call.1} parent=5 // pred_check
      %p121 = pneg %p120
    $region14: #{tpu_custom_call.1} parent=5 // pred_check_branch
      %123 = sbr.rel (%p121) target = $region16
    $region15: #{tpu_custom_call.1} parent=5 // pred_region
      // Predicated region
      $region17: #{tpu_custom_call.1} parent=15 // pred_check
        %p124 = pneg %p47
      $region18: #{tpu_custom_call.1} parent=15 // pred_check_branch
        %126 = sbr.rel (%p124) target = $region20
      $region19: #{tpu_custom_call.1} parent=15 // pred_region
        %p127 = scmp.lt.s32.totalorder %s15, 1
        %s128 = scalar_select %p127, %s15, 1
        %s129 = smul.addr %s128, 8
        %s130 = smul.addr %s129, 8
        %s131 = scalar_lea.vmem %s0, %s130
      $region20: #{tpu_custom_call.1} parent=15 // pred_fallthru
        _
      // Predicated region
      $region21: #{tpu_custom_call.1} parent=15 // pred_check
        %p132 = pneg %p73
      $region22: #{tpu_custom_call.1} parent=15 // pred_check_branch
        %134 = sbr.rel (%p132) target = $region24
      $region23: #{tpu_custom_call.1} parent=15 // pred_region
        %p135 = scmp.lt.s32.totalorder %s15, 1
        %s136 = scalar_select %p135, %s15, 1
        %s137 = smul.addr %s136, 4
        %s138 = scalar_lea.vmem %s1, %s137
      $region24: #{tpu_custom_call.1} parent=15 // pred_fallthru
        _
    $region16: #{tpu_custom_call.1} parent=5 // pred_fallthru
      _
    %p139 = scmp.le.s32.totalorder 1, %s8
    %p140 = scmp.lt.s32.totalorder %s8, 5
    %p141 = pnand %p139, %p140
    %p142 = pneg %p141
    // Predicated region
    $region25: #{tpu_custom_call.1} parent=5 // pred_check
      _
    $region26: #{tpu_custom_call.1} parent=5 // pred_check_branch
      %144 = sbr.rel (%p141) target = $region28
    $region27: #{tpu_custom_call.1} parent=5 // pred_region
      %s145 = ssub.s32 %s8, 1
      %p146 = scmp.lt.s32.totalorder %s18, 1
      %s147 = scalar_select %p146, %s18, 1
      %s148 = smul.addr %s147, 8
      %s149 = smul.addr %s148, 8
      %s150 = scalar_lea.vmem %s0, %s149
      %p151 = pneg %p53
      %p152 = pneg %p50
      %p153 = scmp.lt.s32.totalorder %s18, 1
      %s154 = scalar_select %p153, %s18, 1
      %s155 = smul.addr %s154, 4
      %s156 = scalar_lea.vmem %s1, %s155
      %p157 = pneg %p79
      %p158 = pneg %p76
      %p159 = pneg %p105
      %p160 = pneg %p102
      %p161 = scmp.lt.s32.totalorder %s18, 1
      %s162 = scalar_select %p161, %s18, 1
      %s163 = scalar_lea.vmem %s2, %s162
      %p164 = scmp.lt.s32.totalorder %s18, 1
      %s165 = scalar_select %p164, %s18, 1
      %s166 = smul.addr %s165, 8
      %s167 = smul.addr %s166, 8
      %s168 = scalar_lea.vmem %s0, %s167
      %p169 = scmp.lt.s32.totalorder %s18, 1
      %s170 = scalar_select %p169, %s18, 1
      %s171 = smul.addr %s170, 4
      %s172 = scalar_lea.vmem %s1, %s171
      %p173 = scmp.lt.s32.totalorder %s18, 1
      %s174 = scalar_select %p173, %s18, 1
      %s175 = scalar_lea.vmem %s2, %s174
      %p176 = scmp.eq.s32.totalorder %s19, 0
      %p177 = scmp.eq.s32.totalorder %s20, 0
      %p178 = pnand %p176, %p177
      %p179 = pneg %p178
      // Predicated region
      $region29: #{tpu_custom_call.1} parent=27 // pred_check
        _
      $region30: #{tpu_custom_call.1} parent=27 // pred_check_branch
        %181 = sbr.rel (%p178) target = $region32
      $region31: #{tpu_custom_call.1} parent=27 // pred_region
        %vm182 = vcmask 0
        %183 = vst.msk [vmem:[%s175] sm:$0x1] %vm182, 0.0
      $region32: #{tpu_custom_call.1} parent=27 // pred_fallthru
        _
      %v184 = vld [vmem:[%s168] sm:$0xff]
      %v185 = vld [vmem:[%s168 + $0x8] sm:$0xff]
      %v186 = vld [vmem:[%s168 + $0x10] sm:$0xff]
      %v187 = vld [vmem:[%s168 + $0x18] sm:$0xff]
      %v188 = vld [vmem:[%s168 + $0x20] sm:$0xff]
      %v189 = vld [vmem:[%s168 + $0x28] sm:$0xff]
      %v190 = vld [vmem:[%s168 + $0x30] sm:$0xff]
      %v191 = vld [vmem:[%s168 + $0x38] sm:$0xff]
      %v192 = vld [vmem:[%s172] sm:$0x7]
      %vm193 = vcmask 516096
      %v194 = vsel %vm193, %v192, 0.0
      %195 = vadd.xlane.f32.xlu0 %v194
      %v196 = vpop.xlane.xlu0 %195
      %v197 = vrot.slane %v196, 4
      %v198 = vadd.f32 %v196, %v197
      %v199 = vrot.slane %v198, 2
      %v200 = vadd.f32 %v198, %v199
      %v201 = vrot.slane %v200, 1
      %v202 = vadd.f32 %v200, %v201
      %s203 = vtos %v202
      %v204 = vrcp.pop 64.0
      %v205 = vmul.f32 64.0, %v204
      %v206 = vsub.f32 1.0, %v205
      %v207 = vmul.f32 %v204, %v206
      %v208 = vadd.f32 %v204, %v207
      %vm209 = vweird.f32 %v204
      %v210 = vsel %vm209, %v204, %v208
      %s211 = vtos %v210
      %s212 = smul.f32 %s203, %s211
      %v214 = vrot.slane %v192, 1
      %v216 = vsel %vm193, %v214, 0.0
      %217 = vadd.xlane.f32.xlu0 %v216
      %v218 = vpop.xlane.xlu0 %217
      %v219 = vrot.slane %v218, 4
      %v220 = vadd.f32 %v218, %v219
      %v221 = vrot.slane %v220, 2
      %v222 = vadd.f32 %v220, %v221
      %v223 = vrot.slane %v222, 1
      %v224 = vadd.f32 %v222, %v223
      %s225 = vtos %v224
      %v226 = vrcp.pop 64.0
      %v227 = vmul.f32 64.0, %v226
      %v228 = vsub.f32 1.0, %v227
      %v229 = vmul.f32 %v226, %v228
      %v230 = vadd.f32 %v226, %v229
      %vm231 = vweird.f32 %v226
      %v232 = vsel %vm231, %v226, %v230
      %s233 = vtos %v232
      %s234 = smul.f32 %s225, %s233
      %v235 = vrot.slane %v192, 2
      %v237 = vsel %vm193, %v235, 0.0
      %238 = vadd.xlane.f32.xlu0 %v237
      %v239 = vpop.xlane.xlu0 %238
      %v240 = vrot.slane %v239, 4
      %v241 = vadd.f32 %v239, %v240
      %v242 = vrot.slane %v241, 2
      %v243 = vadd.f32 %v241, %v242
      %v244 = vrot.slane %v243, 1
      %v245 = vadd.f32 %v243, %v244
      %s246 = vtos %v245
      %v247 = vrcp.pop 64.0
      %v248 = vmul.f32 64.0, %v247
      %v249 = vsub.f32 1.0, %v248
      %v250 = vmul.f32 %v247, %v249
      %v251 = vadd.f32 %v247, %v250
      %vm252 = vweird.f32 %v247
      %v253 = vsel %vm252, %v247, %v251
      %s254 = vtos %v253
      %s255 = smul.f32 %s246, %s254
      %v256 = vstv %s212
      %v257 = vsub.f32 %v192, %v256
      %v258 = vstv %s234
      %v259 = vsub.f32 %v192, %v258
      %v260 = vstv %s255
      %v261 = vsub.f32 %v192, %v260
      %v262 = vsub.f32 %v184, %v256
      %v263 = vsub.f32 %v185, %v256
      %v264 = vsub.f32 %v186, %v256
      %v265 = vsub.f32 %v187, %v256
      %v266 = vsub.f32 %v188, %v256
      %v267 = vsub.f32 %v189, %v256
      %v268 = vsub.f32 %v190, %v256
      %v269 = vsub.f32 %v191, %v256
      %v270 = vsub.f32 %v184, %v258
      %v271 = vsub.f32 %v185, %v258
      %v272 = vsub.f32 %v186, %v258
      %v273 = vsub.f32 %v187, %v258
      %v274 = vsub.f32 %v188, %v258
      %v275 = vsub.f32 %v189, %v258
      %v276 = vsub.f32 %v190, %v258
      %v277 = vsub.f32 %v191, %v258
      %v278 = vsub.f32 %v184, %v260
      %v279 = vsub.f32 %v185, %v260
      %v280 = vsub.f32 %v186, %v260
      %v281 = vsub.f32 %v187, %v260
      %v282 = vsub.f32 %v188, %v260
      %v283 = vsub.f32 %v189, %v260
      %v284 = vsub.f32 %v190, %v260
      %v285 = vsub.f32 %v191, %v260
      // Predicated region
      $region33: #{tpu_custom_call.1} parent=27 // pred_check
        %p286 = pneg %p176
      $region34: #{tpu_custom_call.1} parent=27 // pred_check_branch
        %288 = sbr.rel (%p286) target = $region36
      $region35: #{tpu_custom_call.1} parent=27 // pred_region
        %290 = vset.pattern.permute.xlu0 0
        %291 = vperm.xlu0 %290, %v262
        %v292 = vpop.permute.xlu0 %291
        %295 = vset.pattern.permute.xlu0 0
        %296 = vperm.xlu0 %295, %v263
        %v297 = vpop.permute.xlu0 %296
        %300 = vset.pattern.permute.xlu0 0
        %301 = vperm.xlu0 %300, %v264
        %v302 = vpop.permute.xlu0 %301
        %305 = vset.pattern.permute.xlu0 0
        %306 = vperm.xlu0 %305, %v265
        %v307 = vpop.permute.xlu0 %306
        %310 = vset.pattern.permute.xlu0 0
        %311 = vperm.xlu0 %310, %v266
        %v312 = vpop.permute.xlu0 %311
        %315 = vset.pattern.permute.xlu0 0
        %316 = vperm.xlu0 %315, %v267
        %v317 = vpop.permute.xlu0 %316
        %320 = vset.pattern.permute.xlu0 0
        %321 = vperm.xlu0 %320, %v268
        %v322 = vpop.permute.xlu0 %321
        %325 = vset.pattern.permute.xlu0 0
        %326 = vperm.xlu0 %325, %v269
        %v327 = vpop.permute.xlu0 %326
        %v329 = vperm.slane %v257, 0
        %v330 = vmul.f32 %v292, %v329
        %v331 = vmul.f32 %v297, %v329
        %v332 = vmul.f32 %v302, %v329
        %v333 = vmul.f32 %v307, %v329
        %v334 = vmul.f32 %v312, %v329
        %v335 = vmul.f32 %v317, %v329
        %v336 = vmul.f32 %v322, %v329
        %v337 = vmul.f32 %v327, %v329
        %339 = vset.pattern.permute.xlu0 1
        %340 = vperm.xlu0 %339, %v270
        %v341 = vpop.permute.xlu0 %340
        %344 = vset.pattern.permute.xlu0 1
        %345 = vperm.xlu0 %344, %v271
        %v346 = vpop.permute.xlu0 %345
        %349 = vset.pattern.permute.xlu0 1
        %350 = vperm.xlu0 %349, %v272
        %v351 = vpop.permute.xlu0 %350
        %354 = vset.pattern.permute.xlu0 1
        %355 = vperm.xlu0 %354, %v273
        %v356 = vpop.permute.xlu0 %355
        %359 = vset.pattern.permute.xlu0 1
        %360 = vperm.xlu0 %359, %v274
        %v361 = vpop.permute.xlu0 %360
        %364 = vset.pattern.permute.xlu0 1
        %365 = vperm.xlu0 %364, %v275
        %v366 = vpop.permute.xlu0 %365
        %369 = vset.pattern.permute.xlu0 1
        %370 = vperm.xlu0 %369, %v276
        %v371 = vpop.permute.xlu0 %370
        %374 = vset.pattern.permute.xlu0 1
        %375 = vperm.xlu0 %374, %v277
        %v376 = vpop.permute.xlu0 %375
        %v378 = vperm.slane %v259, 1
        %v379 = vmul.f32 %v341, %v378
        %v380 = vmul.f32 %v346, %v378
        %v381 = vmul.f32 %v351, %v378
        %v382 = vmul.f32 %v356, %v378
        %v383 = vmul.f32 %v361, %v378
        %v384 = vmul.f32 %v366, %v378
        %v385 = vmul.f32 %v371, %v378
        %v386 = vmul.f32 %v376, %v378
        %v387 = vadd.f32 %v330, %v379
        %v388 = vadd.f32 %v331, %v380
        %v389 = vadd.f32 %v332, %v381
        %v390 = vadd.f32 %v333, %v382
        %v391 = vadd.f32 %v334, %v383
        %v392 = vadd.f32 %v335, %v384
        %v393 = vadd.f32 %v336, %v385
        %v394 = vadd.f32 %v337, %v386
        %396 = vset.pattern.permute.xlu0 2
        %397 = vperm.xlu0 %396, %v278
        %v398 = vpop.permute.xlu0 %397
        %401 = vset.pattern.permute.xlu0 2
        %402 = vperm.xlu0 %401, %v279
        %v403 = vpop.permute.xlu0 %402
        %406 = vset.pattern.permute.xlu0 2
        %407 = vperm.xlu0 %406, %v280
        %v408 = vpop.permute.xlu0 %407
        %411 = vset.pattern.permute.xlu0 2
        %412 = vperm.xlu0 %411, %v281
        %v413 = vpop.permute.xlu0 %412
        %416 = vset.pattern.permute.xlu0 2
        %417 = vperm.xlu0 %416, %v282
        %v418 = vpop.permute.xlu0 %417
        %421 = vset.pattern.permute.xlu0 2
        %422 = vperm.xlu0 %421, %v283
        %v423 = vpop.permute.xlu0 %422
        %426 = vset.pattern.permute.xlu0 2
        %427 = vperm.xlu0 %426, %v284
        %v428 = vpop.permute.xlu0 %427
        %431 = vset.pattern.permute.xlu0 2
        %432 = vperm.xlu0 %431, %v285
        %v433 = vpop.permute.xlu0 %432
        %v435 = vperm.slane %v261, 2
        %v436 = vmul.f32 %v398, %v435
        %v437 = vmul.f32 %v403, %v435
        %v438 = vmul.f32 %v408, %v435
        %v439 = vmul.f32 %v413, %v435
        %v440 = vmul.f32 %v418, %v435
        %v441 = vmul.f32 %v423, %v435
        %v442 = vmul.f32 %v428, %v435
        %v443 = vmul.f32 %v433, %v435
        %v444 = vadd.f32 %v387, %v436
        %v445 = vadd.f32 %v388, %v437
        %v446 = vadd.f32 %v389, %v438
        %v447 = vadd.f32 %v390, %v439
        %v448 = vadd.f32 %v391, %v440
        %v449 = vadd.f32 %v392, %v441
        %v450 = vadd.f32 %v393, %v442
        %v451 = vadd.f32 %v394, %v443
        %v452 = vmul.f32 %v257, %v257
        %v453 = vmul.f32 %v259, %v259
        %v455 = vrot.slane %v453, 1
        %v457 = vadd.f32 %v452, %v455
        %v458 = vmul.f32 %v261, %v261
        %v460 = vrot.slane %v458, 2
        %v462 = vadd.f32 %v457, %v460
        %v463 = vmul.f32 %v262, %v262
        %v464 = vmul.f32 %v263, %v263
        %v465 = vmul.f32 %v264, %v264
        %v466 = vmul.f32 %v265, %v265
        %v467 = vmul.f32 %v266, %v266
        %v468 = vmul.f32 %v267, %v267
        %v469 = vmul.f32 %v268, %v268
        %v470 = vmul.f32 %v269, %v269
        %v471 = vmul.f32 %v270, %v270
        %v472 = vmul.f32 %v271, %v271
        %v473 = vmul.f32 %v272, %v272
        %v474 = vmul.f32 %v273, %v273
        %v475 = vmul.f32 %v274, %v274
        %v476 = vmul.f32 %v275, %v275
        %v477 = vmul.f32 %v276, %v276
        %v478 = vmul.f32 %v277, %v277
        %487 = vrot.lane.b32.xlu0 %v471, 127
        %v488 = vpop.permute.xlu0 %487
        %489 = vrot.lane.b32.xlu0 %v472, 127
        %v490 = vpop.permute.xlu0 %489
        %491 = vrot.lane.b32.xlu0 %v473, 127
        %v492 = vpop.permute.xlu0 %491
        %493 = vrot.lane.b32.xlu0 %v474, 127
        %v494 = vpop.permute.xlu0 %493
        %495 = vrot.lane.b32.xlu0 %v475, 127
        %v496 = vpop.permute.xlu0 %495
        %497 = vrot.lane.b32.xlu0 %v476, 127
        %v498 = vpop.permute.xlu0 %497
        %499 = vrot.lane.b32.xlu0 %v477, 127
        %v500 = vpop.permute.xlu0 %499
        %501 = vrot.lane.b32.xlu0 %v478, 127
        %v502 = vpop.permute.xlu0 %501
        %v511 = vadd.f32 %v463, %v488
        %v512 = vadd.f32 %v464, %v490
        %v513 = vadd.f32 %v465, %v492
        %v514 = vadd.f32 %v466, %v494
        %v515 = vadd.f32 %v467, %v496
        %v516 = vadd.f32 %v468, %v498
        %v517 = vadd.f32 %v469, %v500
        %v518 = vadd.f32 %v470, %v502
        %v519 = vmul.f32 %v278, %v278
        %v520 = vmul.f32 %v279, %v279
        %v521 = vmul.f32 %v280, %v280
        %v522 = vmul.f32 %v281, %v281
        %v523 = vmul.f32 %v282, %v282
        %v524 = vmul.f32 %v283, %v283
        %v525 = vmul.f32 %v284, %v284
        %v526 = vmul.f32 %v285, %v285
        %535 = vrot.lane.b32.xlu0 %v519, 126
        %v536 = vpop.permute.xlu0 %535
        %537 = vrot.lane.b32.xlu0 %v520, 126
        %v538 = vpop.permute.xlu0 %537
        %539 = vrot.lane.b32.xlu0 %v521, 126
        %v540 = vpop.permute.xlu0 %539
        %541 = vrot.lane.b32.xlu0 %v522, 126
        %v542 = vpop.permute.xlu0 %541
        %543 = vrot.lane.b32.xlu0 %v523, 126
        %v544 = vpop.permute.xlu0 %543
        %545 = vrot.lane.b32.xlu0 %v524, 126
        %v546 = vpop.permute.xlu0 %545
        %547 = vrot.lane.b32.xlu0 %v525, 126
        %v548 = vpop.permute.xlu0 %547
        %549 = vrot.lane.b32.xlu0 %v526, 126
        %v550 = vpop.permute.xlu0 %549
        %v559 = vadd.f32 %v511, %v536
        %v560 = vadd.f32 %v512, %v538
        %v561 = vadd.f32 %v513, %v540
        %v562 = vadd.f32 %v514, %v542
        %v563 = vadd.f32 %v515, %v544
        %v564 = vadd.f32 %v516, %v546
        %v565 = vadd.f32 %v517, %v548
        %v566 = vadd.f32 %v518, %v550
        %568 = vset.pattern.permute.xlu0 0
        %569 = vperm.xlu0 %568, %v559
        %v570 = vpop.permute.xlu0 %569
        %573 = vset.pattern.permute.xlu0 0
        %574 = vperm.xlu0 %573, %v560
        %v575 = vpop.permute.xlu0 %574
        %578 = vset.pattern.permute.xlu0 0
        %579 = vperm.xlu0 %578, %v561
        %v580 = vpop.permute.xlu0 %579
        %583 = vset.pattern.permute.xlu0 0
        %584 = vperm.xlu0 %583, %v562
        %v585 = vpop.permute.xlu0 %584
        %588 = vset.pattern.permute.xlu0 0
        %589 = vperm.xlu0 %588, %v563
        %v590 = vpop.permute.xlu0 %589
        %593 = vset.pattern.permute.xlu0 0
        %594 = vperm.xlu0 %593, %v564
        %v595 = vpop.permute.xlu0 %594
        %598 = vset.pattern.permute.xlu0 0
        %599 = vperm.xlu0 %598, %v565
        %v600 = vpop.permute.xlu0 %599
        %603 = vset.pattern.permute.xlu0 0
        %604 = vperm.xlu0 %603, %v566
        %v605 = vpop.permute.xlu0 %604
        %v607 = vperm.slane %v462, 0
        %v608 = vadd.f32 %v570, %v607
        %v609 = vadd.f32 %v575, %v607
        %v610 = vadd.f32 %v580, %v607
        %v611 = vadd.f32 %v585, %v607
        %v612 = vadd.f32 %v590, %v607
        %v613 = vadd.f32 %v595, %v607
        %v614 = vadd.f32 %v600, %v607
        %v615 = vadd.f32 %v605, %v607
        %v616 = vmul.f32 %v444, 2.0
        %v617 = vmul.f32 %v445, 2.0
        %v618 = vmul.f32 %v446, 2.0
        %v619 = vmul.f32 %v447, 2.0
        %v620 = vmul.f32 %v448, 2.0
        %v621 = vmul.f32 %v449, 2.0
        %v622 = vmul.f32 %v450, 2.0
        %v623 = vmul.f32 %v451, 2.0
        %v624 = vsub.f32 %v608, %v616
        %v625 = vsub.f32 %v609, %v617
        %v626 = vsub.f32 %v610, %v618
        %v627 = vsub.f32 %v611, %v619
        %v628 = vsub.f32 %v612, %v620
        %v629 = vsub.f32 %v613, %v621
        %v630 = vsub.f32 %v614, %v622
        %v631 = vsub.f32 %v615, %v623
        %v632 = vmax.f32 %v624, 0.0
        %v633 = vmax.f32 %v625, 0.0
        %v634 = vmax.f32 %v626, 0.0
        %v635 = vmax.f32 %v627, 0.0
        %v636 = vmax.f32 %v628, 0.0
        %v637 = vmax.f32 %v629, 0.0
        %v638 = vmax.f32 %v630, 0.0
        %v639 = vmax.f32 %v631, 0.0
        %v640 = vlaneseq
        %v641 = vshrl.u32 %v640, 7
        %v642 = vadd.s32 %v641, 8
        %v643 = vadd.s32 %v641, 16
        %v644 = vadd.s32 %v641, 24
        %v645 = vadd.s32 %v641, 32
        %v646 = vadd.s32 %v641, 40
        %v647 = vadd.s32 %v641, 48
        %v648 = vadd.s32 %v641, 56
        %v657 = vand.u32 %v632, 4294967232
        %v658 = vand.u32 %v633, 4294967232
        %v659 = vand.u32 %v634, 4294967232
        %v660 = vand.u32 %v635, 4294967232
        %v661 = vand.u32 %v636, 4294967232
        %v662 = vand.u32 %v637, 4294967232
        %v663 = vand.u32 %v638, 4294967232
        %v664 = vand.u32 %v639, 4294967232
        %v665 = vor.u32 %v657, %v641
        %v666 = vor.u32 %v658, %v642
        %v667 = vor.u32 %v659, %v643
        %v668 = vor.u32 %v660, %v644
        %v669 = vor.u32 %v661, %v645
        %v670 = vor.u32 %v662, %v646
        %v671 = vor.u32 %v663, %v647
        %v672 = vor.u32 %v664, %v648
        %v673 = vadd.s32 %v665, 8388608
        %v674 = vadd.s32 %v666, 8388608
        %v675 = vadd.s32 %v667, 8388608
        %v676 = vadd.s32 %v668, 8388608
        %v677 = vadd.s32 %v669, 8388608
        %v678 = vadd.s32 %v670, 8388608
        %v679 = vadd.s32 %v671, 8388608
        %v680 = vadd.s32 %v672, 8388608
        %vm689 = vcmp.gt.f32.partialorder %v673, -1.0
        %vm690 = vcmp.gt.f32.partialorder %v674, -1.0
        %vm691 = vcmp.gt.f32.partialorder %v675, -1.0
        %vm692 = vcmp.gt.f32.partialorder %v676, -1.0
        %vm693 = vcmp.gt.f32.partialorder %v677, -1.0
        %vm694 = vcmp.gt.f32.partialorder %v678, -1.0
        %vm695 = vcmp.gt.f32.partialorder %v679, -1.0
        %vm696 = vcmp.gt.f32.partialorder %v680, -1.0
        %v697 = vsel %vm689, %v673, 3e+38
        %v698 = vsel %vm690, %v674, 3e+38
        %v699 = vsel %vm691, %v675, 3e+38
        %v700 = vsel %vm692, %v676, 3e+38
        %v701 = vsel %vm693, %v677, 3e+38
        %v702 = vsel %vm694, %v678, 3e+38
        %v703 = vsel %vm695, %v679, 3e+38
        %v704 = vsel %vm696, %v680, 3e+38
        %vm705 = vcmask 523264
        %v706 = vsel %vm705, %v697, inf
        %v707 = vsel %vm705, %v698, inf
        %v708 = vsel %vm705, %v699, inf
        %v709 = vsel %vm705, %v700, inf
        %v710 = vsel %vm705, %v701, inf
        %v711 = vmin.f32 %v706, %v710
        %v712 = vsel %vm705, %v702, inf
        %v713 = vmin.f32 %v707, %v712
        %v714 = vsel %vm705, %v703, inf
        %v715 = vmin.f32 %v708, %v714
        %v716 = vsel %vm705, %v704, inf
        %v717 = vmin.f32 %v709, %v716
        %v718 = vmin.f32 %v711, %v713
        %v719 = vmin.f32 %v715, %v717
        %v720 = vmin.f32 %v718, %v719
        %v721 = vrot.slane %v720, 4
        %v722 = vmin.f32 %v720, %v721
        %v723 = vrot.slane %v722, 2
        %v724 = vmin.f32 %v722, %v723
        %v725 = vrot.slane %v724, 1
        %v726 = vmin.f32 %v724, %v725
        %vm727 = vcmp.gt.f32.partialorder %v673, %v726
        %vm728 = vcmp.gt.f32.partialorder %v674, %v726
        %vm729 = vcmp.gt.f32.partialorder %v675, %v726
        %vm730 = vcmp.gt.f32.partialorder %v676, %v726
        %vm731 = vcmp.gt.f32.partialorder %v677, %v726
        %vm732 = vcmp.gt.f32.partialorder %v678, %v726
        %vm733 = vcmp.gt.f32.partialorder %v679, %v726
        %vm734 = vcmp.gt.f32.partialorder %v680, %v726
        %v735 = vsel %vm727, %v673, 3e+38
        %v736 = vsel %vm728, %v674, 3e+38
        %v737 = vsel %vm729, %v675, 3e+38
        %v738 = vsel %vm730, %v676, 3e+38
        %v739 = vsel %vm731, %v677, 3e+38
        %v740 = vsel %vm732, %v678, 3e+38
        %v741 = vsel %vm733, %v679, 3e+38
        %v742 = vsel %vm734, %v680, 3e+38
        %v743 = vsel %vm705, %v735, inf
        %v744 = vsel %vm705, %v736, inf
        %v745 = vsel %vm705, %v737, inf
        %v746 = vsel %vm705, %v738, inf
        %v747 = vsel %vm705, %v739, inf
        %v748 = vmin.f32 %v743, %v747
        %v749 = vsel %vm705, %v740, inf
        %v750 = vmin.f32 %v744, %v749
        %v751 = vsel %vm705, %v741, inf
        %v752 = vmin.f32 %v745, %v751
        %v753 = vsel %vm705, %v742, inf
        %v754 = vmin.f32 %v746, %v753
        %v755 = vmin.f32 %v748, %v750
        %v756 = vmin.f32 %v752, %v754
        %v757 = vmin.f32 %v755, %v756
        %v758 = vrot.slane %v757, 4
        %v759 = vmin.f32 %v757, %v758
        %v760 = vrot.slane %v759, 2
        %v761 = vmin.f32 %v759, %v760
        %v762 = vrot.slane %v761, 1
        %v763 = vmin.f32 %v761, %v762
        %vm764 = vcmp.gt.f32.partialorder %v673, %v763
        %vm765 = vcmp.gt.f32.partialorder %v674, %v763
        %vm766 = vcmp.gt.f32.partialorder %v675, %v763
        %vm767 = vcmp.gt.f32.partialorder %v676, %v763
        %vm768 = vcmp.gt.f32.partialorder %v677, %v763
        %vm769 = vcmp.gt.f32.partialorder %v678, %v763
        %vm770 = vcmp.gt.f32.partialorder %v679, %v763
        %vm771 = vcmp.gt.f32.partialorder %v680, %v763
        %v772 = vsel %vm764, %v673, 3e+38
        %v773 = vsel %vm765, %v674, 3e+38
        %v774 = vsel %vm766, %v675, 3e+38
        %v775 = vsel %vm767, %v676, 3e+38
        %v776 = vsel %vm768, %v677, 3e+38
        %v777 = vsel %vm769, %v678, 3e+38
        %v778 = vsel %vm770, %v679, 3e+38
        %v779 = vsel %vm771, %v680, 3e+38
        %v780 = vsel %vm705, %v772, inf
        %v781 = vsel %vm705, %v773, inf
        %v782 = vsel %vm705, %v774, inf
        %v783 = vsel %vm705, %v775, inf
        %v784 = vsel %vm705, %v776, inf
        %v785 = vmin.f32 %v780, %v784
        %v786 = vsel %vm705, %v777, inf
        %v787 = vmin.f32 %v781, %v786
        %v788 = vsel %vm705, %v778, inf
        %v789 = vmin.f32 %v782, %v788
        %v790 = vsel %vm705, %v779, inf
        %v791 = vmin.f32 %v783, %v790
        %v792 = vmin.f32 %v785, %v787
        %v793 = vmin.f32 %v789, %v791
        %v794 = vmin.f32 %v792, %v793
        %v795 = vrot.slane %v794, 4
        %v796 = vmin.f32 %v794, %v795
        %v797 = vrot.slane %v796, 2
        %v798 = vmin.f32 %v796, %v797
        %v799 = vrot.slane %v798, 1
        %v800 = vmin.f32 %v798, %v799
        %vm801 = vcmp.gt.f32.partialorder %v673, %v800
        %vm802 = vcmp.gt.f32.partialorder %v674, %v800
        %vm803 = vcmp.gt.f32.partialorder %v675, %v800
        %vm804 = vcmp.gt.f32.partialorder %v676, %v800
        %vm805 = vcmp.gt.f32.partialorder %v677, %v800
        %vm806 = vcmp.gt.f32.partialorder %v678, %v800
        %vm807 = vcmp.gt.f32.partialorder %v679, %v800
        %vm808 = vcmp.gt.f32.partialorder %v680, %v800
        %v809 = vsel %vm801, %v673, 3e+38
        %v810 = vsel %vm802, %v674, 3e+38
        %v811 = vsel %vm803, %v675, 3e+38
        %v812 = vsel %vm804, %v676, 3e+38
        %v813 = vsel %vm805, %v677, 3e+38
        %v814 = vsel %vm806, %v678, 3e+38
        %v815 = vsel %vm807, %v679, 3e+38
        %v816 = vsel %vm808, %v680, 3e+38
        %v817 = vsel %vm705, %v809, inf
        %v818 = vsel %vm705, %v810, inf
        %v819 = vsel %vm705, %v811, inf
        %v820 = vsel %vm705, %v812, inf
        %v821 = vsel %vm705, %v813, inf
        %v822 = vmin.f32 %v817, %v821
        %v823 = vsel %vm705, %v814, inf
        %v824 = vmin.f32 %v818, %v823
        %v825 = vsel %vm705, %v815, inf
        %v826 = vmin.f32 %v819, %v825
        %v827 = vsel %vm705, %v816, inf
        %v828 = vmin.f32 %v820, %v827
        %v829 = vmin.f32 %v822, %v824
        %v830 = vmin.f32 %v826, %v828
        %v831 = vmin.f32 %v829, %v830
        %v832 = vrot.slane %v831, 4
        %v833 = vmin.f32 %v831, %v832
        %v834 = vrot.slane %v833, 2
        %v835 = vmin.f32 %v833, %v834
        %v836 = vrot.slane %v835, 1
        %v837 = vmin.f32 %v835, %v836
        %vm838 = vcmp.gt.f32.partialorder %v673, %v837
        %vm839 = vcmp.gt.f32.partialorder %v674, %v837
        %vm840 = vcmp.gt.f32.partialorder %v675, %v837
        %vm841 = vcmp.gt.f32.partialorder %v676, %v837
        %vm842 = vcmp.gt.f32.partialorder %v677, %v837
        %vm843 = vcmp.gt.f32.partialorder %v678, %v837
        %vm844 = vcmp.gt.f32.partialorder %v679, %v837
        %vm845 = vcmp.gt.f32.partialorder %v680, %v837
        %v846 = vsel %vm838, %v673, 3e+38
        %v847 = vsel %vm839, %v674, 3e+38
        %v848 = vsel %vm840, %v675, 3e+38
        %v849 = vsel %vm841, %v676, 3e+38
        %v850 = vsel %vm842, %v677, 3e+38
        %v851 = vsel %vm843, %v678, 3e+38
        %v852 = vsel %vm844, %v679, 3e+38
        %v853 = vsel %vm845, %v680, 3e+38
        %v854 = vsel %vm705, %v846, inf
        %v855 = vsel %vm705, %v847, inf
        %v856 = vsel %vm705, %v848, inf
        %v857 = vsel %vm705, %v849, inf
        %v858 = vsel %vm705, %v850, inf
        %v859 = vmin.f32 %v854, %v858
        %v860 = vsel %vm705, %v851, inf
        %v861 = vmin.f32 %v855, %v860
        %v862 = vsel %vm705, %v852, inf
        %v863 = vmin.f32 %v856, %v862
        %v864 = vsel %vm705, %v853, inf
        %v865 = vmin.f32 %v857, %v864
        %v866 = vmin.f32 %v859, %v861
        %v867 = vmin.f32 %v863, %v865
        %v868 = vmin.f32 %v866, %v867
        %v869 = vrot.slane %v868, 4
        %v870 = vmin.f32 %v868, %v869
        %v871 = vrot.slane %v870, 2
        %v872 = vmin.f32 %v870, %v871
        %v873 = vrot.slane %v872, 1
        %v874 = vmin.f32 %v872, %v873
        %vm875 = vcmp.gt.f32.partialorder %v673, %v874
        %vm876 = vcmp.gt.f32.partialorder %v674, %v874
        %vm877 = vcmp.gt.f32.partialorder %v675, %v874
        %vm878 = vcmp.gt.f32.partialorder %v676, %v874
        %vm879 = vcmp.gt.f32.partialorder %v677, %v874
        %vm880 = vcmp.gt.f32.partialorder %v678, %v874
        %vm881 = vcmp.gt.f32.partialorder %v679, %v874
        %vm882 = vcmp.gt.f32.partialorder %v680, %v874
        %v883 = vsel %vm875, %v673, 3e+38
        %v884 = vsel %vm876, %v674, 3e+38
        %v885 = vsel %vm877, %v675, 3e+38
        %v886 = vsel %vm878, %v676, 3e+38
        %v887 = vsel %vm879, %v677, 3e+38
        %v888 = vsel %vm880, %v678, 3e+38
        %v889 = vsel %vm881, %v679, 3e+38
        %v890 = vsel %vm882, %v680, 3e+38
        %v891 = vsel %vm705, %v883, inf
        %v892 = vsel %vm705, %v884, inf
        %v893 = vsel %vm705, %v885, inf
        %v894 = vsel %vm705, %v886, inf
        %v895 = vsel %vm705, %v887, inf
        %v896 = vmin.f32 %v891, %v895
        %v897 = vsel %vm705, %v888, inf
        %v898 = vmin.f32 %v892, %v897
        %v899 = vsel %vm705, %v889, inf
        %v900 = vmin.f32 %v893, %v899
        %v901 = vsel %vm705, %v890, inf
        %v902 = vmin.f32 %v894, %v901
        %v903 = vmin.f32 %v896, %v898
        %v904 = vmin.f32 %v900, %v902
        %v905 = vmin.f32 %v903, %v904
        %v906 = vrot.slane %v905, 4
        %v907 = vmin.f32 %v905, %v906
        %v908 = vrot.slane %v907, 2
        %v909 = vmin.f32 %v907, %v908
        %v910 = vrot.slane %v909, 1
        %v911 = vmin.f32 %v909, %v910
        %vm912 = vcmp.gt.f32.partialorder %v673, %v911
        %vm913 = vcmp.gt.f32.partialorder %v674, %v911
        %vm914 = vcmp.gt.f32.partialorder %v675, %v911
        %vm915 = vcmp.gt.f32.partialorder %v676, %v911
        %vm916 = vcmp.gt.f32.partialorder %v677, %v911
        %vm917 = vcmp.gt.f32.partialorder %v678, %v911
        %vm918 = vcmp.gt.f32.partialorder %v679, %v911
        %vm919 = vcmp.gt.f32.partialorder %v680, %v911
        %v920 = vsel %vm912, %v673, 3e+38
        %v921 = vsel %vm913, %v674, 3e+38
        %v922 = vsel %vm914, %v675, 3e+38
        %v923 = vsel %vm915, %v676, 3e+38
        %v924 = vsel %vm916, %v677, 3e+38
        %v925 = vsel %vm917, %v678, 3e+38
        %v926 = vsel %vm918, %v679, 3e+38
        %v927 = vsel %vm919, %v680, 3e+38
        %v928 = vsel %vm705, %v920, inf
        %v929 = vsel %vm705, %v921, inf
        %v930 = vsel %vm705, %v922, inf
        %v931 = vsel %vm705, %v923, inf
        %v932 = vsel %vm705, %v924, inf
        %v933 = vmin.f32 %v928, %v932
        %v934 = vsel %vm705, %v925, inf
        %v935 = vmin.f32 %v929, %v934
        %v936 = vsel %vm705, %v926, inf
        %v937 = vmin.f32 %v930, %v936
        %v938 = vsel %vm705, %v927, inf
        %v939 = vmin.f32 %v931, %v938
        %v940 = vmin.f32 %v933, %v935
        %v941 = vmin.f32 %v937, %v939
        %v942 = vmin.f32 %v940, %v941
        %v943 = vrot.slane %v942, 4
        %v944 = vmin.f32 %v942, %v943
        %v945 = vrot.slane %v944, 2
        %v946 = vmin.f32 %v944, %v945
        %v947 = vrot.slane %v946, 1
        %v948 = vmin.f32 %v946, %v947
        %vm949 = vcmp.gt.f32.partialorder %v673, %v948
        %vm950 = vcmp.gt.f32.partialorder %v674, %v948
        %vm951 = vcmp.gt.f32.partialorder %v675, %v948
        %vm952 = vcmp.gt.f32.partialorder %v676, %v948
        %vm953 = vcmp.gt.f32.partialorder %v677, %v948
        %vm954 = vcmp.gt.f32.partialorder %v678, %v948
        %vm955 = vcmp.gt.f32.partialorder %v679, %v948
        %vm956 = vcmp.gt.f32.partialorder %v680, %v948
        %v957 = vsel %vm949, %v673, 3e+38
        %v958 = vsel %vm950, %v674, 3e+38
        %v959 = vsel %vm951, %v675, 3e+38
        %v960 = vsel %vm952, %v676, 3e+38
        %v961 = vsel %vm953, %v677, 3e+38
        %v962 = vsel %vm954, %v678, 3e+38
        %v963 = vsel %vm955, %v679, 3e+38
        %v964 = vsel %vm956, %v680, 3e+38
        %v965 = vsel %vm705, %v957, inf
        %v966 = vsel %vm705, %v958, inf
        %v967 = vsel %vm705, %v959, inf
        %v968 = vsel %vm705, %v960, inf
        %v969 = vsel %vm705, %v961, inf
        %v970 = vmin.f32 %v965, %v969
        %v971 = vsel %vm705, %v962, inf
        %v972 = vmin.f32 %v966, %v971
        %v973 = vsel %vm705, %v963, inf
        %v974 = vmin.f32 %v967, %v973
        %v975 = vsel %vm705, %v964, inf
        %v976 = vmin.f32 %v968, %v975
        %v977 = vmin.f32 %v970, %v972
        %v978 = vmin.f32 %v974, %v976
        %v979 = vmin.f32 %v977, %v978
        %v980 = vrot.slane %v979, 4
        %v981 = vmin.f32 %v979, %v980
        %v982 = vrot.slane %v981, 2
        %v983 = vmin.f32 %v981, %v982
        %v984 = vrot.slane %v983, 1
        %v985 = vmin.f32 %v983, %v984
        %vm986 = vcmp.gt.f32.partialorder %v673, %v985
        %vm987 = vcmp.gt.f32.partialorder %v674, %v985
        %vm988 = vcmp.gt.f32.partialorder %v675, %v985
        %vm989 = vcmp.gt.f32.partialorder %v676, %v985
        %vm990 = vcmp.gt.f32.partialorder %v677, %v985
        %vm991 = vcmp.gt.f32.partialorder %v678, %v985
        %vm992 = vcmp.gt.f32.partialorder %v679, %v985
        %vm993 = vcmp.gt.f32.partialorder %v680, %v985
        %v994 = vsel %vm986, %v673, 3e+38
        %v995 = vsel %vm987, %v674, 3e+38
        %v996 = vsel %vm988, %v675, 3e+38
        %v997 = vsel %vm989, %v676, 3e+38
        %v998 = vsel %vm990, %v677, 3e+38
        %v999 = vsel %vm991, %v678, 3e+38
        %v1000 = vsel %vm992, %v679, 3e+38
        %v1001 = vsel %vm993, %v680, 3e+38
        %v1002 = vsel %vm705, %v994, inf
        %v1003 = vsel %vm705, %v995, inf
        %v1004 = vsel %vm705, %v996, inf
        %v1005 = vsel %vm705, %v997, inf
        %v1006 = vsel %vm705, %v998, inf
        %v1007 = vmin.f32 %v1002, %v1006
        %v1008 = vsel %vm705, %v999, inf
        %v1009 = vmin.f32 %v1003, %v1008
        %v1010 = vsel %vm705, %v1000, inf
        %v1011 = vmin.f32 %v1004, %v1010
        %v1012 = vsel %vm705, %v1001, inf
        %v1013 = vmin.f32 %v1005, %v1012
        %v1014 = vmin.f32 %v1007, %v1009
        %v1015 = vmin.f32 %v1011, %v1013
        %v1016 = vmin.f32 %v1014, %v1015
        %v1017 = vrot.slane %v1016, 4
        %v1018 = vmin.f32 %v1016, %v1017
        %v1019 = vrot.slane %v1018, 2
        %v1020 = vmin.f32 %v1018, %v1019
        %v1021 = vrot.slane %v1020, 1
        %v1022 = vmin.f32 %v1020, %v1021
        %vm1023 = vcmp.gt.f32.partialorder %v673, %v1022
        %vm1024 = vcmp.gt.f32.partialorder %v674, %v1022
        %vm1025 = vcmp.gt.f32.partialorder %v675, %v1022
        %vm1026 = vcmp.gt.f32.partialorder %v676, %v1022
        %vm1027 = vcmp.gt.f32.partialorder %v677, %v1022
        %vm1028 = vcmp.gt.f32.partialorder %v678, %v1022
        %vm1029 = vcmp.gt.f32.partialorder %v679, %v1022
        %vm1030 = vcmp.gt.f32.partialorder %v680, %v1022
        %v1031 = vsel %vm1023, %v673, 3e+38
        %v1032 = vsel %vm1024, %v674, 3e+38
        %v1033 = vsel %vm1025, %v675, 3e+38
        %v1034 = vsel %vm1026, %v676, 3e+38
        %v1035 = vsel %vm1027, %v677, 3e+38
        %v1036 = vsel %vm1028, %v678, 3e+38
        %v1037 = vsel %vm1029, %v679, 3e+38
        %v1038 = vsel %vm1030, %v680, 3e+38
        %v1039 = vsel %vm705, %v1031, inf
        %v1040 = vsel %vm705, %v1032, inf
        %v1041 = vsel %vm705, %v1033, inf
        %v1042 = vsel %vm705, %v1034, inf
        %v1043 = vsel %vm705, %v1035, inf
        %v1044 = vmin.f32 %v1039, %v1043
        %v1045 = vsel %vm705, %v1036, inf
        %v1046 = vmin.f32 %v1040, %v1045
        %v1047 = vsel %vm705, %v1037, inf
        %v1048 = vmin.f32 %v1041, %v1047
        %v1049 = vsel %vm705, %v1038, inf
        %v1050 = vmin.f32 %v1042, %v1049
        %v1051 = vmin.f32 %v1044, %v1046
        %v1052 = vmin.f32 %v1048, %v1050
        %v1053 = vmin.f32 %v1051, %v1052
        %v1054 = vrot.slane %v1053, 4
        %v1055 = vmin.f32 %v1053, %v1054
        %v1056 = vrot.slane %v1055, 2
        %v1057 = vmin.f32 %v1055, %v1056
        %v1058 = vrot.slane %v1057, 1
        %v1059 = vmin.f32 %v1057, %v1058
        %vm1060 = vcmp.gt.f32.partialorder %v673, %v1059
        %vm1061 = vcmp.gt.f32.partialorder %v674, %v1059
        %vm1062 = vcmp.gt.f32.partialorder %v675, %v1059
        %vm1063 = vcmp.gt.f32.partialorder %v676, %v1059
        %vm1064 = vcmp.gt.f32.partialorder %v677, %v1059
        %vm1065 = vcmp.gt.f32.partialorder %v678, %v1059
        %vm1066 = vcmp.gt.f32.partialorder %v679, %v1059
        %vm1067 = vcmp.gt.f32.partialorder %v680, %v1059
        %v1068 = vsel %vm1060, %v673, 3e+38
        %v1069 = vsel %vm1061, %v674, 3e+38
        %v1070 = vsel %vm1062, %v675, 3e+38
        %v1071 = vsel %vm1063, %v676, 3e+38
        %v1072 = vsel %vm1064, %v677, 3e+38
        %v1073 = vsel %vm1065, %v678, 3e+38
        %v1074 = vsel %vm1066, %v679, 3e+38
        %v1075 = vsel %vm1067, %v680, 3e+38
        %v1076 = vsel %vm705, %v1068, inf
        %v1077 = vsel %vm705, %v1069, inf
        %v1078 = vsel %vm705, %v1070, inf
        %v1079 = vsel %vm705, %v1071, inf
        %v1080 = vsel %vm705, %v1072, inf
        %v1081 = vmin.f32 %v1076, %v1080
        %v1082 = vsel %vm705, %v1073, inf
        %v1083 = vmin.f32 %v1077, %v1082
        %v1084 = vsel %vm705, %v1074, inf
        %v1085 = vmin.f32 %v1078, %v1084
        %v1086 = vsel %vm705, %v1075, inf
        %v1087 = vmin.f32 %v1079, %v1086
        %v1088 = vmin.f32 %v1081, %v1083
        %v1089 = vmin.f32 %v1085, %v1087
        %v1090 = vmin.f32 %v1088, %v1089
        %v1091 = vrot.slane %v1090, 4
        %v1092 = vmin.f32 %v1090, %v1091
        %v1093 = vrot.slane %v1092, 2
        %v1094 = vmin.f32 %v1092, %v1093
        %v1095 = vrot.slane %v1094, 1
        %v1096 = vmin.f32 %v1094, %v1095
        %vm1097 = vcmp.gt.f32.partialorder %v673, %v1096
        %vm1098 = vcmp.gt.f32.partialorder %v674, %v1096
        %vm1099 = vcmp.gt.f32.partialorder %v675, %v1096
        %vm1100 = vcmp.gt.f32.partialorder %v676, %v1096
        %vm1101 = vcmp.gt.f32.partialorder %v677, %v1096
        %vm1102 = vcmp.gt.f32.partialorder %v678, %v1096
        %vm1103 = vcmp.gt.f32.partialorder %v679, %v1096
        %vm1104 = vcmp.gt.f32.partialorder %v680, %v1096
        %v1105 = vsel %vm1097, %v673, 3e+38
        %v1106 = vsel %vm1098, %v674, 3e+38
        %v1107 = vsel %vm1099, %v675, 3e+38
        %v1108 = vsel %vm1100, %v676, 3e+38
        %v1109 = vsel %vm1101, %v677, 3e+38
        %v1110 = vsel %vm1102, %v678, 3e+38
        %v1111 = vsel %vm1103, %v679, 3e+38
        %v1112 = vsel %vm1104, %v680, 3e+38
        %v1113 = vsel %vm705, %v1105, inf
        %v1114 = vsel %vm705, %v1106, inf
        %v1115 = vsel %vm705, %v1107, inf
        %v1116 = vsel %vm705, %v1108, inf
        %v1117 = vsel %vm705, %v1109, inf
        %v1118 = vmin.f32 %v1113, %v1117
        %v1119 = vsel %vm705, %v1110, inf
        %v1120 = vmin.f32 %v1114, %v1119
        %v1121 = vsel %vm705, %v1111, inf
        %v1122 = vmin.f32 %v1115, %v1121
        %v1123 = vsel %vm705, %v1112, inf
        %v1124 = vmin.f32 %v1116, %v1123
        %v1125 = vmin.f32 %v1118, %v1120
        %v1126 = vmin.f32 %v1122, %v1124
        %v1127 = vmin.f32 %v1125, %v1126
        %v1128 = vrot.slane %v1127, 4
        %v1129 = vmin.f32 %v1127, %v1128
        %v1130 = vrot.slane %v1129, 2
        %v1131 = vmin.f32 %v1129, %v1130
        %v1132 = vrot.slane %v1131, 1
        %v1133 = vmin.f32 %v1131, %v1132
        %vm1134 = vcmp.gt.f32.partialorder %v673, %v1133
        %vm1135 = vcmp.gt.f32.partialorder %v674, %v1133
        %vm1136 = vcmp.gt.f32.partialorder %v675, %v1133
        %vm1137 = vcmp.gt.f32.partialorder %v676, %v1133
        %vm1138 = vcmp.gt.f32.partialorder %v677, %v1133
        %vm1139 = vcmp.gt.f32.partialorder %v678, %v1133
        %vm1140 = vcmp.gt.f32.partialorder %v679, %v1133
        %vm1141 = vcmp.gt.f32.partialorder %v680, %v1133
        %v1142 = vsel %vm1134, %v673, 3e+38
        %v1143 = vsel %vm1135, %v674, 3e+38
        %v1144 = vsel %vm1136, %v675, 3e+38
        %v1145 = vsel %vm1137, %v676, 3e+38
        %v1146 = vsel %vm1138, %v677, 3e+38
        %v1147 = vsel %vm1139, %v678, 3e+38
        %v1148 = vsel %vm1140, %v679, 3e+38
        %v1149 = vsel %vm1141, %v680, 3e+38
        %v1150 = vsel %vm705, %v1142, inf
        %v1151 = vsel %vm705, %v1143, inf
        %v1152 = vsel %vm705, %v1144, inf
        %v1153 = vsel %vm705, %v1145, inf
        %v1154 = vsel %vm705, %v1146, inf
        %v1155 = vmin.f32 %v1150, %v1154
        %v1156 = vsel %vm705, %v1147, inf
        %v1157 = vmin.f32 %v1151, %v1156
        %v1158 = vsel %vm705, %v1148, inf
        %v1159 = vmin.f32 %v1152, %v1158
        %v1160 = vsel %vm705, %v1149, inf
        %v1161 = vmin.f32 %v1153, %v1160
        %v1162 = vmin.f32 %v1155, %v1157
        %v1163 = vmin.f32 %v1159, %v1161
        %v1164 = vmin.f32 %v1162, %v1163
        %v1165 = vrot.slane %v1164, 4
        %v1166 = vmin.f32 %v1164, %v1165
        %v1167 = vrot.slane %v1166, 2
        %v1168 = vmin.f32 %v1166, %v1167
        %v1169 = vrot.slane %v1168, 1
        %v1170 = vmin.f32 %v1168, %v1169
        %vm1171 = vcmp.gt.f32.partialorder %v673, %v1170
        %vm1172 = vcmp.gt.f32.partialorder %v674, %v1170
        %vm1173 = vcmp.gt.f32.partialorder %v675, %v1170
        %vm1174 = vcmp.gt.f32.partialorder %v676, %v1170
        %vm1175 = vcmp.gt.f32.partialorder %v677, %v1170
        %vm1176 = vcmp.gt.f32.partialorder %v678, %v1170
        %vm1177 = vcmp.gt.f32.partialorder %v679, %v1170
        %vm1178 = vcmp.gt.f32.partialorder %v680, %v1170
        %v1179 = vsel %vm1171, %v673, 3e+38
        %v1180 = vsel %vm1172, %v674, 3e+38
        %v1181 = vsel %vm1173, %v675, 3e+38
        %v1182 = vsel %vm1174, %v676, 3e+38
        %v1183 = vsel %vm1175, %v677, 3e+38
        %v1184 = vsel %vm1176, %v678, 3e+38
        %v1185 = vsel %vm1177, %v679, 3e+38
        %v1186 = vsel %vm1178, %v680, 3e+38
        %v1187 = vsel %vm705, %v1179, inf
        %v1188 = vsel %vm705, %v1180, inf
        %v1189 = vsel %vm705, %v1181, inf
        %v1190 = vsel %vm705, %v1182, inf
        %v1191 = vsel %vm705, %v1183, inf
        %v1192 = vmin.f32 %v1187, %v1191
        %v1193 = vsel %vm705, %v1184, inf
        %v1194 = vmin.f32 %v1188, %v1193
        %v1195 = vsel %vm705, %v1185, inf
        %v1196 = vmin.f32 %v1189, %v1195
        %v1197 = vsel %vm705, %v1186, inf
        %v1198 = vmin.f32 %v1190, %v1197
        %v1199 = vmin.f32 %v1192, %v1194
        %v1200 = vmin.f32 %v1196, %v1198
        %v1201 = vmin.f32 %v1199, %v1200
        %v1202 = vrot.slane %v1201, 4
        %v1203 = vmin.f32 %v1201, %v1202
        %v1204 = vrot.slane %v1203, 2
        %v1205 = vmin.f32 %v1203, %v1204
        %v1206 = vrot.slane %v1205, 1
        %v1207 = vmin.f32 %v1205, %v1206
        %vm1208 = vcmp.gt.f32.partialorder %v673, %v1207
        %vm1209 = vcmp.gt.f32.partialorder %v674, %v1207
        %vm1210 = vcmp.gt.f32.partialorder %v675, %v1207
        %vm1211 = vcmp.gt.f32.partialorder %v676, %v1207
        %vm1212 = vcmp.gt.f32.partialorder %v677, %v1207
        %vm1213 = vcmp.gt.f32.partialorder %v678, %v1207
        %vm1214 = vcmp.gt.f32.partialorder %v679, %v1207
        %vm1215 = vcmp.gt.f32.partialorder %v680, %v1207
        %v1216 = vsel %vm1208, %v673, 3e+38
        %v1217 = vsel %vm1209, %v674, 3e+38
        %v1218 = vsel %vm1210, %v675, 3e+38
        %v1219 = vsel %vm1211, %v676, 3e+38
        %v1220 = vsel %vm1212, %v677, 3e+38
        %v1221 = vsel %vm1213, %v678, 3e+38
        %v1222 = vsel %vm1214, %v679, 3e+38
        %v1223 = vsel %vm1215, %v680, 3e+38
        %v1224 = vsel %vm705, %v1216, inf
        %v1225 = vsel %vm705, %v1217, inf
        %v1226 = vsel %vm705, %v1218, inf
        %v1227 = vsel %vm705, %v1219, inf
        %v1228 = vsel %vm705, %v1220, inf
        %v1229 = vmin.f32 %v1224, %v1228
        %v1230 = vsel %vm705, %v1221, inf
        %v1231 = vmin.f32 %v1225, %v1230
        %v1232 = vsel %vm705, %v1222, inf
        %v1233 = vmin.f32 %v1226, %v1232
        %v1234 = vsel %vm705, %v1223, inf
        %v1235 = vmin.f32 %v1227, %v1234
        %v1236 = vmin.f32 %v1229, %v1231
        %v1237 = vmin.f32 %v1233, %v1235
        %v1238 = vmin.f32 %v1236, %v1237
        %v1239 = vrot.slane %v1238, 4
        %v1240 = vmin.f32 %v1238, %v1239
        %v1241 = vrot.slane %v1240, 2
        %v1242 = vmin.f32 %v1240, %v1241
        %v1243 = vrot.slane %v1242, 1
        %v1244 = vmin.f32 %v1242, %v1243
        %vm1245 = vcmp.gt.f32.partialorder %v673, %v1244
        %vm1246 = vcmp.gt.f32.partialorder %v674, %v1244
        %vm1247 = vcmp.gt.f32.partialorder %v675, %v1244
        %vm1248 = vcmp.gt.f32.partialorder %v676, %v1244
        %vm1249 = vcmp.gt.f32.partialorder %v677, %v1244
        %vm1250 = vcmp.gt.f32.partialorder %v678, %v1244
        %vm1251 = vcmp.gt.f32.partialorder %v679, %v1244
        %vm1252 = vcmp.gt.f32.partialorder %v680, %v1244
        %v1253 = vsel %vm1245, %v673, 3e+38
        %v1254 = vsel %vm1246, %v674, 3e+38
        %v1255 = vsel %vm1247, %v675, 3e+38
        %v1256 = vsel %vm1248, %v676, 3e+38
        %v1257 = vsel %vm1249, %v677, 3e+38
        %v1258 = vsel %vm1250, %v678, 3e+38
        %v1259 = vsel %vm1251, %v679, 3e+38
        %v1260 = vsel %vm1252, %v680, 3e+38
        %v1261 = vsel %vm705, %v1253, inf
        %v1262 = vsel %vm705, %v1254, inf
        %v1263 = vsel %vm705, %v1255, inf
        %v1264 = vsel %vm705, %v1256, inf
        %v1265 = vsel %vm705, %v1257, inf
        %v1266 = vmin.f32 %v1261, %v1265
        %v1267 = vsel %vm705, %v1258, inf
        %v1268 = vmin.f32 %v1262, %v1267
        %v1269 = vsel %vm705, %v1259, inf
        %v1270 = vmin.f32 %v1263, %v1269
        %v1271 = vsel %vm705, %v1260, inf
        %v1272 = vmin.f32 %v1264, %v1271
        %v1273 = vmin.f32 %v1266, %v1268
        %v1274 = vmin.f32 %v1270, %v1272
        %v1275 = vmin.f32 %v1273, %v1274
        %v1276 = vrot.slane %v1275, 4
        %v1277 = vmin.f32 %v1275, %v1276
        %v1278 = vrot.slane %v1277, 2
        %v1279 = vmin.f32 %v1277, %v1278
        %v1280 = vrot.slane %v1279, 1
        %v1281 = vmin.f32 %v1279, %v1280
        %vm1282 = vcmp.gt.f32.partialorder %v673, %v1281
        %vm1283 = vcmp.gt.f32.partialorder %v674, %v1281
        %vm1284 = vcmp.gt.f32.partialorder %v675, %v1281
        %vm1285 = vcmp.gt.f32.partialorder %v676, %v1281
        %vm1286 = vcmp.gt.f32.partialorder %v677, %v1281
        %vm1287 = vcmp.gt.f32.partialorder %v678, %v1281
        %vm1288 = vcmp.gt.f32.partialorder %v679, %v1281
        %vm1289 = vcmp.gt.f32.partialorder %v680, %v1281
        %v1290 = vsel %vm1282, %v673, 3e+38
        %v1291 = vsel %vm1283, %v674, 3e+38
        %v1292 = vsel %vm1284, %v675, 3e+38
        %v1293 = vsel %vm1285, %v676, 3e+38
        %v1294 = vsel %vm1286, %v677, 3e+38
        %v1295 = vsel %vm1287, %v678, 3e+38
        %v1296 = vsel %vm1288, %v679, 3e+38
        %v1297 = vsel %vm1289, %v680, 3e+38
        %v1298 = vsel %vm705, %v1290, inf
        %v1299 = vsel %vm705, %v1291, inf
        %v1300 = vsel %vm705, %v1292, inf
        %v1301 = vsel %vm705, %v1293, inf
        %v1302 = vsel %vm705, %v1294, inf
        %v1303 = vmin.f32 %v1298, %v1302
        %v1304 = vsel %vm705, %v1295, inf
        %v1305 = vmin.f32 %v1299, %v1304
        %v1306 = vsel %vm705, %v1296, inf
        %v1307 = vmin.f32 %v1300, %v1306
        %v1308 = vsel %vm705, %v1297, inf
        %v1309 = vmin.f32 %v1301, %v1308
        %v1310 = vmin.f32 %v1303, %v1305
        %v1311 = vmin.f32 %v1307, %v1309
        %v1312 = vmin.f32 %v1310, %v1311
        %v1313 = vrot.slane %v1312, 4
        %v1314 = vmin.f32 %v1312, %v1313
        %v1315 = vrot.slane %v1314, 2
        %v1316 = vmin.f32 %v1314, %v1315
        %v1317 = vrot.slane %v1316, 1
        %v1318 = vmin.f32 %v1316, %v1317
        %vm1319 = vcmp.gt.f32.partialorder %v673, %v1318
        %vm1320 = vcmp.gt.f32.partialorder %v674, %v1318
        %vm1321 = vcmp.gt.f32.partialorder %v675, %v1318
        %vm1322 = vcmp.gt.f32.partialorder %v676, %v1318
        %vm1323 = vcmp.gt.f32.partialorder %v677, %v1318
        %vm1324 = vcmp.gt.f32.partialorder %v678, %v1318
        %vm1325 = vcmp.gt.f32.partialorder %v679, %v1318
        %vm1326 = vcmp.gt.f32.partialorder %v680, %v1318
        %v1327 = vsel %vm1319, %v673, 3e+38
        %v1328 = vsel %vm1320, %v674, 3e+38
        %v1329 = vsel %vm1321, %v675, 3e+38
        %v1330 = vsel %vm1322, %v676, 3e+38
        %v1331 = vsel %vm1323, %v677, 3e+38
        %v1332 = vsel %vm1324, %v678, 3e+38
        %v1333 = vsel %vm1325, %v679, 3e+38
        %v1334 = vsel %vm1326, %v680, 3e+38
        %v1335 = vsel %vm705, %v1327, inf
        %v1336 = vsel %vm705, %v1328, inf
        %v1337 = vsel %vm705, %v1329, inf
        %v1338 = vsel %vm705, %v1330, inf
        %v1339 = vsel %vm705, %v1331, inf
        %v1340 = vmin.f32 %v1335, %v1339
        %v1341 = vsel %vm705, %v1332, inf
        %v1342 = vmin.f32 %v1336, %v1341
        %v1343 = vsel %vm705, %v1333, inf
        %v1344 = vmin.f32 %v1337, %v1343
        %v1345 = vsel %vm705, %v1334, inf
        %v1346 = vmin.f32 %v1338, %v1345
        %v1347 = vmin.f32 %v1340, %v1342
        %v1348 = vmin.f32 %v1344, %v1346
        %v1349 = vmin.f32 %v1347, %v1348
        %v1350 = vrot.slane %v1349, 4
        %v1351 = vmin.f32 %v1349, %v1350
        %v1352 = vrot.slane %v1351, 2
        %v1353 = vmin.f32 %v1351, %v1352
        %v1354 = vrot.slane %v1353, 1
        %v1355 = vmin.f32 %v1353, %v1354
        %vm1356 = vcmp.gt.f32.partialorder %v673, %v1355
        %vm1357 = vcmp.gt.f32.partialorder %v674, %v1355
        %vm1358 = vcmp.gt.f32.partialorder %v675, %v1355
        %vm1359 = vcmp.gt.f32.partialorder %v676, %v1355
        %vm1360 = vcmp.gt.f32.partialorder %v677, %v1355
        %vm1361 = vcmp.gt.f32.partialorder %v678, %v1355
        %vm1362 = vcmp.gt.f32.partialorder %v679, %v1355
        %vm1363 = vcmp.gt.f32.partialorder %v680, %v1355
        %v1364 = vsel %vm1356, %v673, 3e+38
        %v1365 = vsel %vm1357, %v674, 3e+38
        %v1366 = vsel %vm1358, %v675, 3e+38
        %v1367 = vsel %vm1359, %v676, 3e+38
        %v1368 = vsel %vm1360, %v677, 3e+38
        %v1369 = vsel %vm1361, %v678, 3e+38
        %v1370 = vsel %vm1362, %v679, 3e+38
        %v1371 = vsel %vm1363, %v680, 3e+38
        %v1372 = vsel %vm705, %v1364, inf
        %v1373 = vsel %vm705, %v1365, inf
        %v1374 = vsel %vm705, %v1366, inf
        %v1375 = vsel %vm705, %v1367, inf
        %v1376 = vsel %vm705, %v1368, inf
        %v1377 = vmin.f32 %v1372, %v1376
        %v1378 = vsel %vm705, %v1369, inf
        %v1379 = vmin.f32 %v1373, %v1378
        %v1380 = vsel %vm705, %v1370, inf
        %v1381 = vmin.f32 %v1374, %v1380
        %v1382 = vsel %vm705, %v1371, inf
        %v1383 = vmin.f32 %v1375, %v1382
        %v1384 = vmin.f32 %v1377, %v1379
        %v1385 = vmin.f32 %v1381, %v1383
        %v1386 = vmin.f32 %v1384, %v1385
        %v1387 = vrot.slane %v1386, 4
        %v1388 = vmin.f32 %v1386, %v1387
        %v1389 = vrot.slane %v1388, 2
        %v1390 = vmin.f32 %v1388, %v1389
        %v1391 = vrot.slane %v1390, 1
        %v1392 = vmin.f32 %v1390, %v1391
        %vm1393 = vcmp.gt.f32.partialorder %v673, %v1392
        %vm1394 = vcmp.gt.f32.partialorder %v674, %v1392
        %vm1395 = vcmp.gt.f32.partialorder %v675, %v1392
        %vm1396 = vcmp.gt.f32.partialorder %v676, %v1392
        %vm1397 = vcmp.gt.f32.partialorder %v677, %v1392
        %vm1398 = vcmp.gt.f32.partialorder %v678, %v1392
        %vm1399 = vcmp.gt.f32.partialorder %v679, %v1392
        %vm1400 = vcmp.gt.f32.partialorder %v680, %v1392
        %v1401 = vsel %vm1393, %v673, 3e+38
        %v1402 = vsel %vm1394, %v674, 3e+38
        %v1403 = vsel %vm1395, %v675, 3e+38
        %v1404 = vsel %vm1396, %v676, 3e+38
        %v1405 = vsel %vm1397, %v677, 3e+38
        %v1406 = vsel %vm1398, %v678, 3e+38
        %v1407 = vsel %vm1399, %v679, 3e+38
        %v1408 = vsel %vm1400, %v680, 3e+38
        %v1409 = vsel %vm705, %v1401, inf
        %v1410 = vsel %vm705, %v1402, inf
        %v1411 = vsel %vm705, %v1403, inf
        %v1412 = vsel %vm705, %v1404, inf
        %v1413 = vsel %vm705, %v1405, inf
        %v1414 = vmin.f32 %v1409, %v1413
        %v1415 = vsel %vm705, %v1406, inf
        %v1416 = vmin.f32 %v1410, %v1415
        %v1417 = vsel %vm705, %v1407, inf
        %v1418 = vmin.f32 %v1411, %v1417
        %v1419 = vsel %vm705, %v1408, inf
        %v1420 = vmin.f32 %v1412, %v1419
        %v1421 = vmin.f32 %v1414, %v1416
        %v1422 = vmin.f32 %v1418, %v1420
        %v1423 = vmin.f32 %v1421, %v1422
        %v1424 = vrot.slane %v1423, 4
        %v1425 = vmin.f32 %v1423, %v1424
        %v1426 = vrot.slane %v1425, 2
        %v1427 = vmin.f32 %v1425, %v1426
        %v1428 = vrot.slane %v1427, 1
        %v1429 = vmin.f32 %v1427, %v1428
        %vm1430 = vcmp.gt.f32.partialorder %v673, %v1429
        %vm1431 = vcmp.gt.f32.partialorder %v674, %v1429
        %vm1432 = vcmp.gt.f32.partialorder %v675, %v1429
        %vm1433 = vcmp.gt.f32.partialorder %v676, %v1429
        %vm1434 = vcmp.gt.f32.partialorder %v677, %v1429
        %vm1435 = vcmp.gt.f32.partialorder %v678, %v1429
        %vm1436 = vcmp.gt.f32.partialorder %v679, %v1429
        %vm1437 = vcmp.gt.f32.partialorder %v680, %v1429
        %v1438 = vsel %vm1430, %v673, 3e+38
        %v1439 = vsel %vm1431, %v674, 3e+38
        %v1440 = vsel %vm1432, %v675, 3e+38
        %v1441 = vsel %vm1433, %v676, 3e+38
        %v1442 = vsel %vm1434, %v677, 3e+38
        %v1443 = vsel %vm1435, %v678, 3e+38
        %v1444 = vsel %vm1436, %v679, 3e+38
        %v1445 = vsel %vm1437, %v680, 3e+38
        %v1446 = vsel %vm705, %v1438, inf
        %v1447 = vsel %vm705, %v1439, inf
        %v1448 = vsel %vm705, %v1440, inf
        %v1449 = vsel %vm705, %v1441, inf
        %v1450 = vsel %vm705, %v1442, inf
        %v1451 = vmin.f32 %v1446, %v1450
        %v1452 = vsel %vm705, %v1443, inf
        %v1453 = vmin.f32 %v1447, %v1452
        %v1454 = vsel %vm705, %v1444, inf
        %v1455 = vmin.f32 %v1448, %v1454
        %v1456 = vsel %vm705, %v1445, inf
        %v1457 = vmin.f32 %v1449, %v1456
        %v1458 = vmin.f32 %v1451, %v1453
        %v1459 = vmin.f32 %v1455, %v1457
        %v1460 = vmin.f32 %v1458, %v1459
        %v1461 = vrot.slane %v1460, 4
        %v1462 = vmin.f32 %v1460, %v1461
        %v1463 = vrot.slane %v1462, 2
        %v1464 = vmin.f32 %v1462, %v1463
        %v1465 = vrot.slane %v1464, 1
        %v1466 = vmin.f32 %v1464, %v1465
        %vm1467 = vcmp.gt.f32.partialorder %v673, %v1466
        %vm1468 = vcmp.gt.f32.partialorder %v674, %v1466
        %vm1469 = vcmp.gt.f32.partialorder %v675, %v1466
        %vm1470 = vcmp.gt.f32.partialorder %v676, %v1466
        %vm1471 = vcmp.gt.f32.partialorder %v677, %v1466
        %vm1472 = vcmp.gt.f32.partialorder %v678, %v1466
        %vm1473 = vcmp.gt.f32.partialorder %v679, %v1466
        %vm1474 = vcmp.gt.f32.partialorder %v680, %v1466
        %v1475 = vsel %vm1467, %v673, 3e+38
        %v1476 = vsel %vm1468, %v674, 3e+38
        %v1477 = vsel %vm1469, %v675, 3e+38
        %v1478 = vsel %vm1470, %v676, 3e+38
        %v1479 = vsel %vm1471, %v677, 3e+38
        %v1480 = vsel %vm1472, %v678, 3e+38
        %v1481 = vsel %vm1473, %v679, 3e+38
        %v1482 = vsel %vm1474, %v680, 3e+38
        %v1483 = vsel %vm705, %v1475, inf
        %v1484 = vsel %vm705, %v1476, inf
        %v1485 = vsel %vm705, %v1477, inf
        %v1486 = vsel %vm705, %v1478, inf
        %v1487 = vsel %vm705, %v1479, inf
        %v1488 = vmin.f32 %v1483, %v1487
        %v1489 = vsel %vm705, %v1480, inf
        %v1490 = vmin.f32 %v1484, %v1489
        %v1491 = vsel %vm705, %v1481, inf
        %v1492 = vmin.f32 %v1485, %v1491
        %v1493 = vsel %vm705, %v1482, inf
        %v1494 = vmin.f32 %v1486, %v1493
        %v1495 = vmin.f32 %v1488, %v1490
        %v1496 = vmin.f32 %v1492, %v1494
        %v1497 = vmin.f32 %v1495, %v1496
        %v1498 = vrot.slane %v1497, 4
        %v1499 = vmin.f32 %v1497, %v1498
        %v1500 = vrot.slane %v1499, 2
        %v1501 = vmin.f32 %v1499, %v1500
        %v1502 = vrot.slane %v1501, 1
        %v1503 = vmin.f32 %v1501, %v1502
        %vm1504 = vcmp.gt.f32.partialorder %v673, %v1503
        %vm1505 = vcmp.gt.f32.partialorder %v674, %v1503
        %vm1506 = vcmp.gt.f32.partialorder %v675, %v1503
        %vm1507 = vcmp.gt.f32.partialorder %v676, %v1503
        %vm1508 = vcmp.gt.f32.partialorder %v677, %v1503
        %vm1509 = vcmp.gt.f32.partialorder %v678, %v1503
        %vm1510 = vcmp.gt.f32.partialorder %v679, %v1503
        %vm1511 = vcmp.gt.f32.partialorder %v680, %v1503
        %v1512 = vsel %vm1504, %v673, 3e+38
        %v1513 = vsel %vm1505, %v674, 3e+38
        %v1514 = vsel %vm1506, %v675, 3e+38
        %v1515 = vsel %vm1507, %v676, 3e+38
        %v1516 = vsel %vm1508, %v677, 3e+38
        %v1517 = vsel %vm1509, %v678, 3e+38
        %v1518 = vsel %vm1510, %v679, 3e+38
        %v1519 = vsel %vm1511, %v680, 3e+38
        %v1520 = vsel %vm705, %v1512, inf
        %v1521 = vsel %vm705, %v1513, inf
        %v1522 = vsel %vm705, %v1514, inf
        %v1523 = vsel %vm705, %v1515, inf
        %v1524 = vsel %vm705, %v1516, inf
        %v1525 = vmin.f32 %v1520, %v1524
        %v1526 = vsel %vm705, %v1517, inf
        %v1527 = vmin.f32 %v1521, %v1526
        %v1528 = vsel %vm705, %v1518, inf
        %v1529 = vmin.f32 %v1522, %v1528
        %v1530 = vsel %vm705, %v1519, inf
        %v1531 = vmin.f32 %v1523, %v1530
        %v1532 = vmin.f32 %v1525, %v1527
        %v1533 = vmin.f32 %v1529, %v1531
        %v1534 = vmin.f32 %v1532, %v1533
        %v1535 = vrot.slane %v1534, 4
        %v1536 = vmin.f32 %v1534, %v1535
        %v1537 = vrot.slane %v1536, 2
        %v1538 = vmin.f32 %v1536, %v1537
        %v1539 = vrot.slane %v1538, 1
        %v1540 = vmin.f32 %v1538, %v1539
        %vm1541 = vcmp.gt.f32.partialorder %v673, %v1540
        %vm1542 = vcmp.gt.f32.partialorder %v674, %v1540
        %vm1543 = vcmp.gt.f32.partialorder %v675, %v1540
        %vm1544 = vcmp.gt.f32.partialorder %v676, %v1540
        %vm1545 = vcmp.gt.f32.partialorder %v677, %v1540
        %vm1546 = vcmp.gt.f32.partialorder %v678, %v1540
        %vm1547 = vcmp.gt.f32.partialorder %v679, %v1540
        %vm1548 = vcmp.gt.f32.partialorder %v680, %v1540
        %v1549 = vsel %vm1541, %v673, 3e+38
        %v1550 = vsel %vm1542, %v674, 3e+38
        %v1551 = vsel %vm1543, %v675, 3e+38
        %v1552 = vsel %vm1544, %v676, 3e+38
        %v1553 = vsel %vm1545, %v677, 3e+38
        %v1554 = vsel %vm1546, %v678, 3e+38
        %v1555 = vsel %vm1547, %v679, 3e+38
        %v1556 = vsel %vm1548, %v680, 3e+38
        %v1557 = vsel %vm705, %v1549, inf
        %v1558 = vsel %vm705, %v1550, inf
        %v1559 = vsel %vm705, %v1551, inf
        %v1560 = vsel %vm705, %v1552, inf
        %v1561 = vsel %vm705, %v1553, inf
        %v1562 = vmin.f32 %v1557, %v1561
        %v1563 = vsel %vm705, %v1554, inf
        %v1564 = vmin.f32 %v1558, %v1563
        %v1565 = vsel %vm705, %v1555, inf
        %v1566 = vmin.f32 %v1559, %v1565
        %v1567 = vsel %vm705, %v1556, inf
        %v1568 = vmin.f32 %v1560, %v1567
        %v1569 = vmin.f32 %v1562, %v1564
        %v1570 = vmin.f32 %v1566, %v1568
        %v1571 = vmin.f32 %v1569, %v1570
        %v1572 = vrot.slane %v1571, 4
        %v1573 = vmin.f32 %v1571, %v1572
        %v1574 = vrot.slane %v1573, 2
        %v1575 = vmin.f32 %v1573, %v1574
        %v1576 = vrot.slane %v1575, 1
        %v1577 = vmin.f32 %v1575, %v1576
        %vm1578 = vcmp.gt.f32.partialorder %v673, %v1577
        %vm1579 = vcmp.gt.f32.partialorder %v674, %v1577
        %vm1580 = vcmp.gt.f32.partialorder %v675, %v1577
        %vm1581 = vcmp.gt.f32.partialorder %v676, %v1577
        %vm1582 = vcmp.gt.f32.partialorder %v677, %v1577
        %vm1583 = vcmp.gt.f32.partialorder %v678, %v1577
        %vm1584 = vcmp.gt.f32.partialorder %v679, %v1577
        %vm1585 = vcmp.gt.f32.partialorder %v680, %v1577
        %v1586 = vsel %vm1578, %v673, 3e+38
        %v1587 = vsel %vm1579, %v674, 3e+38
        %v1588 = vsel %vm1580, %v675, 3e+38
        %v1589 = vsel %vm1581, %v676, 3e+38
        %v1590 = vsel %vm1582, %v677, 3e+38
        %v1591 = vsel %vm1583, %v678, 3e+38
        %v1592 = vsel %vm1584, %v679, 3e+38
        %v1593 = vsel %vm1585, %v680, 3e+38
        %v1594 = vsel %vm705, %v1586, inf
        %v1595 = vsel %vm705, %v1587, inf
        %v1596 = vsel %vm705, %v1588, inf
        %v1597 = vsel %vm705, %v1589, inf
        %v1598 = vsel %vm705, %v1590, inf
        %v1599 = vmin.f32 %v1594, %v1598
        %v1600 = vsel %vm705, %v1591, inf
        %v1601 = vmin.f32 %v1595, %v1600
        %v1602 = vsel %vm705, %v1592, inf
        %v1603 = vmin.f32 %v1596, %v1602
        %v1604 = vsel %vm705, %v1593, inf
        %v1605 = vmin.f32 %v1597, %v1604
        %v1606 = vmin.f32 %v1599, %v1601
        %v1607 = vmin.f32 %v1603, %v1605
        %v1608 = vmin.f32 %v1606, %v1607
        %v1609 = vrot.slane %v1608, 4
        %v1610 = vmin.f32 %v1608, %v1609
        %v1611 = vrot.slane %v1610, 2
        %v1612 = vmin.f32 %v1610, %v1611
        %v1613 = vrot.slane %v1612, 1
        %v1614 = vmin.f32 %v1612, %v1613
        %vm1615 = vcmp.gt.f32.partialorder %v673, %v1614
        %vm1616 = vcmp.gt.f32.partialorder %v674, %v1614
        %vm1617 = vcmp.gt.f32.partialorder %v675, %v1614
        %vm1618 = vcmp.gt.f32.partialorder %v676, %v1614
        %vm1619 = vcmp.gt.f32.partialorder %v677, %v1614
        %vm1620 = vcmp.gt.f32.partialorder %v678, %v1614
        %vm1621 = vcmp.gt.f32.partialorder %v679, %v1614
        %vm1622 = vcmp.gt.f32.partialorder %v680, %v1614
        %v1623 = vsel %vm1615, %v673, 3e+38
        %v1624 = vsel %vm1616, %v674, 3e+38
        %v1625 = vsel %vm1617, %v675, 3e+38
        %v1626 = vsel %vm1618, %v676, 3e+38
        %v1627 = vsel %vm1619, %v677, 3e+38
        %v1628 = vsel %vm1620, %v678, 3e+38
        %v1629 = vsel %vm1621, %v679, 3e+38
        %v1630 = vsel %vm1622, %v680, 3e+38
        %v1631 = vsel %vm705, %v1623, inf
        %v1632 = vsel %vm705, %v1624, inf
        %v1633 = vsel %vm705, %v1625, inf
        %v1634 = vsel %vm705, %v1626, inf
        %v1635 = vsel %vm705, %v1627, inf
        %v1636 = vmin.f32 %v1631, %v1635
        %v1637 = vsel %vm705, %v1628, inf
        %v1638 = vmin.f32 %v1632, %v1637
        %v1639 = vsel %vm705, %v1629, inf
        %v1640 = vmin.f32 %v1633, %v1639
        %v1641 = vsel %vm705, %v1630, inf
        %v1642 = vmin.f32 %v1634, %v1641
        %v1643 = vmin.f32 %v1636, %v1638
        %v1644 = vmin.f32 %v1640, %v1642
        %v1645 = vmin.f32 %v1643, %v1644
        %v1646 = vrot.slane %v1645, 4
        %v1647 = vmin.f32 %v1645, %v1646
        %v1648 = vrot.slane %v1647, 2
        %v1649 = vmin.f32 %v1647, %v1648
        %v1650 = vrot.slane %v1649, 1
        %v1651 = vmin.f32 %v1649, %v1650
        %vm1652 = vcmp.gt.f32.partialorder %v673, %v1651
        %vm1653 = vcmp.gt.f32.partialorder %v674, %v1651
        %vm1654 = vcmp.gt.f32.partialorder %v675, %v1651
        %vm1655 = vcmp.gt.f32.partialorder %v676, %v1651
        %vm1656 = vcmp.gt.f32.partialorder %v677, %v1651
        %vm1657 = vcmp.gt.f32.partialorder %v678, %v1651
        %vm1658 = vcmp.gt.f32.partialorder %v679, %v1651
        %vm1659 = vcmp.gt.f32.partialorder %v680, %v1651
        %v1660 = vsel %vm1652, %v673, 3e+38
        %v1661 = vsel %vm1653, %v674, 3e+38
        %v1662 = vsel %vm1654, %v675, 3e+38
        %v1663 = vsel %vm1655, %v676, 3e+38
        %v1664 = vsel %vm1656, %v677, 3e+38
        %v1665 = vsel %vm1657, %v678, 3e+38
        %v1666 = vsel %vm1658, %v679, 3e+38
        %v1667 = vsel %vm1659, %v680, 3e+38
        %v1668 = vsel %vm705, %v1660, inf
        %v1669 = vsel %vm705, %v1661, inf
        %v1670 = vsel %vm705, %v1662, inf
        %v1671 = vsel %vm705, %v1663, inf
        %v1672 = vsel %vm705, %v1664, inf
        %v1673 = vmin.f32 %v1668, %v1672
        %v1674 = vsel %vm705, %v1665, inf
        %v1675 = vmin.f32 %v1669, %v1674
        %v1676 = vsel %vm705, %v1666, inf
        %v1677 = vmin.f32 %v1670, %v1676
        %v1678 = vsel %vm705, %v1667, inf
        %v1679 = vmin.f32 %v1671, %v1678
        %v1680 = vmin.f32 %v1673, %v1675
        %v1681 = vmin.f32 %v1677, %v1679
        %v1682 = vmin.f32 %v1680, %v1681
        %v1683 = vrot.slane %v1682, 4
        %v1684 = vmin.f32 %v1682, %v1683
        %v1685 = vrot.slane %v1684, 2
        %v1686 = vmin.f32 %v1684, %v1685
        %v1687 = vrot.slane %v1686, 1
        %v1688 = vmin.f32 %v1686, %v1687
        %vm1689 = vcmp.gt.f32.partialorder %v673, %v1688
        %vm1690 = vcmp.gt.f32.partialorder %v674, %v1688
        %vm1691 = vcmp.gt.f32.partialorder %v675, %v1688
        %vm1692 = vcmp.gt.f32.partialorder %v676, %v1688
        %vm1693 = vcmp.gt.f32.partialorder %v677, %v1688
        %vm1694 = vcmp.gt.f32.partialorder %v678, %v1688
        %vm1695 = vcmp.gt.f32.partialorder %v679, %v1688
        %vm1696 = vcmp.gt.f32.partialorder %v680, %v1688
        %v1697 = vsel %vm1689, %v673, 3e+38
        %v1698 = vsel %vm1690, %v674, 3e+38
        %v1699 = vsel %vm1691, %v675, 3e+38
        %v1700 = vsel %vm1692, %v676, 3e+38
        %v1701 = vsel %vm1693, %v677, 3e+38
        %v1702 = vsel %vm1694, %v678, 3e+38
        %v1703 = vsel %vm1695, %v679, 3e+38
        %v1704 = vsel %vm1696, %v680, 3e+38
        %v1705 = vsel %vm705, %v1697, inf
        %v1706 = vsel %vm705, %v1698, inf
        %v1707 = vsel %vm705, %v1699, inf
        %v1708 = vsel %vm705, %v1700, inf
        %v1709 = vsel %vm705, %v1701, inf
        %v1710 = vmin.f32 %v1705, %v1709
        %v1711 = vsel %vm705, %v1702, inf
        %v1712 = vmin.f32 %v1706, %v1711
        %v1713 = vsel %vm705, %v1703, inf
        %v1714 = vmin.f32 %v1707, %v1713
        %v1715 = vsel %vm705, %v1704, inf
        %v1716 = vmin.f32 %v1708, %v1715
        %v1717 = vmin.f32 %v1710, %v1712
        %v1718 = vmin.f32 %v1714, %v1716
        %v1719 = vmin.f32 %v1717, %v1718
        %v1720 = vrot.slane %v1719, 4
        %v1721 = vmin.f32 %v1719, %v1720
        %v1722 = vrot.slane %v1721, 2
        %v1723 = vmin.f32 %v1721, %v1722
        %v1724 = vrot.slane %v1723, 1
        %v1725 = vmin.f32 %v1723, %v1724
        %vm1726 = vcmp.gt.f32.partialorder %v673, %v1725
        %vm1727 = vcmp.gt.f32.partialorder %v674, %v1725
        %vm1728 = vcmp.gt.f32.partialorder %v675, %v1725
        %vm1729 = vcmp.gt.f32.partialorder %v676, %v1725
        %vm1730 = vcmp.gt.f32.partialorder %v677, %v1725
        %vm1731 = vcmp.gt.f32.partialorder %v678, %v1725
        %vm1732 = vcmp.gt.f32.partialorder %v679, %v1725
        %vm1733 = vcmp.gt.f32.partialorder %v680, %v1725
        %v1734 = vsel %vm1726, %v673, 3e+38
        %v1735 = vsel %vm1727, %v674, 3e+38
        %v1736 = vsel %vm1728, %v675, 3e+38
        %v1737 = vsel %vm1729, %v676, 3e+38
        %v1738 = vsel %vm1730, %v677, 3e+38
        %v1739 = vsel %vm1731, %v678, 3e+38
        %v1740 = vsel %vm1732, %v679, 3e+38
        %v1741 = vsel %vm1733, %v680, 3e+38
        %v1742 = vsel %vm705, %v1734, inf
        %v1743 = vsel %vm705, %v1735, inf
        %v1744 = vsel %vm705, %v1736, inf
        %v1745 = vsel %vm705, %v1737, inf
        %v1746 = vsel %vm705, %v1738, inf
        %v1747 = vmin.f32 %v1742, %v1746
        %v1748 = vsel %vm705, %v1739, inf
        %v1749 = vmin.f32 %v1743, %v1748
        %v1750 = vsel %vm705, %v1740, inf
        %v1751 = vmin.f32 %v1744, %v1750
        %v1752 = vsel %vm705, %v1741, inf
        %v1753 = vmin.f32 %v1745, %v1752
        %v1754 = vmin.f32 %v1747, %v1749
        %v1755 = vmin.f32 %v1751, %v1753
        %v1756 = vmin.f32 %v1754, %v1755
        %v1757 = vrot.slane %v1756, 4
        %v1758 = vmin.f32 %v1756, %v1757
        %v1759 = vrot.slane %v1758, 2
        %v1760 = vmin.f32 %v1758, %v1759
        %v1761 = vrot.slane %v1760, 1
        %v1762 = vmin.f32 %v1760, %v1761
        %vm1763 = vcmp.gt.f32.partialorder %v673, %v1762
        %vm1764 = vcmp.gt.f32.partialorder %v674, %v1762
        %vm1765 = vcmp.gt.f32.partialorder %v675, %v1762
        %vm1766 = vcmp.gt.f32.partialorder %v676, %v1762
        %vm1767 = vcmp.gt.f32.partialorder %v677, %v1762
        %vm1768 = vcmp.gt.f32.partialorder %v678, %v1762
        %vm1769 = vcmp.gt.f32.partialorder %v679, %v1762
        %vm1770 = vcmp.gt.f32.partialorder %v680, %v1762
        %v1771 = vsel %vm1763, %v673, 3e+38
        %v1772 = vsel %vm1764, %v674, 3e+38
        %v1773 = vsel %vm1765, %v675, 3e+38
        %v1774 = vsel %vm1766, %v676, 3e+38
        %v1775 = vsel %vm1767, %v677, 3e+38
        %v1776 = vsel %vm1768, %v678, 3e+38
        %v1777 = vsel %vm1769, %v679, 3e+38
        %v1778 = vsel %vm1770, %v680, 3e+38
        %v1779 = vsel %vm705, %v1771, inf
        %v1780 = vsel %vm705, %v1772, inf
        %v1781 = vsel %vm705, %v1773, inf
        %v1782 = vsel %vm705, %v1774, inf
        %v1783 = vsel %vm705, %v1775, inf
        %v1784 = vmin.f32 %v1779, %v1783
        %v1785 = vsel %vm705, %v1776, inf
        %v1786 = vmin.f32 %v1780, %v1785
        %v1787 = vsel %vm705, %v1777, inf
        %v1788 = vmin.f32 %v1781, %v1787
        %v1789 = vsel %vm705, %v1778, inf
        %v1790 = vmin.f32 %v1782, %v1789
        %v1791 = vmin.f32 %v1784, %v1786
        %v1792 = vmin.f32 %v1788, %v1790
        %v1793 = vmin.f32 %v1791, %v1792
        %v1794 = vrot.slane %v1793, 4
        %v1795 = vmin.f32 %v1793, %v1794
        %v1796 = vrot.slane %v1795, 2
        %v1797 = vmin.f32 %v1795, %v1796
        %v1798 = vrot.slane %v1797, 1
        %v1799 = vmin.f32 %v1797, %v1798
        %vm1800 = vcmp.gt.f32.partialorder %v673, %v1799
        %vm1801 = vcmp.gt.f32.partialorder %v674, %v1799
        %vm1802 = vcmp.gt.f32.partialorder %v675, %v1799
        %vm1803 = vcmp.gt.f32.partialorder %v676, %v1799
        %vm1804 = vcmp.gt.f32.partialorder %v677, %v1799
        %vm1805 = vcmp.gt.f32.partialorder %v678, %v1799
        %vm1806 = vcmp.gt.f32.partialorder %v679, %v1799
        %vm1807 = vcmp.gt.f32.partialorder %v680, %v1799
        %v1808 = vsel %vm1800, %v673, 3e+38
        %v1809 = vsel %vm1801, %v674, 3e+38
        %v1810 = vsel %vm1802, %v675, 3e+38
        %v1811 = vsel %vm1803, %v676, 3e+38
        %v1812 = vsel %vm1804, %v677, 3e+38
        %v1813 = vsel %vm1805, %v678, 3e+38
        %v1814 = vsel %vm1806, %v679, 3e+38
        %v1815 = vsel %vm1807, %v680, 3e+38
        %v1816 = vsel %vm705, %v1808, inf
        %v1817 = vsel %vm705, %v1809, inf
        %v1818 = vsel %vm705, %v1810, inf
        %v1819 = vsel %vm705, %v1811, inf
        %v1820 = vsel %vm705, %v1812, inf
        %v1821 = vmin.f32 %v1816, %v1820
        %v1822 = vsel %vm705, %v1813, inf
        %v1823 = vmin.f32 %v1817, %v1822
        %v1824 = vsel %vm705, %v1814, inf
        %v1825 = vmin.f32 %v1818, %v1824
        %v1826 = vsel %vm705, %v1815, inf
        %v1827 = vmin.f32 %v1819, %v1826
        %v1828 = vmin.f32 %v1821, %v1823
        %v1829 = vmin.f32 %v1825, %v1827
        %v1830 = vmin.f32 %v1828, %v1829
        %v1831 = vrot.slane %v1830, 4
        %v1832 = vmin.f32 %v1830, %v1831
        %v1833 = vrot.slane %v1832, 2
        %v1834 = vmin.f32 %v1832, %v1833
        %v1835 = vrot.slane %v1834, 1
        %v1836 = vmin.f32 %v1834, %v1835
        %vm1837 = vcmp.gt.f32.partialorder %v673, %v1836
        %vm1838 = vcmp.gt.f32.partialorder %v674, %v1836
        %vm1839 = vcmp.gt.f32.partialorder %v675, %v1836
        %vm1840 = vcmp.gt.f32.partialorder %v676, %v1836
        %vm1841 = vcmp.gt.f32.partialorder %v677, %v1836
        %vm1842 = vcmp.gt.f32.partialorder %v678, %v1836
        %vm1843 = vcmp.gt.f32.partialorder %v679, %v1836
        %vm1844 = vcmp.gt.f32.partialorder %v680, %v1836
        %v1845 = vsel %vm1837, %v673, 3e+38
        %v1846 = vsel %vm1838, %v674, 3e+38
        %v1847 = vsel %vm1839, %v675, 3e+38
        %v1848 = vsel %vm1840, %v676, 3e+38
        %v1849 = vsel %vm1841, %v677, 3e+38
        %v1850 = vsel %vm1842, %v678, 3e+38
        %v1851 = vsel %vm1843, %v679, 3e+38
        %v1852 = vsel %vm1844, %v680, 3e+38
        %v1853 = vsel %vm705, %v1845, inf
        %v1854 = vsel %vm705, %v1846, inf
        %v1855 = vsel %vm705, %v1847, inf
        %v1856 = vsel %vm705, %v1848, inf
        %v1857 = vsel %vm705, %v1849, inf
        %v1858 = vmin.f32 %v1853, %v1857
        %v1859 = vsel %vm705, %v1850, inf
        %v1860 = vmin.f32 %v1854, %v1859
        %v1861 = vsel %vm705, %v1851, inf
        %v1862 = vmin.f32 %v1855, %v1861
        %v1863 = vsel %vm705, %v1852, inf
        %v1864 = vmin.f32 %v1856, %v1863
        %v1865 = vmin.f32 %v1858, %v1860
        %v1866 = vmin.f32 %v1862, %v1864
        %v1867 = vmin.f32 %v1865, %v1866
        %v1868 = vrot.slane %v1867, 4
        %v1869 = vmin.f32 %v1867, %v1868
        %v1870 = vrot.slane %v1869, 2
        %v1871 = vmin.f32 %v1869, %v1870
        %v1872 = vrot.slane %v1871, 1
        %v1873 = vmin.f32 %v1871, %v1872
        %vm1874 = vcmp.le.f32.partialorder %v673, %v1873
        %vm1875 = vcmp.le.f32.partialorder %v674, %v1873
        %vm1876 = vcmp.le.f32.partialorder %v675, %v1873
        %vm1877 = vcmp.le.f32.partialorder %v676, %v1873
        %vm1878 = vcmp.le.f32.partialorder %v677, %v1873
        %vm1879 = vcmp.le.f32.partialorder %v678, %v1873
        %vm1880 = vcmp.le.f32.partialorder %v679, %v1873
        %vm1881 = vcmp.le.f32.partialorder %v680, %v1873
        %v1882 = vsel %vm1874, 1, 0
        %v1883 = vsel %vm1875, 1, 0
        %v1884 = vsel %vm1876, 1, 0
        %v1885 = vsel %vm1877, 1, 0
        %v1886 = vsel %vm1878, 1, 0
        %v1887 = vsel %vm1879, 1, 0
        %v1888 = vsel %vm1880, 1, 0
        %v1889 = vsel %vm1881, 1, 0
        %v1890 = vcvt.s32.f32 %v1882
        %v1891 = vcvt.s32.f32 %v1883
        %v1892 = vcvt.s32.f32 %v1884
        %v1893 = vcvt.s32.f32 %v1885
        %v1894 = vcvt.s32.f32 %v1886
        %v1895 = vcvt.s32.f32 %v1887
        %v1896 = vcvt.s32.f32 %v1888
        %v1897 = vcvt.s32.f32 %v1889
        %1898 = vst.msk [vmem:[#allocation3] sm:$0x1] %vm193, %v257
        %vm1899 = vcmask 517121
        %1900 = vst.msk [vmem:[#allocation3] sm:$0x2] %vm1899, %v259
        %vm1901 = vcmask 518146
        %1902 = vst.msk [vmem:[#allocation3] sm:$0x4] %vm1901, %v261
        %1903 = vst.msk [vmem:[#allocation3 + $0x3] sm:$0x1] %vm193, %v452
        %v1905 = vrot.slane %v259, 1
        %v1907 = vmul.f32 %v257, %v1905
        %1908 = vst.msk [vmem:[#allocation3 + $0x4] sm:$0x1] %vm193, %v1907
        %v1910 = vrot.slane %v261, 2
        %v1912 = vmul.f32 %v257, %v1910
        %1913 = vst.msk [vmem:[#allocation3 + $0x5] sm:$0x1] %vm193, %v1912
        %1914 = vst.msk [vmem:[#allocation3 + $0x5] sm:$0x2] %vm1899, %v453
        %v1915 = vrot.slane %v261, 1
        %v1917 = vmul.f32 %v259, %v1915
        %1918 = vst.msk [vmem:[#allocation3 + $0x6] sm:$0x2] %vm1899, %v1917
        %1919 = vst.msk [vmem:[#allocation3 + $0x6] sm:$0x4] %vm1901, %v458
        %vm1920 = vcmask 522240
        %1921 = vst.msk [vmem:[#allocation3 + $0x9] sm:$0x7f] %vm1920, 0.0
        %v1922 = vld [vmem:[#allocation3] sm:$0xff]
        %v1923 = vld [vmem:[#allocation3 + $0x8] sm:$0xff]
        %v1925 = vsel %vm705, %v1922, 0
        %v1928 = vsel %vm705, %v1923, 0
        %1930 = vmatpush.msra.mxu0 0.0
        %1931 = vmatpush.msra.mxu0 0.0
        %1932 = vmatpush.msra.mxu0 0.0
        %1933 = vmatpush.msra.mxu0 0.0
        %1934 = vmatpush.msra.mxu0 0.0
        %1935 = vmatpush.msra.mxu0 0.0
        %1936 = vmatpush.msra.mxu0 0.0
        %1937 = vmatpush.msra.mxu0 0.0
        %1938 = vmatpush.msra.mxu0 %v1897
        %1939 = vmatpush.msra.mxu0 %v1896
        %1940 = vmatpush.msra.mxu0 %v1895
        %1941 = vmatpush.msra.mxu0 %v1894
        %1942 = vmatpush.msra.mxu0 %v1893
        %1943 = vmatpush.msra.mxu0 %v1892
        %1944 = vmatpush.msra.mxu0 %v1891
        %1945 = vmatpush.msra.mxu0 %v1890
        %1946 = vmatmul.f32.gmra.mxu0 %v1925
        %v1947 = vpop.f32.mrf.mxu0
        %v1948 = vadd.f32 0.0, %v1947
        %1949 = vmatmul.f32.gmra.mxu0 %v1928
        %v1950 = vpop.f32.mrf.mxu0
        %v1951 = vadd.f32 0.0, %v1950
        %1952 = vdwg.mxu0
        %v1953 = vmul.f32 %v1948, 0.03125
        %v1954 = vmul.f32 %v1951, 0.03125
        %v1955 = vmul.f32 %v1953, %v1953
        %v1957 = vrot.slane %v1955, 5
        %v1959 = vsub.f32 %v1953, %v1957
        %v1961 = vrot.slane %v1953, 1
        %v1963 = vmul.f32 %v1953, %v1961
        %v1965 = vrot.slane %v1963, 4
        %v1967 = vsub.f32 %v1953, %v1965
        %v1968 = vrot.slane %v1953, 2
        %v1970 = vmul.f32 %v1953, %v1968
        %v1972 = vrot.slane %v1970, 3
        %v1974 = vsub.f32 %v1953, %v1972
        %v1975 = vrot.slane %v1955, 3
        %v1977 = vsub.f32 %v1953, %v1975
        %v1978 = vrot.slane %v1963, 2
        %v1980 = vsub.f32 %v1953, %v1978
        %v1981 = vrot.slane %v1955, 2
        %v1983 = vsub.f32 %v1954, %v1981
        %v1985 = vrot.slane %v1983, 2
        %v1987 = vmul.f32 %v1977, %v1985
        %v1988 = vmul.f32 %v1980, %v1980
        %v1990 = vrot.slane %v1988, 1
        %v1992 = vsub.f32 %v1987, %v1990
        %v1994 = vrot.slane %v1980, 2
        %v1996 = vmul.f32 %v1974, %v1994
        %v1997 = vrot.slane %v1983, 4
        %v1999 = vmul.f32 %v1967, %v1997
        %v2001 = vrot.slane %v1999, 7
        %v2003 = vsub.f32 %v1996, %v2001
        %v2004 = vrot.slane %v1980, 3
        %v2006 = vmul.f32 %v1967, %v2004
        %v2008 = vrot.slane %v1977, 1
        %v2010 = vmul.f32 %v1974, %v2008
        %v2012 = vrot.slane %v2010, 1
        %v2014 = vsub.f32 %v2006, %v2012
        %v2015 = vrot.slane %v1983, 5
        %v2017 = vmul.f32 %v1959, %v2015
        %v2018 = vmul.f32 %v1974, %v1974
        %v2020 = vrot.slane %v2018, 2
        %v2022 = vsub.f32 %v2017, %v2020
        %v2024 = vrot.slane %v1974, 1
        %v2026 = vmul.f32 %v1967, %v2024
        %v2027 = vrot.slane %v1980, 4
        %v2029 = vmul.f32 %v1959, %v2027
        %v2031 = vrot.slane %v2029, 7
        %v2033 = vsub.f32 %v2026, %v2031
        %v2034 = vrot.slane %v1977, 3
        %v2036 = vmul.f32 %v1959, %v2034
        %v2037 = vmul.f32 %v1967, %v1967
        %v2039 = vrot.slane %v2037, 1
        %v2041 = vsub.f32 %v2036, %v2039
        %v2042 = vand.u32 2147483647, %v1992
        %v2043 = vand.u32 2147483647, %v2003
        %v2045 = vrot.slane %v2043, 7
        %v2047 = vadd.f32 %v2042, %v2045
        %v2048 = vand.u32 2147483647, %v2014
        %v2050 = vrot.slane %v2048, 6
        %v2052 = vadd.f32 %v2047, %v2050
        %v2053 = vand.u32 2147483647, %v2022
        %v2055 = vrot.slane %v2053, 5
        %v2057 = vadd.f32 %v2052, %v2055
        %v2058 = vand.u32 2147483647, %v2033
        %v2060 = vrot.slane %v2058, 6
        %v2062 = vadd.f32 %v2057, %v2060
        %v2063 = vand.u32 2147483647, %v2041
        %v2065 = vrot.slane %v2063, 5
        %v2067 = vadd.f32 %v2062, %v2065
        %v2068 = vadd.f32 %v2067, 1e-30
        %v2069 = vrcp.pop %v2068
        %v2070 = vmul.f32 %v1992, %v2069
        %v2072 = vrot.slane %v2069, 1
        %v2074 = vmul.f32 %v2003, %v2072
        %v2075 = vrot.slane %v2069, 2
        %v2077 = vmul.f32 %v2014, %v2075
        %v2078 = vrot.slane %v2069, 3
        %v2080 = vmul.f32 %v2022, %v2078
        %v2081 = vmul.f32 %v2033, %v2075
        %v2082 = vmul.f32 %v2041, %v2078
        %v2083 = vmul.f32 %v2070, %v2070
        %v2084 = vmul.f32 %v2074, %v2074
        %v2086 = vrot.slane %v2084, 7
        %v2088 = vadd.f32 %v2083, %v2086
        %v2089 = vmul.f32 %v2077, %v2077
        %v2091 = vrot.slane %v2089, 6
        %v2093 = vadd.f32 %v2088, %v2091
        %v2095 = vrot.slane %v2074, 7
        %v2097 = vmul.f32 %v2070, %v2095
        %v2099 = vrot.slane %v2080, 6
        %v2101 = vmul.f32 %v2074, %v2099
        %v2103 = vrot.slane %v2101, 7
        %v2105 = vadd.f32 %v2097, %v2103
        %v2106 = vmul.f32 %v2077, %v2081
        %v2108 = vrot.slane %v2106, 6
        %v2110 = vadd.f32 %v2105, %v2108
        %v2112 = vrot.slane %v2077, 6
        %v2114 = vmul.f32 %v2070, %v2112
        %v2116 = vrot.slane %v2081, 7
        %v2118 = vmul.f32 %v2074, %v2116
        %v2120 = vrot.slane %v2118, 7
        %v2122 = vadd.f32 %v2114, %v2120
        %v2124 = vrot.slane %v2082, 7
        %v2126 = vmul.f32 %v2077, %v2124
        %v2128 = vrot.slane %v2126, 6
        %v2130 = vadd.f32 %v2122, %v2128
        %v2131 = vmul.f32 %v2080, %v2080
        %v2133 = vrot.slane %v2131, 6
        %v2135 = vadd.f32 %v2084, %v2133
        %v2136 = vmul.f32 %v2081, %v2081
        %v2138 = vrot.slane %v2136, 7
        %v2140 = vadd.f32 %v2135, %v2138
        %v2141 = vrot.slane %v2077, 7
        %v2143 = vmul.f32 %v2074, %v2141
        %v2144 = vrot.slane %v2081, 1
        %v2146 = vmul.f32 %v2080, %v2144
        %v2148 = vrot.slane %v2146, 6
        %v2150 = vadd.f32 %v2143, %v2148
        %v2151 = vmul.f32 %v2081, %v2124
        %v2153 = vrot.slane %v2151, 7
        %v2155 = vadd.f32 %v2150, %v2153
        %v2156 = vadd.f32 %v2089, %v2136
        %v2157 = vmul.f32 %v2082, %v2082
        %v2159 = vrot.slane %v2157, 7
        %v2161 = vadd.f32 %v2156, %v2159
        %v2163 = vrot.slane %v2140, 7
        %v2165 = vadd.f32 %v2093, %v2163
        %v2167 = vrot.slane %v2161, 6
        %v2169 = vadd.f32 %v2165, %v2167
        %v2170 = vadd.f32 %v2169, 1e-30
        %v2171 = vrcp.pop %v2170
        %v2172 = vmul.f32 %v2093, %v2171
        %v2173 = vmul.f32 %v2110, %v2171
        %v2174 = vmul.f32 %v2130, %v2171
        %v2176 = vrot.slane %v2171, 1
        %v2178 = vmul.f32 %v2140, %v2176
        %v2179 = vmul.f32 %v2155, %v2176
        %v2180 = vrot.slane %v2171, 2
        %v2182 = vmul.f32 %v2161, %v2180
        %v2183 = vmul.f32 %v2172, %v2172
        %v2184 = vmul.f32 %v2173, %v2173
        %v2185 = vadd.f32 %v2183, %v2184
        %v2186 = vmul.f32 %v2174, %v2174
        %v2187 = vadd.f32 %v2185, %v2186
        %v2188 = vmul.f32 %v2172, %v2173
        %v2190 = vrot.slane %v2178, 7
        %v2192 = vmul.f32 %v2173, %v2190
        %v2193 = vadd.f32 %v2188, %v2192
        %v2195 = vrot.slane %v2179, 7
        %v2197 = vmul.f32 %v2174, %v2195
        %v2198 = vadd.f32 %v2193, %v2197
        %v2199 = vmul.f32 %v2172, %v2174
        %v2200 = vmul.f32 %v2173, %v2195
        %v2201 = vadd.f32 %v2199, %v2200
        %v2203 = vrot.slane %v2182, 6
        %v2205 = vmul.f32 %v2174, %v2203
        %v2206 = vadd.f32 %v2201, %v2205
        %v2207 = vmul.f32 %v2178, %v2178
        %v2209 = vrot.slane %v2207, 7
        %v2211 = vadd.f32 %v2184, %v2209
        %v2212 = vmul.f32 %v2179, %v2179
        %v2214 = vrot.slane %v2212, 7
        %v2216 = vadd.f32 %v2211, %v2214
        %v2217 = vmul.f32 %v2173, %v2174
        %v2218 = vmul.f32 %v2178, %v2179
        %v2220 = vrot.slane %v2218, 7
        %v2222 = vadd.f32 %v2217, %v2220
        %v2223 = vrot.slane %v2182, 7
        %v2225 = vmul.f32 %v2179, %v2223
        %v2227 = vrot.slane %v2225, 7
        %v2229 = vadd.f32 %v2222, %v2227
        %v2230 = vadd.f32 %v2186, %v2214
        %v2231 = vmul.f32 %v2182, %v2182
        %v2233 = vrot.slane %v2231, 6
        %v2235 = vadd.f32 %v2230, %v2233
        %v2236 = vadd.f32 %v2187, %v2216
        %v2237 = vadd.f32 %v2236, %v2235
        %v2238 = vadd.f32 %v2237, 1e-30
        %v2239 = vrcp.pop %v2238
        %v2240 = vmul.f32 %v2187, %v2239
        %v2241 = vmul.f32 %v2198, %v2239
        %v2242 = vmul.f32 %v2206, %v2239
        %v2243 = vmul.f32 %v2216, %v2239
        %v2244 = vmul.f32 %v2229, %v2239
        %v2245 = vmul.f32 %v2235, %v2239
        %v2246 = vmul.f32 %v2240, %v2240
        %v2247 = vmul.f32 %v2241, %v2241
        %v2248 = vadd.f32 %v2246, %v2247
        %v2249 = vmul.f32 %v2242, %v2242
        %v2250 = vadd.f32 %v2248, %v2249
        %v2251 = vmul.f32 %v2240, %v2241
        %v2252 = vmul.f32 %v2241, %v2243
        %v2253 = vadd.f32 %v2251, %v2252
        %v2254 = vmul.f32 %v2242, %v2244
        %v2255 = vadd.f32 %v2253, %v2254
        %v2256 = vmul.f32 %v2240, %v2242
        %v2257 = vmul.f32 %v2241, %v2244
        %v2258 = vadd.f32 %v2256, %v2257
        %v2259 = vmul.f32 %v2242, %v2245
        %v2260 = vadd.f32 %v2258, %v2259
        %v2261 = vmul.f32 %v2243, %v2243
        %v2262 = vadd.f32 %v2247, %v2261
        %v2263 = vmul.f32 %v2244, %v2244
        %v2264 = vadd.f32 %v2262, %v2263
        %v2265 = vmul.f32 %v2241, %v2242
        %v2266 = vmul.f32 %v2243, %v2244
        %v2267 = vadd.f32 %v2265, %v2266
        %v2268 = vmul.f32 %v2244, %v2245
        %v2269 = vadd.f32 %v2267, %v2268
        %v2270 = vadd.f32 %v2249, %v2263
        %v2271 = vmul.f32 %v2245, %v2245
        %v2272 = vadd.f32 %v2270, %v2271
        %v2273 = vadd.f32 %v2250, %v2264
        %v2274 = vadd.f32 %v2273, %v2272
        %v2275 = vadd.f32 %v2274, 1e-30
        %v2276 = vrcp.pop %v2275
        %v2277 = vmul.f32 %v2250, %v2276
        %v2278 = vmul.f32 %v2255, %v2276
        %v2279 = vmul.f32 %v2260, %v2276
        %v2280 = vmul.f32 %v2264, %v2276
        %v2281 = vmul.f32 %v2269, %v2276
        %v2282 = vmul.f32 %v2272, %v2276
        %v2283 = vmul.f32 %v2277, %v2277
        %v2284 = vmul.f32 %v2278, %v2278
        %v2285 = vadd.f32 %v2283, %v2284
        %v2286 = vmul.f32 %v2279, %v2279
        %v2287 = vadd.f32 %v2285, %v2286
        %v2288 = vmul.f32 %v2277, %v2278
        %v2289 = vmul.f32 %v2278, %v2280
        %v2290 = vadd.f32 %v2288, %v2289
        %v2291 = vmul.f32 %v2279, %v2281
        %v2292 = vadd.f32 %v2290, %v2291
        %v2293 = vmul.f32 %v2277, %v2279
        %v2294 = vmul.f32 %v2278, %v2281
        %v2295 = vadd.f32 %v2293, %v2294
        %v2296 = vmul.f32 %v2279, %v2282
        %v2297 = vadd.f32 %v2295, %v2296
        %v2298 = vmul.f32 %v2280, %v2280
        %v2299 = vadd.f32 %v2284, %v2298
        %v2300 = vmul.f32 %v2281, %v2281
        %v2301 = vadd.f32 %v2299, %v2300
        %v2302 = vmul.f32 %v2278, %v2279
        %v2303 = vmul.f32 %v2280, %v2281
        %v2304 = vadd.f32 %v2302, %v2303
        %v2305 = vmul.f32 %v2281, %v2282
        %v2306 = vadd.f32 %v2304, %v2305
        %v2307 = vadd.f32 %v2286, %v2300
        %v2308 = vmul.f32 %v2282, %v2282
        %v2309 = vadd.f32 %v2307, %v2308
        %v2310 = vadd.f32 %v2287, %v2301
        %v2311 = vadd.f32 %v2310, %v2309
        %v2312 = vadd.f32 %v2311, 1e-30
        %v2313 = vrcp.pop %v2312
        %v2314 = vmul.f32 %v2287, %v2313
        %v2315 = vmul.f32 %v2292, %v2313
        %v2316 = vmul.f32 %v2297, %v2313
        %v2317 = vmul.f32 %v2301, %v2313
        %v2318 = vmul.f32 %v2306, %v2313
        %v2319 = vmul.f32 %v2309, %v2313
        %v2320 = vmul.f32 %v2314, %v2314
        %v2321 = vmul.f32 %v2315, %v2315
        %v2322 = vadd.f32 %v2320, %v2321
        %v2323 = vmul.f32 %v2316, %v2316
        %v2324 = vadd.f32 %v2322, %v2323
        %v2325 = vmul.f32 %v2317, %v2317
        %v2326 = vadd.f32 %v2321, %v2325
        %v2327 = vmul.f32 %v2318, %v2318
        %v2328 = vadd.f32 %v2326, %v2327
        %v2329 = vadd.f32 %v2323, %v2327
        %v2330 = vmul.f32 %v2319, %v2319
        %v2331 = vadd.f32 %v2329, %v2330
        %vm2332 = vcmp.ge.f32.partialorder %v2324, %v2328
        %vm2333 = vcmp.ge.f32.partialorder %v2324, %v2331
        %vm2334 = vmand %vm2332, %vm2333
        %vm2335 = vmxor %vm2334, 1
        %vm2336 = vcmp.ge.f32.partialorder %v2328, %v2331
        %vm2337 = vmand %vm2335, %vm2336
        %v2338 = vsel %vm2337, %v2315, %v2316
        %v2339 = vsel %vm2334, %v2314, %v2338
        %v2340 = vsel %vm2337, %v2317, %v2318
        %v2341 = vsel %vm2334, %v2315, %v2340
        %v2342 = vsel %vm2337, %v2318, %v2319
        %v2343 = vsel %vm2334, %v2316, %v2342
        %v2344 = vmul.f32 %v2339, %v2339
        %v2345 = vmul.f32 %v2341, %v2341
        %v2346 = vadd.f32 %v2344, %v2345
        %v2347 = vmul.f32 %v2343, %v2343
        %v2348 = vadd.f32 %v2346, %v2347
        %v2349 = vadd.f32 %v2348, 1e-30
        %v2350 = vrsqrt.pop %v2349
        %v2351 = vmul.f32 %v2350, %v2349
        %v2352 = vmul.f32 %v2351, %v2350
        %v2353 = vmul.f32 0.5, %v2352
        %v2354 = vsub.f32 1.5, %v2353
        %v2355 = vmul.f32 %v2350, %v2354
        %vm2356 = vweird.f32 %v2349
        %vm2357 = vweird.f32 %v2350
        %vm2358 = vmor %vm2356, %vm2357
        %v2359 = vsel %vm2358, %v2350, %v2355
        %v2360 = vmul.f32 %v2339, %v2359
        %v2361 = vmul.f32 %v2341, %v2359
        %v2362 = vmul.f32 %v2343, %v2359
        %v2364 = vrot.slane %v2360, 3
        %v2366 = vmul.f32 %v1959, %v2364
        %v2367 = vmul.f32 %v2366, %v2364
        %v2368 = vmul.f32 %v1977, %v2361
        %v2369 = vmul.f32 %v2368, %v2361
        %v2371 = vrot.slane %v2369, 3
        %v2373 = vadd.f32 %v2367, %v2371
        %v2375 = vrot.slane %v2362, 6
        %v2377 = vmul.f32 %v1983, %v2375
        %v2378 = vmul.f32 %v2377, %v2375
        %v2380 = vrot.slane %v2378, 5
        %v2382 = vadd.f32 %v2373, %v2380
        %v2383 = vrot.slane %v2360, 2
        %v2385 = vmul.f32 %v1967, %v2383
        %v2387 = vrot.slane %v2361, 2
        %v2389 = vmul.f32 %v2385, %v2387
        %v2390 = vrot.slane %v2360, 1
        %v2392 = vmul.f32 %v1974, %v2390
        %v2393 = vrot.slane %v2362, 1
        %v2395 = vmul.f32 %v2392, %v2393
        %v2397 = vrot.slane %v2395, 1
        %v2399 = vadd.f32 %v2389, %v2397
        %v2400 = vrot.slane %v2361, 7
        %v2402 = vmul.f32 %v1980, %v2400
        %v2403 = vrot.slane %v2362, 7
        %v2405 = vmul.f32 %v2402, %v2403
        %v2407 = vrot.slane %v2405, 3
        %v2409 = vadd.f32 %v2399, %v2407
        %v2410 = vmul.f32 %v2409, 2.0
        %v2412 = vrot.slane %v2410, 1
        %v2414 = vadd.f32 %v2382, %v2412
        %v2415 = vsub.f32 %v1959, %v2414
        %v2417 = vrot.slane %v2414, 5
        %v2419 = vsub.f32 %v1977, %v2417
        %v2420 = vrot.slane %v2414, 3
        %v2422 = vsub.f32 %v1983, %v2420
        %v2424 = vrot.slane %v2422, 2
        %v2426 = vmul.f32 %v2419, %v2424
        %v2427 = vsub.f32 %v2426, %v1990
        %v2428 = vrot.slane %v2422, 4
        %v2430 = vmul.f32 %v1967, %v2428
        %v2432 = vrot.slane %v2430, 7
        %v2434 = vsub.f32 %v1996, %v2432
        %v2436 = vrot.slane %v2419, 1
        %v2438 = vmul.f32 %v1974, %v2436
        %v2440 = vrot.slane %v2438, 1
        %v2442 = vsub.f32 %v2006, %v2440
        %v2443 = vrot.slane %v2422, 5
        %v2445 = vmul.f32 %v2415, %v2443
        %v2446 = vsub.f32 %v2445, %v2020
        %v2447 = vmul.f32 %v2415, %v2027
        %v2449 = vrot.slane %v2447, 7
        %v2451 = vsub.f32 %v2026, %v2449
        %v2452 = vrot.slane %v2419, 3
        %v2454 = vmul.f32 %v2415, %v2452
        %v2455 = vsub.f32 %v2454, %v2039
        %v2456 = vmul.f32 %v2427, %v2360
        %v2457 = vrot.slane %v2361, 1
        %v2459 = vmul.f32 %v2434, %v2457
        %v2461 = vrot.slane %v2459, 7
        %v2463 = vadd.f32 %v2456, %v2461
        %v2464 = vrot.slane %v2362, 2
        %v2466 = vmul.f32 %v2442, %v2464
        %v2468 = vrot.slane %v2466, 6
        %v2470 = vadd.f32 %v2463, %v2468
        %v2471 = vmul.f32 %v2434, %v2390
        %v2472 = vrot.slane %v2361, 3
        %v2474 = vmul.f32 %v2446, %v2472
        %v2476 = vrot.slane %v2474, 6
        %v2478 = vadd.f32 %v2471, %v2476
        %v2479 = vmul.f32 %v2451, %v2464
        %v2481 = vrot.slane %v2479, 7
        %v2483 = vadd.f32 %v2478, %v2481
        %v2484 = vmul.f32 %v2442, %v2383
        %v2485 = vmul.f32 %v2451, %v2387
        %v2486 = vadd.f32 %v2484, %v2485
        %v2487 = vrot.slane %v2362, 3
        %v2489 = vmul.f32 %v2455, %v2487
        %v2491 = vrot.slane %v2489, 7
        %v2493 = vadd.f32 %v2486, %v2491
        %v2494 = vmul.f32 %v2470, %v2470
        %v2495 = vmul.f32 %v2483, %v2483
        %v2497 = vrot.slane %v2495, 7
        %v2499 = vadd.f32 %v2494, %v2497
        %v2500 = vmul.f32 %v2493, %v2493
        %v2502 = vrot.slane %v2500, 6
        %v2504 = vadd.f32 %v2499, %v2502
        %v2505 = vrsqrt.pop %v2504
        %v2506 = vmul.f32 %v2505, %v2504
        %v2507 = vmul.f32 %v2506, %v2505
        %v2508 = vmul.f32 0.5, %v2507
        %v2509 = vsub.f32 1.5, %v2508
        %v2510 = vmul.f32 %v2505, %v2509
        %v2511 = vmul.f32 %v2504, %v2510
        %vm2512 = vcmp.eq.f32.partialorder %v2504, inf
        %v2513 = vsel %vm2512, %v2504, %v2511
        %vm2514 = vcmp.eq.f32.partialorder %v2504, 0.0
        %v2515 = vand.u32 %v2504, 2147483648
        %v2516 = vsel %vm2514, %v2515, %v2513
        %vm2517 = vcmp.gt.f32.partialorder %v2516, 1e-20
        %v2518 = vmax.f32 %v2516, 1e-20
        %v2519 = vrcp.pop %v2518
        %v2520 = vmul.f32 %v2518, %v2519
        %v2521 = vsub.f32 1.0, %v2520
        %v2522 = vmul.f32 %v2519, %v2521
        %v2523 = vadd.f32 %v2519, %v2522
        %vm2524 = vweird.f32 %v2518
        %vm2525 = vweird.f32 %v2519
        %vm2526 = vmor %vm2524, %vm2525
        %v2527 = vsel %vm2526, %v2519, %v2523
        %v2528 = vand.u32 2147483647, %v2518
        %vm2529 = vcmp.eq.f32.partialorder %v2528, 8.507059e+37
        %v2530 = vand.u32 %v2518, 2147483648
        %v2531 = vor.u32 1.1754944e-38, %v2530
        %v2532 = vsel %vm2529, %v2531, %v2527
        %v2533 = vmul.f32 1.0, %v2532
        %v2534 = vmul.f32 %v2470, %v2533
        %v2535 = vsel %vm2517, %v2534, %v2360
        %v2537 = vrot.slane %v2533, 1
        %v2539 = vmul.f32 %v2483, %v2537
        %v2541 = vrot.slane %v2539, 7
        %v2543 = vsel %vm2517, %v2541, %v2361
        %v2544 = vrot.slane %v2533, 2
        %v2546 = vmul.f32 %v2493, %v2544
        %v2548 = vrot.slane %v2546, 6
        %v2550 = vsel %vm2517, %v2548, %v2362
        %v2552 = vrot.slane %v2535, 3
        %v2554 = vmul.f32 %v1959, %v2552
        %v2555 = vmul.f32 %v2554, %v2552
        %v2556 = vmul.f32 %v1977, %v2543
        %v2557 = vmul.f32 %v2556, %v2543
        %v2559 = vrot.slane %v2557, 3
        %v2561 = vadd.f32 %v2555, %v2559
        %v2563 = vrot.slane %v2550, 6
        %v2565 = vmul.f32 %v1983, %v2563
        %v2566 = vmul.f32 %v2565, %v2563
        %v2568 = vrot.slane %v2566, 5
        %v2570 = vadd.f32 %v2561, %v2568
        %v2571 = vrot.slane %v2535, 2
        %v2573 = vmul.f32 %v1967, %v2571
        %v2575 = vrot.slane %v2543, 2
        %v2577 = vmul.f32 %v2573, %v2575
        %v2578 = vrot.slane %v2535, 1
        %v2580 = vmul.f32 %v1974, %v2578
        %v2581 = vrot.slane %v2550, 1
        %v2583 = vmul.f32 %v2580, %v2581
        %v2585 = vrot.slane %v2583, 1
        %v2587 = vadd.f32 %v2577, %v2585
        %v2588 = vrot.slane %v2543, 7
        %v2590 = vmul.f32 %v1980, %v2588
        %v2591 = vrot.slane %v2550, 7
        %v2593 = vmul.f32 %v2590, %v2591
        %v2595 = vrot.slane %v2593, 3
        %v2597 = vadd.f32 %v2587, %v2595
        %v2598 = vmul.f32 %v2597, 2.0
        %v2600 = vrot.slane %v2598, 1
        %v2602 = vadd.f32 %v2570, %v2600
        %v2603 = vsub.f32 %v1959, %v2602
        %v2605 = vrot.slane %v2602, 5
        %v2607 = vsub.f32 %v1977, %v2605
        %v2608 = vrot.slane %v2602, 3
        %v2610 = vsub.f32 %v1983, %v2608
        %v2612 = vrot.slane %v2610, 2
        %v2614 = vmul.f32 %v2607, %v2612
        %v2615 = vsub.f32 %v2614, %v1990
        %v2616 = vrot.slane %v2610, 4
        %v2618 = vmul.f32 %v1967, %v2616
        %v2620 = vrot.slane %v2618, 7
        %v2622 = vsub.f32 %v1996, %v2620
        %v2624 = vrot.slane %v2607, 1
        %v2626 = vmul.f32 %v1974, %v2624
        %v2628 = vrot.slane %v2626, 1
        %v2630 = vsub.f32 %v2006, %v2628
        %v2631 = vrot.slane %v2610, 5
        %v2633 = vmul.f32 %v2603, %v2631
        %v2634 = vsub.f32 %v2633, %v2020
        %v2635 = vmul.f32 %v2603, %v2027
        %v2637 = vrot.slane %v2635, 7
        %v2639 = vsub.f32 %v2026, %v2637
        %v2640 = vrot.slane %v2607, 3
        %v2642 = vmul.f32 %v2603, %v2640
        %v2643 = vsub.f32 %v2642, %v2039
        %v2644 = vmul.f32 %v2615, %v2535
        %v2645 = vrot.slane %v2543, 1
        %v2647 = vmul.f32 %v2622, %v2645
        %v2649 = vrot.slane %v2647, 7
        %v2651 = vadd.f32 %v2644, %v2649
        %v2652 = vrot.slane %v2550, 2
        %v2654 = vmul.f32 %v2630, %v2652
        %v2656 = vrot.slane %v2654, 6
        %v2658 = vadd.f32 %v2651, %v2656
        %v2659 = vmul.f32 %v2622, %v2578
        %v2660 = vrot.slane %v2543, 3
        %v2662 = vmul.f32 %v2634, %v2660
        %v2664 = vrot.slane %v2662, 6
        %v2666 = vadd.f32 %v2659, %v2664
        %v2667 = vmul.f32 %v2639, %v2652
        %v2669 = vrot.slane %v2667, 7
        %v2671 = vadd.f32 %v2666, %v2669
        %v2672 = vmul.f32 %v2630, %v2571
        %v2673 = vmul.f32 %v2639, %v2575
        %v2674 = vadd.f32 %v2672, %v2673
        %v2675 = vrot.slane %v2550, 3
        %v2677 = vmul.f32 %v2643, %v2675
        %v2679 = vrot.slane %v2677, 7
        %v2681 = vadd.f32 %v2674, %v2679
        %v2682 = vmul.f32 %v2658, %v2658
        %v2683 = vmul.f32 %v2671, %v2671
        %v2685 = vrot.slane %v2683, 7
        %v2687 = vadd.f32 %v2682, %v2685
        %v2688 = vmul.f32 %v2681, %v2681
        %v2690 = vrot.slane %v2688, 6
        %v2692 = vadd.f32 %v2687, %v2690
        %v2693 = vrsqrt.pop %v2692
        %v2694 = vmul.f32 %v2693, %v2692
        %v2695 = vmul.f32 %v2694, %v2693
        %v2696 = vmul.f32 0.5, %v2695
        %v2697 = vsub.f32 1.5, %v2696
        %v2698 = vmul.f32 %v2693, %v2697
        %v2699 = vmul.f32 %v2692, %v2698
        %vm2700 = vcmp.eq.f32.partialorder %v2692, inf
        %v2701 = vsel %vm2700, %v2692, %v2699
        %vm2702 = vcmp.eq.f32.partialorder %v2692, 0.0
        %v2703 = vand.u32 %v2692, 2147483648
        %v2704 = vsel %vm2702, %v2703, %v2701
        %vm2705 = vcmp.gt.f32.partialorder %v2704, 1e-20
        %v2706 = vmax.f32 %v2704, 1e-20
        %v2707 = vrcp.pop %v2706
        %v2708 = vmul.f32 %v2706, %v2707
        %v2709 = vsub.f32 1.0, %v2708
        %v2710 = vmul.f32 %v2707, %v2709
        %v2711 = vadd.f32 %v2707, %v2710
        %vm2712 = vweird.f32 %v2706
        %vm2713 = vweird.f32 %v2707
        %vm2714 = vmor %vm2712, %vm2713
        %v2715 = vsel %vm2714, %v2707, %v2711
        %v2716 = vand.u32 2147483647, %v2706
        %vm2717 = vcmp.eq.f32.partialorder %v2716, 8.507059e+37
        %v2718 = vand.u32 %v2706, 2147483648
        %v2719 = vor.u32 1.1754944e-38, %v2718
        %v2720 = vsel %vm2717, %v2719, %v2715
        %v2721 = vmul.f32 1.0, %v2720
        %v2722 = vmul.f32 %v2658, %v2721
        %v2723 = vsel %vm2705, %v2722, %v2535
        %v2725 = vrot.slane %v2721, 1
        %v2727 = vmul.f32 %v2671, %v2725
        %v2729 = vrot.slane %v2727, 7
        %v2731 = vsel %vm2705, %v2729, %v2543
        %v2732 = vrot.slane %v2721, 2
        %v2734 = vmul.f32 %v2681, %v2732
        %v2736 = vrot.slane %v2734, 6
        %v2738 = vsel %vm2705, %v2736, %v2550
        %v2740 = vrot.slane %v257, 2
        %v2742 = vmul.f32 %v2723, %v2740
        %v2743 = vrot.slane %v259, 3
        %v2745 = vmul.f32 %v2731, %v2743
        %v2746 = vadd.f32 %v2742, %v2745
        %v2747 = vrot.slane %v261, 4
        %v2749 = vmul.f32 %v2738, %v2747
        %v2750 = vadd.f32 %v2746, %v2749
        %v2751 = vperm.slane %v2723, 6
        %v2752 = vmul.f32 %v292, %v2751
        %v2753 = vmul.f32 %v297, %v2751
        %v2754 = vmul.f32 %v302, %v2751
        %v2755 = vmul.f32 %v307, %v2751
        %v2756 = vmul.f32 %v312, %v2751
        %v2757 = vmul.f32 %v317, %v2751
        %v2758 = vmul.f32 %v322, %v2751
        %v2759 = vmul.f32 %v327, %v2751
        %v2760 = vperm.slane %v2731, 6
        %v2761 = vmul.f32 %v341, %v2760
        %v2762 = vmul.f32 %v346, %v2760
        %v2763 = vmul.f32 %v351, %v2760
        %v2764 = vmul.f32 %v356, %v2760
        %v2765 = vmul.f32 %v361, %v2760
        %v2766 = vmul.f32 %v366, %v2760
        %v2767 = vmul.f32 %v371, %v2760
        %v2768 = vmul.f32 %v376, %v2760
        %v2769 = vadd.f32 %v2752, %v2761
        %v2770 = vadd.f32 %v2753, %v2762
        %v2771 = vadd.f32 %v2754, %v2763
        %v2772 = vadd.f32 %v2755, %v2764
        %v2773 = vadd.f32 %v2756, %v2765
        %v2774 = vadd.f32 %v2757, %v2766
        %v2775 = vadd.f32 %v2758, %v2767
        %v2776 = vadd.f32 %v2759, %v2768
        %v2777 = vperm.slane %v2738, 6
        %v2778 = vmul.f32 %v398, %v2777
        %v2779 = vmul.f32 %v403, %v2777
        %v2780 = vmul.f32 %v408, %v2777
        %v2781 = vmul.f32 %v413, %v2777
        %v2782 = vmul.f32 %v418, %v2777
        %v2783 = vmul.f32 %v423, %v2777
        %v2784 = vmul.f32 %v428, %v2777
        %v2785 = vmul.f32 %v433, %v2777
        %v2786 = vadd.f32 %v2769, %v2778
        %v2787 = vadd.f32 %v2770, %v2779
        %v2788 = vadd.f32 %v2771, %v2780
        %v2789 = vadd.f32 %v2772, %v2781
        %v2790 = vadd.f32 %v2773, %v2782
        %v2791 = vadd.f32 %v2774, %v2783
        %v2792 = vadd.f32 %v2775, %v2784
        %v2793 = vadd.f32 %v2776, %v2785
        %v2794 = vperm.slane %v2750, 6
        %v2795 = vsub.f32 %v2786, %v2794
        %v2796 = vsub.f32 %v2787, %v2794
        %v2797 = vsub.f32 %v2788, %v2794
        %v2798 = vsub.f32 %v2789, %v2794
        %v2799 = vsub.f32 %v2790, %v2794
        %v2800 = vsub.f32 %v2791, %v2794
        %v2801 = vsub.f32 %v2792, %v2794
        %v2802 = vsub.f32 %v2793, %v2794
        %vm2803 = vcmp.gt.f32.partialorder %v2795, 0.0
        %vm2804 = vcmp.gt.f32.partialorder %v2796, 0.0
        %vm2805 = vcmp.gt.f32.partialorder %v2797, 0.0
        %vm2806 = vcmp.gt.f32.partialorder %v2798, 0.0
        %vm2807 = vcmp.gt.f32.partialorder %v2799, 0.0
        %vm2808 = vcmp.gt.f32.partialorder %v2800, 0.0
        %vm2809 = vcmp.gt.f32.partialorder %v2801, 0.0
        %vm2810 = vcmp.gt.f32.partialorder %v2802, 0.0
        %v2811 = vsel %vm2803, %v1890, 0.0
        %v2812 = vsel %vm2804, %v1891, 0.0
        %v2813 = vsel %vm2805, %v1892, 0.0
        %v2814 = vsel %vm2806, %v1893, 0.0
        %v2815 = vsel %vm2807, %v1894, 0.0
        %v2816 = vsel %vm2808, %v1895, 0.0
        %v2817 = vsel %vm2809, %v1896, 0.0
        %v2818 = vsel %vm2810, %v1897, 0.0
        %v2819 = vsel %vm705, %v2811, 0.0
        %v2820 = vsel %vm705, %v2812, 0.0
        %v2821 = vadd.f32 %v2819, %v2820
        %v2822 = vsel %vm705, %v2813, 0.0
        %v2823 = vadd.f32 %v2821, %v2822
        %v2824 = vsel %vm705, %v2814, 0.0
        %v2825 = vadd.f32 %v2823, %v2824
        %v2826 = vsel %vm705, %v2815, 0.0
        %v2827 = vadd.f32 %v2825, %v2826
        %v2828 = vsel %vm705, %v2816, 0.0
        %v2829 = vadd.f32 %v2827, %v2828
        %v2830 = vsel %vm705, %v2817, 0.0
        %v2831 = vadd.f32 %v2829, %v2830
        %v2832 = vsel %vm705, %v2818, 0.0
        %v2833 = vadd.f32 %v2831, %v2832
        %v2834 = vrot.slane %v2833, 4
        %v2835 = vadd.f32 %v2833, %v2834
        %v2836 = vrot.slane %v2835, 2
        %v2837 = vadd.f32 %v2835, %v2836
        %v2838 = vrot.slane %v2837, 1
        %v2839 = vadd.f32 %v2837, %v2838
        %vm2840 = vcmp.lt.f32.partialorder %v2839, 16.0
        %v2841 = vsel %vm2840, -1.0, 1.0
        %v2842 = vmul.f32 %v2723, %v2841
        %v2843 = vmul.f32 %v2731, %v2841
        %v2844 = vmul.f32 %v2738, %v2841
        %v2845 = vmul.f32 %v2842, %v2842
        %v2846 = vmul.f32 %v2843, %v2843
        %v2847 = vadd.f32 %v2845, %v2846
        %v2848 = vmul.f32 %v2844, %v2844
        %v2849 = vadd.f32 %v2847, %v2848
        %v2850 = vrsqrt.pop %v2849
        %v2851 = vmul.f32 %v2850, %v2849
        %v2852 = vmul.f32 %v2851, %v2850
        %v2853 = vmul.f32 0.5, %v2852
        %v2854 = vsub.f32 1.5, %v2853
        %v2855 = vmul.f32 %v2850, %v2854
        %v2856 = vmul.f32 %v2849, %v2855
        %vm2857 = vcmp.eq.f32.partialorder %v2849, inf
        %v2858 = vsel %vm2857, %v2849, %v2856
        %vm2859 = vcmp.eq.f32.partialorder %v2849, 0.0
        %v2860 = vand.u32 %v2849, 2147483648
        %v2861 = vsel %vm2859, %v2860, %v2858
        %v2862 = vmax.f32 %v2861, 1e-06
        %v2863 = vrcp.pop %v2862
        %v2864 = vmul.f32 %v2862, %v2863
        %v2865 = vsub.f32 1.0, %v2864
        %v2866 = vmul.f32 %v2863, %v2865
        %v2867 = vadd.f32 %v2863, %v2866
        %vm2868 = vweird.f32 %v2862
        %vm2869 = vweird.f32 %v2863
        %vm2870 = vmor %vm2868, %vm2869
        %v2871 = vsel %vm2870, %v2863, %v2867
        %v2872 = vand.u32 2147483647, %v2862
        %vm2873 = vcmp.eq.f32.partialorder %v2872, 8.507059e+37
        %v2874 = vand.u32 %v2862, 2147483648
        %v2875 = vor.u32 1.1754944e-38, %v2874
        %v2876 = vsel %vm2873, %v2875, %v2871
        %v2877 = vmul.f32 1.0, %v2876
        %v2878 = vmul.f32 %v2842, %v2877
        %vm2879 = vcmask 522246
        %2880 = vst.msk [vmem:[#allocation2 - $0x6] sm:$0x40] %vm2879, %v2878
        %v2881 = vmul.f32 %v2843, %v2877
        %2882 = vst.msk [vmem:[#allocation2 - $0x5] sm:$0x40] %vm2879, %v2881
        %v2883 = vmul.f32 %v2844, %v2877
        %2884 = vst.msk [vmem:[#allocation2 - $0x4] sm:$0x40] %vm2879, %v2883
        %2885 = vst.msk [vmem:[#allocation2 + $0x3] sm:$0x1] %vm193, %v985
      $region36: #{tpu_custom_call.1} parent=27 // pred_fallthru
        _
      %p2886 = scmp.eq.s32.totalorder %s19, 1
      // Predicated region
      $region37: #{tpu_custom_call.1} parent=27 // pred_check
        %p2887 = pneg %p2886
      $region38: #{tpu_custom_call.1} parent=27 // pred_check_branch
        %2889 = sbr.rel (%p2887) target = $region40
      $region39: #{tpu_custom_call.1} parent=27 // pred_region
        %2891 = vset.pattern.permute.xlu0 0
        %2892 = vperm.xlu0 %2891, %v262
        %v2893 = vpop.permute.xlu0 %2892
        %2896 = vset.pattern.permute.xlu0 0
        %2897 = vperm.xlu0 %2896, %v263
        %v2898 = vpop.permute.xlu0 %2897
        %2901 = vset.pattern.permute.xlu0 0
        %2902 = vperm.xlu0 %2901, %v264
        %v2903 = vpop.permute.xlu0 %2902
        %2906 = vset.pattern.permute.xlu0 0
        %2907 = vperm.xlu0 %2906, %v265
        %v2908 = vpop.permute.xlu0 %2907
        %2911 = vset.pattern.permute.xlu0 0
        %2912 = vperm.xlu0 %2911, %v266
        %v2913 = vpop.permute.xlu0 %2912
        %2916 = vset.pattern.permute.xlu0 0
        %2917 = vperm.xlu0 %2916, %v267
        %v2918 = vpop.permute.xlu0 %2917
        %2921 = vset.pattern.permute.xlu0 0
        %2922 = vperm.xlu0 %2921, %v268
        %v2923 = vpop.permute.xlu0 %2922
        %2926 = vset.pattern.permute.xlu0 0
        %2927 = vperm.xlu0 %2926, %v269
        %v2928 = vpop.permute.xlu0 %2927
        %v2930 = vperm.slane %v257, 0
        %v2931 = vmul.f32 %v2893, %v2930
        %v2932 = vmul.f32 %v2898, %v2930
        %v2933 = vmul.f32 %v2903, %v2930
        %v2934 = vmul.f32 %v2908, %v2930
        %v2935 = vmul.f32 %v2913, %v2930
        %v2936 = vmul.f32 %v2918, %v2930
        %v2937 = vmul.f32 %v2923, %v2930
        %v2938 = vmul.f32 %v2928, %v2930
        %2940 = vset.pattern.permute.xlu0 1
        %2941 = vperm.xlu0 %2940, %v270
        %v2942 = vpop.permute.xlu0 %2941
        %2945 = vset.pattern.permute.xlu0 1
        %2946 = vperm.xlu0 %2945, %v271
        %v2947 = vpop.permute.xlu0 %2946
        %2950 = vset.pattern.permute.xlu0 1
        %2951 = vperm.xlu0 %2950, %v272
        %v2952 = vpop.permute.xlu0 %2951
        %2955 = vset.pattern.permute.xlu0 1
        %2956 = vperm.xlu0 %2955, %v273
        %v2957 = vpop.permute.xlu0 %2956
        %2960 = vset.pattern.permute.xlu0 1
        %2961 = vperm.xlu0 %2960, %v274
        %v2962 = vpop.permute.xlu0 %2961
        %2965 = vset.pattern.permute.xlu0 1
        %2966 = vperm.xlu0 %2965, %v275
        %v2967 = vpop.permute.xlu0 %2966
        %2970 = vset.pattern.permute.xlu0 1
        %2971 = vperm.xlu0 %2970, %v276
        %v2972 = vpop.permute.xlu0 %2971
        %2975 = vset.pattern.permute.xlu0 1
        %2976 = vperm.xlu0 %2975, %v277
        %v2977 = vpop.permute.xlu0 %2976
        %v2979 = vperm.slane %v259, 1
        %v2980 = vmul.f32 %v2942, %v2979
        %v2981 = vmul.f32 %v2947, %v2979
        %v2982 = vmul.f32 %v2952, %v2979
        %v2983 = vmul.f32 %v2957, %v2979
        %v2984 = vmul.f32 %v2962, %v2979
        %v2985 = vmul.f32 %v2967, %v2979
        %v2986 = vmul.f32 %v2972, %v2979
        %v2987 = vmul.f32 %v2977, %v2979
        %v2988 = vadd.f32 %v2931, %v2980
        %v2989 = vadd.f32 %v2932, %v2981
        %v2990 = vadd.f32 %v2933, %v2982
        %v2991 = vadd.f32 %v2934, %v2983
        %v2992 = vadd.f32 %v2935, %v2984
        %v2993 = vadd.f32 %v2936, %v2985
        %v2994 = vadd.f32 %v2937, %v2986
        %v2995 = vadd.f32 %v2938, %v2987
        %2997 = vset.pattern.permute.xlu0 2
        %2998 = vperm.xlu0 %2997, %v278
        %v2999 = vpop.permute.xlu0 %2998
        %3002 = vset.pattern.permute.xlu0 2
        %3003 = vperm.xlu0 %3002, %v279
        %v3004 = vpop.permute.xlu0 %3003
        %3007 = vset.pattern.permute.xlu0 2
        %3008 = vperm.xlu0 %3007, %v280
        %v3009 = vpop.permute.xlu0 %3008
        %3012 = vset.pattern.permute.xlu0 2
        %3013 = vperm.xlu0 %3012, %v281
        %v3014 = vpop.permute.xlu0 %3013
        %3017 = vset.pattern.permute.xlu0 2
        %3018 = vperm.xlu0 %3017, %v282
        %v3019 = vpop.permute.xlu0 %3018
        %3022 = vset.pattern.permute.xlu0 2
        %3023 = vperm.xlu0 %3022, %v283
        %v3024 = vpop.permute.xlu0 %3023
        %3027 = vset.pattern.permute.xlu0 2
        %3028 = vperm.xlu0 %3027, %v284
        %v3029 = vpop.permute.xlu0 %3028
        %3032 = vset.pattern.permute.xlu0 2
        %3033 = vperm.xlu0 %3032, %v285
        %v3034 = vpop.permute.xlu0 %3033
        %v3036 = vperm.slane %v261, 2
        %v3037 = vmul.f32 %v2999, %v3036
        %v3038 = vmul.f32 %v3004, %v3036
        %v3039 = vmul.f32 %v3009, %v3036
        %v3040 = vmul.f32 %v3014, %v3036
        %v3041 = vmul.f32 %v3019, %v3036
        %v3042 = vmul.f32 %v3024, %v3036
        %v3043 = vmul.f32 %v3029, %v3036
        %v3044 = vmul.f32 %v3034, %v3036
        %v3045 = vadd.f32 %v2988, %v3037
        %v3046 = vadd.f32 %v2989, %v3038
        %v3047 = vadd.f32 %v2990, %v3039
        %v3048 = vadd.f32 %v2991, %v3040
        %v3049 = vadd.f32 %v2992, %v3041
        %v3050 = vadd.f32 %v2993, %v3042
        %v3051 = vadd.f32 %v2994, %v3043
        %v3052 = vadd.f32 %v2995, %v3044
        %v3053 = vmul.f32 %v257, %v257
        %v3054 = vmul.f32 %v259, %v259
        %v3056 = vrot.slane %v3054, 1
        %v3058 = vadd.f32 %v3053, %v3056
        %v3059 = vmul.f32 %v261, %v261
        %v3061 = vrot.slane %v3059, 2
        %v3063 = vadd.f32 %v3058, %v3061
        %v3064 = vmul.f32 %v262, %v262
        %v3065 = vmul.f32 %v263, %v263
        %v3066 = vmul.f32 %v264, %v264
        %v3067 = vmul.f32 %v265, %v265
        %v3068 = vmul.f32 %v266, %v266
        %v3069 = vmul.f32 %v267, %v267
        %v3070 = vmul.f32 %v268, %v268
        %v3071 = vmul.f32 %v269, %v269
        %v3072 = vmul.f32 %v270, %v270
        %v3073 = vmul.f32 %v271, %v271
        %v3074 = vmul.f32 %v272, %v272
        %v3075 = vmul.f32 %v273, %v273
        %v3076 = vmul.f32 %v274, %v274
        %v3077 = vmul.f32 %v275, %v275
        %v3078 = vmul.f32 %v276, %v276
        %v3079 = vmul.f32 %v277, %v277
        %3088 = vrot.lane.b32.xlu0 %v3072, 127
        %v3089 = vpop.permute.xlu0 %3088
        %3090 = vrot.lane.b32.xlu0 %v3073, 127
        %v3091 = vpop.permute.xlu0 %3090
        %3092 = vrot.lane.b32.xlu0 %v3074, 127
        %v3093 = vpop.permute.xlu0 %3092
        %3094 = vrot.lane.b32.xlu0 %v3075, 127
        %v3095 = vpop.permute.xlu0 %3094
        %3096 = vrot.lane.b32.xlu0 %v3076, 127
        %v3097 = vpop.permute.xlu0 %3096
        %3098 = vrot.lane.b32.xlu0 %v3077, 127
        %v3099 = vpop.permute.xlu0 %3098
        %3100 = vrot.lane.b32.xlu0 %v3078, 127
        %v3101 = vpop.permute.xlu0 %3100
        %3102 = vrot.lane.b32.xlu0 %v3079, 127
        %v3103 = vpop.permute.xlu0 %3102
        %v3112 = vadd.f32 %v3064, %v3089
        %v3113 = vadd.f32 %v3065, %v3091
        %v3114 = vadd.f32 %v3066, %v3093
        %v3115 = vadd.f32 %v3067, %v3095
        %v3116 = vadd.f32 %v3068, %v3097
        %v3117 = vadd.f32 %v3069, %v3099
        %v3118 = vadd.f32 %v3070, %v3101
        %v3119 = vadd.f32 %v3071, %v3103
        %v3120 = vmul.f32 %v278, %v278
        %v3121 = vmul.f32 %v279, %v279
        %v3122 = vmul.f32 %v280, %v280
        %v3123 = vmul.f32 %v281, %v281
        %v3124 = vmul.f32 %v282, %v282
        %v3125 = vmul.f32 %v283, %v283
        %v3126 = vmul.f32 %v284, %v284
        %v3127 = vmul.f32 %v285, %v285
        %3136 = vrot.lane.b32.xlu0 %v3120, 126
        %v3137 = vpop.permute.xlu0 %3136
        %3138 = vrot.lane.b32.xlu0 %v3121, 126
        %v3139 = vpop.permute.xlu0 %3138
        %3140 = vrot.lane.b32.xlu0 %v3122, 126
        %v3141 = vpop.permute.xlu0 %3140
        %3142 = vrot.lane.b32.xlu0 %v3123, 126
        %v3143 = vpop.permute.xlu0 %3142
        %3144 = vrot.lane.b32.xlu0 %v3124, 126
        %v3145 = vpop.permute.xlu0 %3144
        %3146 = vrot.lane.b32.xlu0 %v3125, 126
        %v3147 = vpop.permute.xlu0 %3146
        %3148 = vrot.lane.b32.xlu0 %v3126, 126
        %v3149 = vpop.permute.xlu0 %3148
        %3150 = vrot.lane.b32.xlu0 %v3127, 126
        %v3151 = vpop.permute.xlu0 %3150
        %v3160 = vadd.f32 %v3112, %v3137
        %v3161 = vadd.f32 %v3113, %v3139
        %v3162 = vadd.f32 %v3114, %v3141
        %v3163 = vadd.f32 %v3115, %v3143
        %v3164 = vadd.f32 %v3116, %v3145
        %v3165 = vadd.f32 %v3117, %v3147
        %v3166 = vadd.f32 %v3118, %v3149
        %v3167 = vadd.f32 %v3119, %v3151
        %3169 = vset.pattern.permute.xlu0 0
        %3170 = vperm.xlu0 %3169, %v3160
        %v3171 = vpop.permute.xlu0 %3170
        %3174 = vset.pattern.permute.xlu0 0
        %3175 = vperm.xlu0 %3174, %v3161
        %v3176 = vpop.permute.xlu0 %3175
        %3179 = vset.pattern.permute.xlu0 0
        %3180 = vperm.xlu0 %3179, %v3162
        %v3181 = vpop.permute.xlu0 %3180
        %3184 = vset.pattern.permute.xlu0 0
        %3185 = vperm.xlu0 %3184, %v3163
        %v3186 = vpop.permute.xlu0 %3185
        %3189 = vset.pattern.permute.xlu0 0
        %3190 = vperm.xlu0 %3189, %v3164
        %v3191 = vpop.permute.xlu0 %3190
        %3194 = vset.pattern.permute.xlu0 0
        %3195 = vperm.xlu0 %3194, %v3165
        %v3196 = vpop.permute.xlu0 %3195
        %3199 = vset.pattern.permute.xlu0 0
        %3200 = vperm.xlu0 %3199, %v3166
        %v3201 = vpop.permute.xlu0 %3200
        %3204 = vset.pattern.permute.xlu0 0
        %3205 = vperm.xlu0 %3204, %v3167
        %v3206 = vpop.permute.xlu0 %3205
        %v3208 = vperm.slane %v3063, 0
        %v3209 = vadd.f32 %v3171, %v3208
        %v3210 = vadd.f32 %v3176, %v3208
        %v3211 = vadd.f32 %v3181, %v3208
        %v3212 = vadd.f32 %v3186, %v3208
        %v3213 = vadd.f32 %v3191, %v3208
        %v3214 = vadd.f32 %v3196, %v3208
        %v3215 = vadd.f32 %v3201, %v3208
        %v3216 = vadd.f32 %v3206, %v3208
        %v3217 = vmul.f32 %v3045, 2.0
        %v3218 = vmul.f32 %v3046, 2.0
        %v3219 = vmul.f32 %v3047, 2.0
        %v3220 = vmul.f32 %v3048, 2.0
        %v3221 = vmul.f32 %v3049, 2.0
        %v3222 = vmul.f32 %v3050, 2.0
        %v3223 = vmul.f32 %v3051, 2.0
        %v3224 = vmul.f32 %v3052, 2.0
        %v3225 = vsub.f32 %v3209, %v3217
        %v3226 = vsub.f32 %v3210, %v3218
        %v3227 = vsub.f32 %v3211, %v3219
        %v3228 = vsub.f32 %v3212, %v3220
        %v3229 = vsub.f32 %v3213, %v3221
        %v3230 = vsub.f32 %v3214, %v3222
        %v3231 = vsub.f32 %v3215, %v3223
        %v3232 = vsub.f32 %v3216, %v3224
        %v3233 = vmax.f32 %v3225, 0.0
        %v3234 = vmax.f32 %v3226, 0.0
        %v3235 = vmax.f32 %v3227, 0.0
        %v3236 = vmax.f32 %v3228, 0.0
        %v3237 = vmax.f32 %v3229, 0.0
        %v3238 = vmax.f32 %v3230, 0.0
        %v3239 = vmax.f32 %v3231, 0.0
        %v3240 = vmax.f32 %v3232, 0.0
        %v3241 = vlaneseq
        %v3242 = vshrl.u32 %v3241, 7
        %v3243 = vadd.s32 %v3242, 8
        %v3244 = vadd.s32 %v3242, 16
        %v3245 = vadd.s32 %v3242, 24
        %v3246 = vadd.s32 %v3242, 32
        %v3247 = vadd.s32 %v3242, 40
        %v3248 = vadd.s32 %v3242, 48
        %v3249 = vadd.s32 %v3242, 56
        %v3258 = vand.u32 %v3233, 4294967232
        %v3259 = vand.u32 %v3234, 4294967232
        %v3260 = vand.u32 %v3235, 4294967232
        %v3261 = vand.u32 %v3236, 4294967232
        %v3262 = vand.u32 %v3237, 4294967232
        %v3263 = vand.u32 %v3238, 4294967232
        %v3264 = vand.u32 %v3239, 4294967232
        %v3265 = vand.u32 %v3240, 4294967232
        %v3266 = vor.u32 %v3258, %v3242
        %v3267 = vor.u32 %v3259, %v3243
        %v3268 = vor.u32 %v3260, %v3244
        %v3269 = vor.u32 %v3261, %v3245
        %v3270 = vor.u32 %v3262, %v3246
        %v3271 = vor.u32 %v3263, %v3247
        %v3272 = vor.u32 %v3264, %v3248
        %v3273 = vor.u32 %v3265, %v3249
        %v3274 = vadd.s32 %v3266, 8388608
        %v3275 = vadd.s32 %v3267, 8388608
        %v3276 = vadd.s32 %v3268, 8388608
        %v3277 = vadd.s32 %v3269, 8388608
        %v3278 = vadd.s32 %v3270, 8388608
        %v3279 = vadd.s32 %v3271, 8388608
        %v3280 = vadd.s32 %v3272, 8388608
        %v3281 = vadd.s32 %v3273, 8388608
        %v3290 = vld [vmem:[#allocation2 + $0x3] sm:$0x1]
        %v3291 = vperm.slane %v3290, 0
        %vm3292 = vcmp.le.f32.partialorder %v3274, %v3291
        %vm3293 = vcmp.le.f32.partialorder %v3275, %v3291
        %vm3294 = vcmp.le.f32.partialorder %v3276, %v3291
        %vm3295 = vcmp.le.f32.partialorder %v3277, %v3291
        %vm3296 = vcmp.le.f32.partialorder %v3278, %v3291
        %vm3297 = vcmp.le.f32.partialorder %v3279, %v3291
        %vm3298 = vcmp.le.f32.partialorder %v3280, %v3291
        %vm3299 = vcmp.le.f32.partialorder %v3281, %v3291
        %v3300 = vsel %vm3292, 1, 0
        %v3301 = vsel %vm3293, 1, 0
        %v3302 = vsel %vm3294, 1, 0
        %v3303 = vsel %vm3295, 1, 0
        %v3304 = vsel %vm3296, 1, 0
        %v3305 = vsel %vm3297, 1, 0
        %v3306 = vsel %vm3298, 1, 0
        %v3307 = vsel %vm3299, 1, 0
        %v3308 = vcvt.s32.f32 %v3300
        %v3309 = vcvt.s32.f32 %v3301
        %v3310 = vcvt.s32.f32 %v3302
        %v3311 = vcvt.s32.f32 %v3303
        %v3312 = vcvt.s32.f32 %v3304
        %v3313 = vcvt.s32.f32 %v3305
        %v3314 = vcvt.s32.f32 %v3306
        %v3315 = vcvt.s32.f32 %v3307
        %v3316 = vld [vmem:[#allocation2] sm:$0x1]
        %v3317 = vld [vmem:[#allocation2 + $0x1] sm:$0x1]
        %v3318 = vld [vmem:[#allocation2 + $0x2] sm:$0x1]
        %3319 = vst.msk [vmem:[#allocation3] sm:$0x1] %vm193, %v3316
        %3320 = vst.msk [vmem:[#allocation3 + $0x1] sm:$0x1] %vm193, %v3317
        %3321 = vst.msk [vmem:[#allocation3 + $0x2] sm:$0x1] %vm193, %v3318
        %v3322 = vmul.f32 %v3316, %v3316
        %3323 = vst.msk [vmem:[#allocation3 + $0x3] sm:$0x1] %vm193, %v3322
        %v3324 = vmul.f32 %v3316, %v3317
        %3325 = vst.msk [vmem:[#allocation3 + $0x4] sm:$0x1] %vm193, %v3324
        %v3326 = vmul.f32 %v3316, %v3318
        %3327 = vst.msk [vmem:[#allocation3 + $0x5] sm:$0x1] %vm193, %v3326
        %v3328 = vmul.f32 %v3317, %v3317
        %3329 = vst.msk [vmem:[#allocation3 + $0x6] sm:$0x1] %vm193, %v3328
        %v3330 = vmul.f32 %v3317, %v3318
        %3331 = vst.msk [vmem:[#allocation3 + $0x7] sm:$0x1] %vm193, %v3330
        %v3332 = vmul.f32 %v3318, %v3318
        %3333 = vst.msk [vmem:[#allocation3 + $0x8] sm:$0x1] %vm193, %v3332
        %vm3334 = vcmask 522240
        %3335 = vst.msk [vmem:[#allocation3 + $0x9] sm:$0x7f] %vm3334, 0.0
        %v3336 = vld [vmem:[#allocation3] sm:$0xff]
        %v3337 = vld [vmem:[#allocation3 + $0x8] sm:$0xff]
        %vm3338 = vcmask 523264
        %v3340 = vsel %vm3338, %v3336, 0
        %v3343 = vsel %vm3338, %v3337, 0
        %3345 = vmatpush.msra.mxu0 0.0
        %3346 = vmatpush.msra.mxu0 0.0
        %3347 = vmatpush.msra.mxu0 0.0
        %3348 = vmatpush.msra.mxu0 0.0
        %3349 = vmatpush.msra.mxu0 0.0
        %3350 = vmatpush.msra.mxu0 0.0
        %3351 = vmatpush.msra.mxu0 0.0
        %3352 = vmatpush.msra.mxu0 0.0
        %3353 = vmatpush.msra.mxu0 %v3315
        %3354 = vmatpush.msra.mxu0 %v3314
        %3355 = vmatpush.msra.mxu0 %v3313
        %3356 = vmatpush.msra.mxu0 %v3312
        %3357 = vmatpush.msra.mxu0 %v3311
        %3358 = vmatpush.msra.mxu0 %v3310
        %3359 = vmatpush.msra.mxu0 %v3309
        %3360 = vmatpush.msra.mxu0 %v3308
        %3361 = vmatmul.f32.gmra.mxu0 %v3340
        %v3362 = vpop.f32.mrf.mxu0
        %v3363 = vadd.f32 0.0, %v3362
        %3364 = vmatmul.f32.gmra.mxu0 %v3343
        %v3365 = vpop.f32.mrf.mxu0
        %v3366 = vadd.f32 0.0, %v3365
        %3367 = vdwg.mxu0
        %v3368 = vld [vmem:[#allocation2] sm:$0x1]
        %v3369 = vld [vmem:[#allocation2 + $0x1] sm:$0x1]
        %v3370 = vld [vmem:[#allocation2 + $0x2] sm:$0x1]
        %v3371 = vmul.f32 %v3368, %v3363
        %v3373 = vrot.slane %v3363, 1
        %v3375 = vmul.f32 %v3369, %v3373
        %v3376 = vadd.f32 %v3371, %v3375
        %v3377 = vrot.slane %v3363, 2
        %v3379 = vmul.f32 %v3370, %v3377
        %v3380 = vadd.f32 %v3376, %v3379
        %v3382 = vrot.slane %v3368, 5
        %v3384 = vmul.f32 %v3363, %v3382
        %v3385 = vmul.f32 %v3384, %v3382
        %v3387 = vrot.slane %v3369, 2
        %v3389 = vmul.f32 %v3363, %v3387
        %v3390 = vmul.f32 %v3389, %v3387
        %v3392 = vrot.slane %v3390, 3
        %v3394 = vadd.f32 %v3385, %v3392
        %v3395 = vmul.f32 %v3366, %v3370
        %v3396 = vmul.f32 %v3395, %v3370
        %v3398 = vrot.slane %v3396, 5
        %v3400 = vadd.f32 %v3394, %v3398
        %v3401 = vrot.slane %v3368, 4
        %v3403 = vmul.f32 %v3363, %v3401
        %v3404 = vrot.slane %v3369, 4
        %v3406 = vmul.f32 %v3403, %v3404
        %v3407 = vrot.slane %v3368, 3
        %v3409 = vmul.f32 %v3363, %v3407
        %v3411 = vrot.slane %v3370, 3
        %v3413 = vmul.f32 %v3409, %v3411
        %v3415 = vrot.slane %v3413, 1
        %v3417 = vadd.f32 %v3406, %v3415
        %v3418 = vrot.slane %v3369, 1
        %v3420 = vmul.f32 %v3363, %v3418
        %v3421 = vrot.slane %v3370, 1
        %v3423 = vmul.f32 %v3420, %v3421
        %v3425 = vrot.slane %v3423, 3
        %v3427 = vadd.f32 %v3417, %v3425
        %v3428 = vmul.f32 %v3427, 2.0
        %v3430 = vrot.slane %v3428, 1
        %v3432 = vadd.f32 %v3400, %v3430
        %v3433 = vmul.f32 %v3380, %v3380
        %v3434 = vmul.f32 %v3433, 0.125
        %v3436 = vrot.slane %v3434, 5
        %v3438 = vsub.f32 %v3432, %v3436
        %v3439 = vmul.f32 %v3438, 0.14285715
        %v3440 = vmax.f32 %v3439, 0.0
        %v3441 = vrsqrt.pop %v3440
        %v3442 = vmul.f32 %v3441, %v3440
        %v3443 = vmul.f32 %v3442, %v3441
        %v3444 = vmul.f32 0.5, %v3443
        %v3445 = vsub.f32 1.5, %v3444
        %v3446 = vmul.f32 %v3441, %v3445
        %v3447 = vmul.f32 %v3440, %v3446
        %vm3448 = vcmp.eq.f32.partialorder %v3440, inf
        %v3449 = vsel %vm3448, %v3440, %v3447
        %vm3450 = vcmp.eq.f32.partialorder %v3440, 0.0
        %v3451 = vand.u32 %v3440, 2147483648
        %v3452 = vsel %vm3450, %v3451, %v3449
        %v3453 = vld [vmem:[%s175] sm:$0x1]
        %v3455 = vrot.slane %v3452, 3
        %v3457 = vsel %vm193, %v3455, 0.0
        %3458 = vadd.xlane.f32.xlu0 %v3457
        %v3459 = vpop.xlane.xlu0 %3458
        %v3460 = vrot.slane %v3459, 4
        %v3461 = vadd.f32 %v3459, %v3460
        %v3462 = vrot.slane %v3461, 2
        %v3463 = vadd.f32 %v3461, %v3462
        %v3464 = vrot.slane %v3463, 1
        %v3465 = vadd.f32 %v3463, %v3464
        %s3466 = vtos %v3465
        %s3467 = smul.f32 %s3466, 0.015625
        %v3468 = vstv %s3467
        %v3469 = vadd.f32 %v3453, %v3468
        %vm3470 = vcmask 0
        %3471 = vst.msk [vmem:[%s175] sm:$0x1] %vm3470, %v3469
      $region40: #{tpu_custom_call.1} parent=27 // pred_fallthru
        _
      %p3472 = scmp.lt.s32.totalorder %s18, 1
      %s3473 = scalar_select %p3472, %s18, 1
      %s3474 = scalar_lea.vmem %s2, %s3473
      // Predicated region
      $region41: #{tpu_custom_call.1} parent=27 // pred_check
        %p3475 = pneg %p102
      $region42: #{tpu_custom_call.1} parent=27 // pred_check_branch
        %3477 = sbr.rel (%p3475) target = $region44
      $region43: #{tpu_custom_call.1} parent=27 // pred_region
        _
      $region44: #{tpu_custom_call.1} parent=27 // pred_fallthru
        _
    $region28: #{tpu_custom_call.1} parent=5 // pred_fallthru
      _
    %p3478 = scmp.le.s32.totalorder 2, %s8
    // Predicated region
    $region45: #{tpu_custom_call.1} parent=5 // pred_check
      %p3479 = pneg %p3478
    $region46: #{tpu_custom_call.1} parent=5 // pred_check_branch
      %3481 = sbr.rel (%p3479) target = $region48
    $region47: #{tpu_custom_call.1} parent=5 // pred_region
      %s3482 = ssub.s32 %s8, 2
      // Predicated region
      $region49: #{tpu_custom_call.1} parent=47 // pred_check
        %p3483 = pneg %p108
      $region50: #{tpu_custom_call.1} parent=47 // pred_check_branch
        %3485 = sbr.rel (%p3483) target = $region52
      $region51: #{tpu_custom_call.1} parent=47 // pred_region
        %p3486 = scmp.lt.s32.totalorder %s21, 1
        %s3487 = scalar_select %p3486, %s21, 1
        %s3488 = scalar_lea.vmem %s2, %s3487
      $region52: #{tpu_custom_call.1} parent=47 // pred_fallthru
        _
    $region48: #{tpu_custom_call.1} parent=5 // pred_fallthru
      _
  $region6: #{tpu_custom_call.1} parent=0 // loop_footer
    %s12 = sadd.s32 1, %s8
  $region7: #{tpu_custom_call.1} parent=0 // loop_footer_branch
    %7 = sbr.rel target = $region3
  $region8: #{tpu_custom_call.1} parent=0 // loop_exit
    _

</llo_original>
